<compile_context>
chip_gen: v7x
topology: tpu7x:2x2x1
jax: 0.10.0
libtpu: 0.0.40
codegen_flags: <defaults>
</compile_context>

<pallas_src>
import functools

import jax
import jax.numpy as jnp
from jax import lax
from jax.experimental import pallas as pl
from jax.experimental.pallas import tpu as pltpu


def _dws_kernel(x_ref, dwtm_ref, s1_ref, b1_ref,
                sew1_ref, seb1_ref, sew2_ref, seb2_ref,
                pww_ref, s2_ref, b2_ref,
                o_ref, xp_ref, yt_ref, *, W):
    # x_ref : (B, C, HW)       B images; channels on sublanes, flat spatial on lanes
    # dwtm  : (9, C, HW)       depthwise taps, pre-broadcast + column-wrap mask folded in
    # s1,b1 : (C, HW)          folded BN after depthwise conv (pre-broadcast)
    # sew1  : (C, Cr)          SE squeeze weight (transposed),  seb1: (1, Cr)
    # sew2  : (C, Cr)          SE excite weight,                seb2: (C, 1)
    # pww   : (F, C)           pointwise 1x1 conv weight
    # s2,b2 : (F, HW)          folded BN after pointwise conv (pre-broadcast)
    # o_ref : (B, F, HW)
    # xp_ref: (B, C, HW+2*PAD) zero-padded halo scratch
    # yt_ref: (C, B*HW)        lane-dense staging buffer for the single MXU dot
    B, C, HW = x_ref.shape
    PAD = (xp_ref.shape[2] - HW) // 2

    # Zero only the two halo pads (the interior is fully overwritten below).
    # Done every step (not pl.when(step==0)): scratch is per-TensorCore and with
    # "parallel" grid semantics the 2nd core on v7x never executes step 0.
    zpad = jnp.zeros((B, C, PAD), jnp.float32)
    xp_ref[:, :, :PAD] = zpad
    xp_ref[:, :, PAD + HW:] = zpad
    xp_ref[:, :, pl.ds(PAD, HW)] = x_ref[...].astype(jnp.float32)

    # --- depthwise 3x3 conv: 9 statically-offset loads * pre-masked taps ---
    # Row over/underflow of the 3x3 window lands in the zero pads; the column
    # wrap (w-1 at w==0, w+1 at w==W-1) was zeroed out of dwtm in the wrapper.
    acc = jnp.zeros((B, C, HW), jnp.float32)
    t = 0
    for di in (-1, 0, 1):                       # height offset
        for dj in (-1, 0, 1):                   # width offset
            off = PAD + di * W + dj
            acc = acc + xp_ref[:, :, pl.ds(off, HW)] * dwtm_ref[t]
            t += 1

    # --- folded BN + ReLU ---
    y = jnp.maximum(acc * s1_ref[...] + b1_ref[...], 0.0)                   # (B, C, HW)

    # --- SE module (VPU multiplies + XLU reductions; no tiny MXU matmuls) ---
    mean = jnp.sum(y, axis=2, keepdims=True) * (1.0 / HW)                   # (B, C, 1)
    z = jnp.sum(mean * sew1_ref[...], axis=1, keepdims=True) + seb1_ref[...]  # (B, 1, Cr)
    z = jnp.maximum(z, 0.0)
    g = jnp.sum(sew2_ref[...] * z, axis=2, keepdims=True) + seb2_ref[...]   # (B, C, 1)
    g = jax.nn.sigmoid(g)
    y = y * g                                                               # (B, C, HW)

    # --- pointwise 1x1 conv: stage (C, B*HW) and issue ONE MXU dot ---
    for b in range(B):                          # aligned 256-lane stores
        yt_ref[:, b * HW:(b + 1) * HW] = y[b]
    out = jnp.dot(pww_ref[...], yt_ref[...],
                  preferred_element_type=jnp.float32)                       # (F, B*HW)

    # --- folded BN + ReLU, per-image lane-dense stores ---
    s2 = s2_ref[...]
    b2 = b2_ref[...]
    for b in range(B):
        o_ref[b] = jnp.maximum(out[:, b * HW:(b + 1) * HW] * s2 + b2,
                               0.0).astype(o_ref.dtype)


def _pick_batch(N, C, F, HW):
    """Images per grid step: largest divisor of N that keeps >= 2 grid steps
    (so both v7x TensorCores get work under "parallel" semantics) and keeps the
    double-buffered in/out blocks under a modest VMEM budget."""
    budget = 4 << 20                              # bytes for in+out blocks (x2 buffers)
    per_image = (C + F) * HW * 4 * 2
    cap = max(1, budget // per_image)
    best = 1
    for b in range(1, N + 1):
        if N % b == 0 and b <= cap and (N // b >= 2 or N == 1):
            best = b
    return best


def depthwise_separable(x_nchw, params, *, images_per_step=None):
    """x_nchw: (N, C, H, W) float32. Returns (N, F, H, W) float32."""
    # TODO(synk): stride > 1 is not implemented; this kernel covers the
    # stride=1 / dw_size=3 / use_se=True configuration of DepthwiseSeparable.
    # TODO(synk): an optional bf16 HBM/MXU boundary (halves the I/O DMA) is left
    # out to keep exact f32 parity with the PyTorch module.
    (dwtm, s1, b1, sew1, seb1, sew2, seb2, pww, s2, b2) = params
    N, C, H, W = x_nchw.shape
    F = pww.shape[0]
    HW = H * W
    PAD = 128  # aligned in-kernel pad width; must cover one halo row (>= W + 1)
    assert PAD >= W + 1, "feature map too wide for the fixed in-kernel pad"
    assert HW % 128 == 0, "H*W must be a multiple of 128 for lane-dense tiles"

    B = images_per_step or _pick_batch(N, C, F, HW)
    assert N % B == 0, "images_per_step must divide the batch"
    grid = (N // B,)

    x_flat = x_nchw.reshape(N, C, HW)
    kernel = functools.partial(_dws_kernel, W=W)

    def full(arr):
        nd = arr.ndim
        return pl.BlockSpec(arr.shape, lambda n, _nd=nd: (0,) * _nd)

    out = pl.pallas_call(
        kernel,
        out_shape=jax.ShapeDtypeStruct((N, F, HW), jnp.float32),
        grid_spec=pltpu.PrefetchScalarGridSpec(
            num_scalar_prefetch=0,
            grid=grid,  # >=2 steps when N>=2; "parallel" -> shards across TCs on v7x
            in_specs=[
                pl.BlockSpec((B, C, HW), lambda n: (n, 0, 0)),
                full(dwtm), full(s1), full(b1),
                full(sew1), full(seb1), full(sew2), full(seb2),
                full(pww), full(s2), full(b2),
            ],
            out_specs=pl.BlockSpec((B, F, HW), lambda n: (n, 0, 0)),
            scratch_shapes=[
                pltpu.VMEM((B, C, HW + 2 * PAD), jnp.float32),   # padded halo image
                pltpu.VMEM((C, B * HW), jnp.float32),            # MXU RHS staging
            ],
        ),
        compiler_params=pltpu.CompilerParams(
            dimension_semantics=("parallel",)),
    )(x_flat, dwtm, s1, b1, sew1, seb1, sew2, seb2, pww, s2, b2)
    return out.reshape(N, F, H, W)


def _fold_bn(gamma, beta, mean, var, eps=1e-5):
    scale = gamma / jnp.sqrt(var + eps)
    bias = beta - mean * scale
    return scale, bias


def make_torch_weights(key, C, F, reduction=4):
    """PyTorch-shaped weights for the block (eval-mode BN running stats)."""
    Cr = C // reduction
    ks = jax.random.split(key, 13)
    dw_w = 0.1 * jax.random.normal(ks[0], (C, 1, 3, 3), jnp.float32)     # depthwise conv
    g1 = 0.5 + jax.random.uniform(ks[1], (C,))
    be1 = 0.1 * jax.random.normal(ks[2], (C,))
    m1 = 0.1 * jax.random.normal(ks[3], (C,))
    v1 = 0.5 + jax.random.uniform(ks[4], (C,))
    se_w1 = 0.2 * jax.random.normal(ks[5], (Cr, C, 1, 1), jnp.float32)   # SE squeeze
    se_b1 = 0.1 * jax.random.normal(ks[6], (Cr,), jnp.float32)
    se_w2 = 0.2 * jax.random.normal(ks[7], (C, Cr, 1, 1), jnp.float32)   # SE excite
    se_b2 = 0.1 * jax.random.normal(ks[8], (C,), jnp.float32)
    pw_w = 0.1 * jax.random.normal(ks[9], (F, C, 1, 1), jnp.float32)     # pointwise conv
    g2 = 0.5 + jax.random.uniform(ks[10], (F,))
    be2 = 0.1 * jax.random.normal(ks[11], (F,))
    m2 = 0.05 + 0.1 * jax.random.normal(ks[12], (F,))
    v2 = jnp.ones((F,)) * 0.8
    return (dw_w, g1, be1, m1, v1, se_w1, se_b1, se_w2, se_b2, pw_w, g2, be2, m2, v2)


def make_kernel_params(tw, H, W):
    """Convert PyTorch-shaped weights into the kernel's lane-dense, pre-broadcast
    layout (grid-invariant VMEM residents, so the broadcasts cost nothing at runtime)."""
    (dw_w, g1, be1, m1, v1, se_w1, se_b1, se_w2, se_b2, pw_w, g2, be2, m2, v2) = tw
    C = dw_w.shape[0]
    F = pw_w.shape[0]
    Cr = se_w1.shape[0]
    HW = H * W
    dwt = dw_w.reshape(C, 9)                                   # column = 3*ki + kj
    # Fold the column-wrap validity mask into lane-dense per-tap weights:
    # row over/underflow is handled by the kernel's zero pads; the column wrap
    # (w-1 at w==0, w+1 at w==W-1) is zeroed here, once, instead of per step.
    w_idx = jnp.arange(HW, dtype=jnp.int32) % W
    colmask = {
        -1: (w_idx != 0).astype(jnp.float32),
        0: jnp.ones((HW,), jnp.float32),
        1: (w_idx != (W - 1)).astype(jnp.float32),
    }
    dwtm = jnp.stack([
        dwt[:, 3 * (di + 1) + (dj + 1)][:, None] * colmask[dj][None, :]
        for di in (-1, 0, 1) for dj in (-1, 0, 1)
    ], axis=0)                                                 # (9, C, HW)
    s1, b1 = _fold_bn(g1, be1, m1, v1)
    s2, b2 = _fold_bn(g2, be2, m2, v2)
    s1b = jnp.broadcast_to(s1[:, None], (C, HW))
    b1b = jnp.broadcast_to(b1[:, None], (C, HW))
    s2b = jnp.broadcast_to(s2[:, None], (F, HW))
    b2b = jnp.broadcast_to(b2[:, None], (F, HW))
    sew1 = jnp.transpose(se_w1[:, :, 0, 0], (1, 0))            # (C, Cr)
    seb1 = se_b1.reshape(1, Cr)
    sew2 = se_w2[:, :, 0, 0]                                   # (C, Cr)
    seb2 = se_b2.reshape(C, 1)
    pww = pw_w[:, :, 0, 0]                                     # (F, C)
    return (dwtm, s1b, b1b, sew1, seb1, sew2, seb2, pww, s2b, b2b)


def reference(x_nchw, tw):
    """Pure-JAX NCHW reference using lax convolutions (independent of the kernel math)."""
    (dw_w, g1, be1, m1, v1, se_w1, se_b1, se_w2, se_b2, pw_w, g2, be2, m2, v2) = tw
    C = x_nchw.shape[1]
    dn = ("NCHW", "OIHW", "NCHW")
    y = lax.conv_general_dilated(x_nchw, dw_w, (1, 1), ((1, 1), (1, 1)),
                                 dimension_numbers=dn, feature_group_count=C)
    s1, b1 = _fold_bn(g1, be1, m1, v1)
    y = jnp.maximum(y * s1[None, :, None, None] + b1[None, :, None, None], 0.0)
    s = jnp.mean(y, axis=(2, 3), keepdims=True)
    z = lax.conv_general_dilated(s, se_w1, (1, 1), ((0, 0), (0, 0)), dimension_numbers=dn)
    z = jnp.maximum(z + se_b1[None, :, None, None], 0.0)
    g = lax.conv_general_dilated(z, se_w2, (1, 1), ((0, 0), (0, 0)), dimension_numbers=dn)
    g = jax.nn.sigmoid(g + se_b2[None, :, None, None])
    y = y * g
    out = lax.conv_general_dilated(y, pw_w, (1, 1), ((0, 0), (0, 0)), dimension_numbers=dn)
    s2, b2 = _fold_bn(g2, be2, m2, v2)
    out = jnp.maximum(out * s2[None, :, None, None] + b2[None, :, None, None], 0.0)
    return out


if __name__ == "__main__":
    # DepthwiseSeparable(num_channels=8, num_filters=16, stride=1, dw_size=3, use_se=True)
    # N=16 so the kernel batches 8 images/step and still keeps a 2-step grid
    # (both v7x TensorCores busy under "parallel" semantics).
    N, C, H, W, F = 16, 8, 16, 16, 16
    key = jax.random.PRNGKey(0)
    kx, kw = jax.random.split(key)

    x_nchw = jax.random.normal(kx, (N, C, H, W), jnp.float32)   # PyTorch-style NCHW input
    tw = make_torch_weights(kw, C, F)
    params = make_kernel_params(tw, H, W)

    out = jax.block_until_ready(depthwise_separable(x_nchw, params))
    ref = jax.block_until_ready(reference(x_nchw, tw))

    assert out.shape == (N, F, H, W)
    max_err = float(jnp.max(jnp.abs(out - ref)))
    assert jnp.allclose(out, ref, atol=2e-4, rtol=2e-4), max_err

    print("KERNEL_OK")
</pallas_src>

<mosaic_0001>
module attributes {stable_mosaic.version = 11 : i64} {
  func.func @_dws_kernel(%arg0: i32, %arg1: memref<8x8x256xf32, #tpu.memory_space<vmem>>, %arg2: memref<9x8x256xf32, #tpu.memory_space<vmem>>, %arg3: memref<8x256xf32, #tpu.memory_space<vmem>>, %arg4: memref<8x256xf32, #tpu.memory_space<vmem>>, %arg5: memref<8x2xf32, #tpu.memory_space<vmem>>, %arg6: memref<1x2xf32, #tpu.memory_space<vmem>>, %arg7: memref<8x2xf32, #tpu.memory_space<vmem>>, %arg8: memref<8x1xf32, #tpu.memory_space<vmem>>, %arg9: memref<16x8xf32, #tpu.memory_space<vmem>>, %arg10: memref<16x256xf32, #tpu.memory_space<vmem>>, %arg11: memref<16x256xf32, #tpu.memory_space<vmem>>, %arg12: memref<8x16x256xf32, #tpu.memory_space<vmem>>, %arg13: memref<8x8x512xf32, #tpu.memory_space<vmem>>, %arg14: memref<8x2048xf32, #tpu.memory_space<vmem>>) attributes {dimension_semantics = [#tpu.dimension_semantics<parallel>], iteration_bounds = array<i64: 2>, scalar_prefetch = 0 : i64, scratch_operands = 2 : i64, tpu.core_type = #tpu.core_type<tc>, window_params = [{transform_indices = @transform_0, window_bounds = array<i64: 8, 8, 256>}, {pipeline_mode = #tpu.pipeline_mode<synchronous>, transform_indices = @transform_1, window_bounds = array<i64: 9, 8, 256>}, {pipeline_mode = #tpu.pipeline_mode<synchronous>, transform_indices = @transform_2, window_bounds = array<i64: 8, 256>}, {pipeline_mode = #tpu.pipeline_mode<synchronous>, transform_indices = @transform_3, window_bounds = array<i64: 8, 256>}, {pipeline_mode = #tpu.pipeline_mode<synchronous>, transform_indices = @transform_4, window_bounds = array<i64: 8, 2>}, {pipeline_mode = #tpu.pipeline_mode<synchronous>, transform_indices = @transform_5, window_bounds = array<i64: 1, 2>}, {pipeline_mode = #tpu.pipeline_mode<synchronous>, transform_indices = @transform_6, window_bounds = array<i64: 8, 2>}, {pipeline_mode = #tpu.pipeline_mode<synchronous>, transform_indices = @transform_7, window_bounds = array<i64: 8, 1>}, {pipeline_mode = #tpu.pipeline_mode<synchronous>, transform_indices = @transform_8, window_bounds = array<i64: 16, 8>}, {pipeline_mode = #tpu.pipeline_mode<synchronous>, transform_indices = @transform_9, window_bounds = array<i64: 16, 256>}, {pipeline_mode = #tpu.pipeline_mode<synchronous>, transform_indices = @transform_10, window_bounds = array<i64: 16, 256>}, {transform_indices = @transform_11, window_bounds = array<i64: 8, 16, 256>}]} {
    %cst = arith.constant 0.000000e+00 : f32
    %0 = vector.broadcast %cst : f32 to vector<8x8x128xf32>
    %c0 = arith.constant 0 : index
    %c0_0 = arith.constant 0 : index
    %c0_1 = arith.constant 0 : index
    %1 = vector.load %arg13[%c0, %c0_0, %c0_1] : memref<8x8x512xf32, #tpu.memory_space<vmem>>, vector<8x8x128xf32>
    tpu.vector_store %arg13[%c0, %c0_0, %c0_1], %0 {strides = array<i32>} : memref<8x8x512xf32, #tpu.memory_space<vmem>>, vector<8x8x128xf32>,
    %c0_2 = arith.constant 0 : index
    %c0_3 = arith.constant 0 : index
    %c384 = arith.constant 384 : index
    %2 = vector.load %arg13[%c0_2, %c0_3, %c384] : memref<8x8x512xf32, #tpu.memory_space<vmem>>, vector<8x8x128xf32>
    tpu.vector_store %arg13[%c0_2, %c0_3, %c384], %0 {strides = array<i32>} : memref<8x8x512xf32, #tpu.memory_space<vmem>>, vector<8x8x128xf32>,
    %c0_4 = arith.constant 0 : index
    %c0_5 = arith.constant 0 : index
    %c0_6 = arith.constant 0 : index
    %3 = vector.load %arg1[%c0_4, %c0_5, %c0_6] : memref<8x8x256xf32, #tpu.memory_space<vmem>>, vector<8x8x256xf32>
    %c0_7 = arith.constant 0 : index
    %c0_8 = arith.constant 0 : index
    %c128 = arith.constant 128 : index
    %4 = vector.load %arg13[%c0_7, %c0_8, %c128] : memref<8x8x512xf32, #tpu.memory_space<vmem>>, vector<8x8x256xf32>
    tpu.vector_store %arg13[%c0_7, %c0_8, %c128], %3 {strides = array<i32>} : memref<8x8x512xf32, #tpu.memory_space<vmem>>, vector<8x8x256xf32>,
    %cst_9 = arith.constant 0.000000e+00 : f32
    %5 = vector.broadcast %cst_9 : f32 to vector<8x8x256xf32>
    %c0_10 = arith.constant 0 : index
    %c0_11 = arith.constant 0 : index
    %c111 = arith.constant 111 : index
    %6 = vector.load %arg13[%c0_10, %c0_11, %c111] : memref<8x8x512xf32, #tpu.memory_space<vmem>>, vector<8x8x256xf32>
    %c0_12 = arith.constant 0 : index
    %c0_13 = arith.constant 0 : index
    %c0_14 = arith.constant 0 : index
    %7 = vector.load %arg2[%c0_12, %c0_13, %c0_14] : memref<9x8x256xf32, #tpu.memory_space<vmem>>, vector<1x8x256xf32>
    %8 = vector.shape_cast %7 : vector<1x8x256xf32> to vector<8x256xf32>
    %9 = vector.shape_cast %8 : vector<8x256xf32> to vector<1x8x256xf32>
    %10 = vector.broadcast %9 : vector<1x8x256xf32> to vector<8x8x256xf32>
    %11 = arith.mulf %6, %10 : vector<8x8x256xf32>
    %12 = arith.addf %5, %11 : vector<8x8x256xf32>
    %c0_15 = arith.constant 0 : index
    %c0_16 = arith.constant 0 : index
    %c112 = arith.constant 112 : index
    %13 = vector.load %arg13[%c0_15, %c0_16, %c112] : memref<8x8x512xf32, #tpu.memory_space<vmem>>, vector<8x8x256xf32>
    %c1 = arith.constant 1 : index
    %c0_17 = arith.constant 0 : index
    %c0_18 = arith.constant 0 : index
    %14 = vector.load %arg2[%c1, %c0_17, %c0_18] : memref<9x8x256xf32, #tpu.memory_space<vmem>>, vector<1x8x256xf32>
    %15 = vector.shape_cast %14 : vector<1x8x256xf32> to vector<8x256xf32>
    %16 = vector.shape_cast %15 : vector<8x256xf32> to vector<1x8x256xf32>
    %17 = vector.broadcast %16 : vector<1x8x256xf32> to vector<8x8x256xf32>
    %18 = arith.mulf %13, %17 : vector<8x8x256xf32>
    %19 = arith.addf %12, %18 : vector<8x8x256xf32>
    %c0_19 = arith.constant 0 : index
    %c0_20 = arith.constant 0 : index
    %c113 = arith.constant 113 : index
    %20 = vector.load %arg13[%c0_19, %c0_20, %c113] : memref<8x8x512xf32, #tpu.memory_space<vmem>>, vector<8x8x256xf32>
    %c2 = arith.constant 2 : index
    %c0_21 = arith.constant 0 : index
    %c0_22 = arith.constant 0 : index
    %21 = vector.load %arg2[%c2, %c0_21, %c0_22] : memref<9x8x256xf32, #tpu.memory_space<vmem>>, vector<1x8x256xf32>
    %22 = vector.shape_cast %21 : vector<1x8x256xf32> to vector<8x256xf32>
    %23 = vector.shape_cast %22 : vector<8x256xf32> to vector<1x8x256xf32>
    %24 = vector.broadcast %23 : vector<1x8x256xf32> to vector<8x8x256xf32>
    %25 = arith.mulf %20, %24 : vector<8x8x256xf32>
    %26 = arith.addf %19, %25 : vector<8x8x256xf32>
    %c0_23 = arith.constant 0 : index
    %c0_24 = arith.constant 0 : index
    %c127 = arith.constant 127 : index
    %27 = vector.load %arg13[%c0_23, %c0_24, %c127] : memref<8x8x512xf32, #tpu.memory_space<vmem>>, vector<8x8x256xf32>
    %c3 = arith.constant 3 : index
    %c0_25 = arith.constant 0 : index
    %c0_26 = arith.constant 0 : index
    %28 = vector.load %arg2[%c3, %c0_25, %c0_26] : memref<9x8x256xf32, #tpu.memory_space<vmem>>, vector<1x8x256xf32>
    %29 = vector.shape_cast %28 : vector<1x8x256xf32> to vector<8x256xf32>
    %30 = vector.shape_cast %29 : vector<8x256xf32> to vector<1x8x256xf32>
    %31 = vector.broadcast %30 : vector<1x8x256xf32> to vector<8x8x256xf32>
    %32 = arith.mulf %27, %31 : vector<8x8x256xf32>
    %33 = arith.addf %26, %32 : vector<8x8x256xf32>
    %c0_27 = arith.constant 0 : index
    %c0_28 = arith.constant 0 : index
    %c128_29 = arith.constant 128 : index
    %34 = vector.load %arg13[%c0_27, %c0_28, %c128_29] : memref<8x8x512xf32, #tpu.memory_space<vmem>>, vector<8x8x256xf32>
    %c4 = arith.constant 4 : index
    %c0_30 = arith.constant 0 : index
    %c0_31 = arith.constant 0 : index
    %35 = vector.load %arg2[%c4, %c0_30, %c0_31] : memref<9x8x256xf32, #tpu.memory_space<vmem>>, vector<1x8x256xf32>
    %36 = vector.shape_cast %35 : vector<1x8x256xf32> to vector<8x256xf32>
    %37 = vector.shape_cast %36 : vector<8x256xf32> to vector<1x8x256xf32>
    %38 = vector.broadcast %37 : vector<1x8x256xf32> to vector<8x8x256xf32>
    %39 = arith.mulf %34, %38 : vector<8x8x256xf32>
    %40 = arith.addf %33, %39 : vector<8x8x256xf32>
    %c0_32 = arith.constant 0 : index
    %c0_33 = arith.constant 0 : index
    %c129 = arith.constant 129 : index
    %41 = vector.load %arg13[%c0_32, %c0_33, %c129] : memref<8x8x512xf32, #tpu.memory_space<vmem>>, vector<8x8x256xf32>
    %c5 = arith.constant 5 : index
    %c0_34 = arith.constant 0 : index
    %c0_35 = arith.constant 0 : index
    %42 = vector.load %arg2[%c5, %c0_34, %c0_35] : memref<9x8x256xf32, #tpu.memory_space<vmem>>, vector<1x8x256xf32>
    %43 = vector.shape_cast %42 : vector<1x8x256xf32> to vector<8x256xf32>
    %44 = vector.shape_cast %43 : vector<8x256xf32> to vector<1x8x256xf32>
    %45 = vector.broadcast %44 : vector<1x8x256xf32> to vector<8x8x256xf32>
    %46 = arith.mulf %41, %45 : vector<8x8x256xf32>
    %47 = arith.addf %40, %46 : vector<8x8x256xf32>
    %c0_36 = arith.constant 0 : index
    %c0_37 = arith.constant 0 : index
    %c143 = arith.constant 143 : index
    %48 = vector.load %arg13[%c0_36, %c0_37, %c143] : memref<8x8x512xf32, #tpu.memory_space<vmem>>, vector<8x8x256xf32>
    %c6 = arith.constant 6 : index
    %c0_38 = arith.constant 0 : index
    %c0_39 = arith.constant 0 : index
    %49 = vector.load %arg2[%c6, %c0_38, %c0_39] : memref<9x8x256xf32, #tpu.memory_space<vmem>>, vector<1x8x256xf32>
    %50 = vector.shape_cast %49 : vector<1x8x256xf32> to vector<8x256xf32>
    %51 = vector.shape_cast %50 : vector<8x256xf32> to vector<1x8x256xf32>
    %52 = vector.broadcast %51 : vector<1x8x256xf32> to vector<8x8x256xf32>
    %53 = arith.mulf %48, %52 : vector<8x8x256xf32>
    %54 = arith.addf %47, %53 : vector<8x8x256xf32>
    %c0_40 = arith.constant 0 : index
    %c0_41 = arith.constant 0 : index
    %c144 = arith.constant 144 : index
    %55 = vector.load %arg13[%c0_40, %c0_41, %c144] : memref<8x8x512xf32, #tpu.memory_space<vmem>>, vector<8x8x256xf32>
    %c7 = arith.constant 7 : index
    %c0_42 = arith.constant 0 : index
    %c0_43 = arith.constant 0 : index
    %56 = vector.load %arg2[%c7, %c0_42, %c0_43] : memref<9x8x256xf32, #tpu.memory_space<vmem>>, vector<1x8x256xf32>
    %57 = vector.shape_cast %56 : vector<1x8x256xf32> to vector<8x256xf32>
    %58 = vector.shape_cast %57 : vector<8x256xf32> to vector<1x8x256xf32>
    %59 = vector.broadcast %58 : vector<1x8x256xf32> to vector<8x8x256xf32>
    %60 = arith.mulf %55, %59 : vector<8x8x256xf32>
    %61 = arith.addf %54, %60 : vector<8x8x256xf32>
    %c0_44 = arith.constant 0 : index
    %c0_45 = arith.constant 0 : index
    %c145 = arith.constant 145 : index
    %62 = vector.load %arg13[%c0_44, %c0_45, %c145] : memref<8x8x512xf32, #tpu.memory_space<vmem>>, vector<8x8x256xf32>
    %c8 = arith.constant 8 : index
    %c0_46 = arith.constant 0 : index
    %c0_47 = arith.constant 0 : index
    %63 = vector.load %arg2[%c8, %c0_46, %c0_47] : memref<9x8x256xf32, #tpu.memory_space<vmem>>, vector<1x8x256xf32>
    %64 = vector.shape_cast %63 : vector<1x8x256xf32> to vector<8x256xf32>
    %65 = vector.shape_cast %64 : vector<8x256xf32> to vector<1x8x256xf32>
    %66 = vector.broadcast %65 : vector<1x8x256xf32> to vector<8x8x256xf32>
    %67 = arith.mulf %62, %66 : vector<8x8x256xf32>
    %68 = arith.addf %61, %67 : vector<8x8x256xf32>
    %c0_48 = arith.constant 0 : index
    %c0_49 = arith.constant 0 : index
    %69 = vector.load %arg3[%c0_48, %c0_49] : memref<8x256xf32, #tpu.memory_space<vmem>>, vector<8x256xf32>
    %70 = vector.shape_cast %69 : vector<8x256xf32> to vector<1x8x256xf32>
    %71 = vector.broadcast %70 : vector<1x8x256xf32> to vector<8x8x256xf32>
    %72 = arith.mulf %68, %71 : vector<8x8x256xf32>
    %c0_50 = arith.constant 0 : index
    %c0_51 = arith.constant 0 : index
    %73 = vector.load %arg4[%c0_50, %c0_51] : memref<8x256xf32, #tpu.memory_space<vmem>>, vector<8x256xf32>
    %74 = vector.shape_cast %73 : vector<8x256xf32> to vector<1x8x256xf32>
    %75 = vector.broadcast %74 : vector<1x8x256xf32> to vector<8x8x256xf32>
    %76 = arith.addf %72, %75 : vector<8x8x256xf32>
    %cst_52 = arith.constant 0.000000e+00 : f32
    %77 = vector.broadcast %cst_52 : f32 to vector<8x8x256xf32>
    %78 = arith.maximumf %76, %77 : vector<8x8x256xf32>
    %cst_53 = arith.constant dense<0.000000e+00> : vector<8x8xf32>
    %79 = vector.multi_reduction <add>, %78, %cst_53 [2] : vector<8x8x256xf32> to vector<8x8xf32>
    %80 = vector.shape_cast %79 : vector<8x8xf32> to vector<8x8x1xf32>
    %cst_54 = arith.constant 3.906250e-03 : f32
    %81 = vector.broadcast %cst_54 : f32 to vector<8x8x1xf32>
    %82 = arith.mulf %80, %81 : vector<8x8x1xf32>
    %c0_55 = arith.constant 0 : index
    %c0_56 = arith.constant 0 : index
    %83 = vector.load %arg5[%c0_55, %c0_56] : memref<8x2xf32, #tpu.memory_space<vmem>>, vector<8x2xf32>
    %84 = vector.shape_cast %83 : vector<8x2xf32> to vector<1x8x2xf32>
    %85 = vector.broadcast %82 : vector<8x8x1xf32> to vector<8x8x2xf32>
    %86 = vector.broadcast %84 : vector<1x8x2xf32> to vector<8x8x2xf32>
    %87 = arith.mulf %85, %86 : vector<8x8x2xf32>
    %cst_57 = arith.constant dense<0.000000e+00> : vector<8x2xf32>
    %88 = vector.multi_reduction <add>, %87, %cst_57 [1] : vector<8x8x2xf32> to vector<8x2xf32>
    %89 = vector.shape_cast %88 : vector<8x2xf32> to vector<8x1x2xf32>
    %c0_58 = arith.constant 0 : index
    %c0_59 = arith.constant 0 : index
    %90 = vector.load %arg6[%c0_58, %c0_59] : memref<1x2xf32, #tpu.memory_space<vmem>>, vector<1x2xf32>
    %91 = vector.shape_cast %90 : vector<1x2xf32> to vector<1x1x2xf32>
    %92 = vector.broadcast %91 : vector<1x1x2xf32> to vector<8x1x2xf32>
    %93 = arith.addf %89, %92 : vector<8x1x2xf32>
    %cst_60 = arith.constant 0.000000e+00 : f32
    %94 = vector.broadcast %cst_60 : f32 to vector<8x1x2xf32>
    %95 = arith.maximumf %93, %94 : vector<8x1x2xf32>
    %c0_61 = arith.constant 0 : index
    %c0_62 = arith.constant 0 : index
    %96 = vector.load %arg7[%c0_61, %c0_62] : memref<8x2xf32, #tpu.memory_space<vmem>>, vector<8x2xf32>
    %97 = vector.shape_cast %96 : vector<8x2xf32> to vector<1x8x2xf32>
    %98 = vector.broadcast %97 : vector<1x8x2xf32> to vector<8x8x2xf32>
    %99 = vector.broadcast %95 : vector<8x1x2xf32> to vector<8x8x2xf32>
    %100 = arith.mulf %98, %99 : vector<8x8x2xf32>
    %cst_63 = arith.constant dense<0.000000e+00> : vector<8x8xf32>
    %101 = vector.multi_reduction <add>, %100, %cst_63 [2] : vector<8x8x2xf32> to vector<8x8xf32>
    %102 = vector.shape_cast %101 : vector<8x8xf32> to vector<8x8x1xf32>
    %c0_64 = arith.constant 0 : index
    %c0_65 = arith.constant 0 : index
    %103 = vector.load %arg8[%c0_64, %c0_65] : memref<8x1xf32, #tpu.memory_space<vmem>>, vector<8x1xf32>
    %104 = vector.shape_cast %103 : vector<8x1xf32> to vector<1x8x1xf32>
    %105 = vector.broadcast %104 : vector<1x8x1xf32> to vector<8x8x1xf32>
    %106 = arith.addf %102, %105 : vector<8x8x1xf32>
    %107 = arith.negf %106 : vector<8x8x1xf32>
    %108 = math.exp %107 : vector<8x8x1xf32>
    %cst_66 = arith.constant 1.000000e+00 : f32
    %109 = vector.broadcast %cst_66 : f32 to vector<8x8x1xf32>
    %110 = arith.addf %109, %108 : vector<8x8x1xf32>
    %111 = arith.divf %109, %110 : vector<8x8x1xf32>
    %112 = vector.broadcast %111 : vector<8x8x1xf32> to vector<8x8x256xf32>
    %113 = arith.mulf %78, %112 : vector<8x8x256xf32>
    %114 = vector.extract_strided_slice %113 {offsets = [0, 0, 0], sizes = [1, 8, 256], strides = [1, 1, 1]} : vector<8x8x256xf32> to vector<1x8x256xf32>
    %115 = vector.shape_cast %114 : vector<1x8x256xf32> to vector<8x256xf32>
    %c0_67 = arith.constant 0 : index
    %c0_68 = arith.constant 0 : index
    %116 = vector.load %arg14[%c0_67, %c0_68] : memref<8x2048xf32, #tpu.memory_space<vmem>>, vector<8x256xf32>
    tpu.vector_store %arg14[%c0_67, %c0_68], %115 {strides = array<i32>} : memref<8x2048xf32, #tpu.memory_space<vmem>>, vector<8x256xf32>,
    %117 = vector.extract_strided_slice %113 {offsets = [1, 0, 0], sizes = [1, 8, 256], strides = [1, 1, 1]} : vector<8x8x256xf32> to vector<1x8x256xf32>
    %118 = vector.shape_cast %117 : vector<1x8x256xf32> to vector<8x256xf32>
    %c0_69 = arith.constant 0 : index
    %c256 = arith.constant 256 : index
    %119 = vector.load %arg14[%c0_69, %c256] : memref<8x2048xf32, #tpu.memory_space<vmem>>, vector<8x256xf32>
    tpu.vector_store %arg14[%c0_69, %c256], %118 {strides = array<i32>} : memref<8x2048xf32, #tpu.memory_space<vmem>>, vector<8x256xf32>,
    %120 = vector.extract_strided_slice %113 {offsets = [2, 0, 0], sizes = [1, 8, 256], strides = [1, 1, 1]} : vector<8x8x256xf32> to vector<1x8x256xf32>
    %121 = vector.shape_cast %120 : vector<1x8x256xf32> to vector<8x256xf32>
    %c0_70 = arith.constant 0 : index
    %c512 = arith.constant 512 : index
    %122 = vector.load %arg14[%c0_70, %c512] : memref<8x2048xf32, #tpu.memory_space<vmem>>, vector<8x256xf32>
    tpu.vector_store %arg14[%c0_70, %c512], %121 {strides = array<i32>} : memref<8x2048xf32, #tpu.memory_space<vmem>>, vector<8x256xf32>,
    %123 = vector.extract_strided_slice %113 {offsets = [3, 0, 0], sizes = [1, 8, 256], strides = [1, 1, 1]} : vector<8x8x256xf32> to vector<1x8x256xf32>
    %124 = vector.shape_cast %123 : vector<1x8x256xf32> to vector<8x256xf32>
    %c0_71 = arith.constant 0 : index
    %c768 = arith.constant 768 : index
    %125 = vector.load %arg14[%c0_71, %c768] : memref<8x2048xf32, #tpu.memory_space<vmem>>, vector<8x256xf32>
    tpu.vector_store %arg14[%c0_71, %c768], %124 {strides = array<i32>} : memref<8x2048xf32, #tpu.memory_space<vmem>>, vector<8x256xf32>,
    %126 = vector.extract_strided_slice %113 {offsets = [4, 0, 0], sizes = [1, 8, 256], strides = [1, 1, 1]} : vector<8x8x256xf32> to vector<1x8x256xf32>
    %127 = vector.shape_cast %126 : vector<1x8x256xf32> to vector<8x256xf32>
    %c0_72 = arith.constant 0 : index
    %c1024 = arith.constant 1024 : index
    %128 = vector.load %arg14[%c0_72, %c1024] : memref<8x2048xf32, #tpu.memory_space<vmem>>, vector<8x256xf32>
    tpu.vector_store %arg14[%c0_72, %c1024], %127 {strides = array<i32>} : memref<8x2048xf32, #tpu.memory_space<vmem>>, vector<8x256xf32>,
    %129 = vector.extract_strided_slice %113 {offsets = [5, 0, 0], sizes = [1, 8, 256], strides = [1, 1, 1]} : vector<8x8x256xf32> to vector<1x8x256xf32>
    %130 = vector.shape_cast %129 : vector<1x8x256xf32> to vector<8x256xf32>
    %c0_73 = arith.constant 0 : index
    %c1280 = arith.constant 1280 : index
    %131 = vector.load %arg14[%c0_73, %c1280] : memref<8x2048xf32, #tpu.memory_space<vmem>>, vector<8x256xf32>
    tpu.vector_store %arg14[%c0_73, %c1280], %130 {strides = array<i32>} : memref<8x2048xf32, #tpu.memory_space<vmem>>, vector<8x256xf32>,
    %132 = vector.extract_strided_slice %113 {offsets = [6, 0, 0], sizes = [1, 8, 256], strides = [1, 1, 1]} : vector<8x8x256xf32> to vector<1x8x256xf32>
    %133 = vector.shape_cast %132 : vector<1x8x256xf32> to vector<8x256xf32>
    %c0_74 = arith.constant 0 : index
    %c1536 = arith.constant 1536 : index
    %134 = vector.load %arg14[%c0_74, %c1536] : memref<8x2048xf32, #tpu.memory_space<vmem>>, vector<8x256xf32>
    tpu.vector_store %arg14[%c0_74, %c1536], %133 {strides = array<i32>} : memref<8x2048xf32, #tpu.memory_space<vmem>>, vector<8x256xf32>,
    %135 = vector.extract_strided_slice %113 {offsets = [7, 0, 0], sizes = [1, 8, 256], strides = [1, 1, 1]} : vector<8x8x256xf32> to vector<1x8x256xf32>
    %136 = vector.shape_cast %135 : vector<1x8x256xf32> to vector<8x256xf32>
    %c0_75 = arith.constant 0 : index
    %c1792 = arith.constant 1792 : index
    %137 = vector.load %arg14[%c0_75, %c1792] : memref<8x2048xf32, #tpu.memory_space<vmem>>, vector<8x256xf32>
    tpu.vector_store %arg14[%c0_75, %c1792], %136 {strides = array<i32>} : memref<8x2048xf32, #tpu.memory_space<vmem>>, vector<8x256xf32>,
    %c0_76 = arith.constant 0 : index
    %c0_77 = arith.constant 0 : index
    %138 = vector.load %arg9[%c0_76, %c0_77] : memref<16x8xf32, #tpu.memory_space<vmem>>, vector<16x8xf32>
    %c0_78 = arith.constant 0 : index
    %c0_79 = arith.constant 0 : index
    %139 = vector.load %arg14[%c0_78, %c0_79] : memref<8x2048xf32, #tpu.memory_space<vmem>>, vector<8x2048xf32>
    %cst_80 = arith.constant dense<0.000000e+00> : vector<16x2048xf32>
    %140 = tpu.matmul %138, %139, %cst_80 {dimension_numbers = #tpu.dot_dimension_numbers<[1], [0], [0], [1], [0, 0, 1, 1], [], []>} : vector<16x8xf32>, vector<8x2048xf32>, vector<16x2048xf32> -> vector<16x2048xf32>
    %c0_81 = arith.constant 0 : index
    %c0_82 = arith.constant 0 : index
    %141 = vector.load %arg10[%c0_81, %c0_82] : memref<16x256xf32, #tpu.memory_space<vmem>>, vector<16x256xf32>
    %c0_83 = arith.constant 0 : index
    %c0_84 = arith.constant 0 : index
    %142 = vector.load %arg11[%c0_83, %c0_84] : memref<16x256xf32, #tpu.memory_space<vmem>>, vector<16x256xf32>
    %143 = vector.extract_strided_slice %140 {offsets = [0, 0], sizes = [16, 256], strides = [1, 1]} : vector<16x2048xf32> to vector<16x256xf32>
    %144 = arith.mulf %143, %141 : vector<16x256xf32>
    %145 = arith.addf %144, %142 : vector<16x256xf32>
    %cst_85 = arith.constant 0.000000e+00 : f32
    %146 = vector.broadcast %cst_85 : f32 to vector<16x256xf32>
    %147 = arith.maximumf %145, %146 : vector<16x256xf32>
    %c0_86 = arith.constant 0 : index
    %c0_87 = arith.constant 0 : index
    %c0_88 = arith.constant 0 : index
    %148 = vector.load %arg12[%c0_86, %c0_87, %c0_88] : memref<8x16x256xf32, #tpu.memory_space<vmem>>, vector<1x16x256xf32>
    %149 = vector.shape_cast %148 : vector<1x16x256xf32> to vector<16x256xf32>
    %150 = vector.shape_cast %147 : vector<16x256xf32> to vector<1x16x256xf32>
    tpu.vector_store %arg12[%c0_86, %c0_87, %c0_88], %150 {strides = array<i32>} : memref<8x16x256xf32, #tpu.memory_space<vmem>>, vector<1x16x256xf32>,
    %151 = vector.extract_strided_slice %140 {offsets = [0, 256], sizes = [16, 256], strides = [1, 1]} : vector<16x2048xf32> to vector<16x256xf32>
    %152 = arith.mulf %151, %141 : vector<16x256xf32>
    %153 = arith.addf %152, %142 : vector<16x256xf32>
    %cst_89 = arith.constant 0.000000e+00 : f32
    %154 = vector.broadcast %cst_89 : f32 to vector<16x256xf32>
    %155 = arith.maximumf %153, %154 : vector<16x256xf32>
    %c1_90 = arith.constant 1 : index
    %c0_91 = arith.constant 0 : index
    %c0_92 = arith.constant 0 : index
    %156 = vector.load %arg12[%c1_90, %c0_91, %c0_92] : memref<8x16x256xf32, #tpu.memory_space<vmem>>, vector<1x16x256xf32>
    %157 = vector.shape_cast %156 : vector<1x16x256xf32> to vector<16x256xf32>
    %158 = vector.shape_cast %155 : vector<16x256xf32> to vector<1x16x256xf32>
    tpu.vector_store %arg12[%c1_90, %c0_91, %c0_92], %158 {strides = array<i32>} : memref<8x16x256xf32, #tpu.memory_space<vmem>>, vector<1x16x256xf32>,
    %159 = vector.extract_strided_slice %140 {offsets = [0, 512], sizes = [16, 256], strides = [1, 1]} : vector<16x2048xf32> to vector<16x256xf32>
    %160 = arith.mulf %159, %141 : vector<16x256xf32>
    %161 = arith.addf %160, %142 : vector<16x256xf32>
    %cst_93 = arith.constant 0.000000e+00 : f32
    %162 = vector.broadcast %cst_93 : f32 to vector<16x256xf32>
    %163 = arith.maximumf %161, %162 : vector<16x256xf32>
    %c2_94 = arith.constant 2 : index
    %c0_95 = arith.constant 0 : index
    %c0_96 = arith.constant 0 : index
    %164 = vector.load %arg12[%c2_94, %c0_95, %c0_96] : memref<8x16x256xf32, #tpu.memory_space<vmem>>, vector<1x16x256xf32>
    %165 = vector.shape_cast %164 : vector<1x16x256xf32> to vector<16x256xf32>
    %166 = vector.shape_cast %163 : vector<16x256xf32> to vector<1x16x256xf32>
    tpu.vector_store %arg12[%c2_94, %c0_95, %c0_96], %166 {strides = array<i32>} : memref<8x16x256xf32, #tpu.memory_space<vmem>>, vector<1x16x256xf32>,
    %167 = vector.extract_strided_slice %140 {offsets = [0, 768], sizes = [16, 256], strides = [1, 1]} : vector<16x2048xf32> to vector<16x256xf32>
    %168 = arith.mulf %167, %141 : vector<16x256xf32>
    %169 = arith.addf %168, %142 : vector<16x256xf32>
    %cst_97 = arith.constant 0.000000e+00 : f32
    %170 = vector.broadcast %cst_97 : f32 to vector<16x256xf32>
    %171 = arith.maximumf %169, %170 : vector<16x256xf32>
    %c3_98 = arith.constant 3 : index
    %c0_99 = arith.constant 0 : index
    %c0_100 = arith.constant 0 : index
    %172 = vector.load %arg12[%c3_98, %c0_99, %c0_100] : memref<8x16x256xf32, #tpu.memory_space<vmem>>, vector<1x16x256xf32>
    %173 = vector.shape_cast %172 : vector<1x16x256xf32> to vector<16x256xf32>
    %174 = vector.shape_cast %171 : vector<16x256xf32> to vector<1x16x256xf32>
    tpu.vector_store %arg12[%c3_98, %c0_99, %c0_100], %174 {strides = array<i32>} : memref<8x16x256xf32, #tpu.memory_space<vmem>>, vector<1x16x256xf32>,
    %175 = vector.extract_strided_slice %140 {offsets = [0, 1024], sizes = [16, 256], strides = [1, 1]} : vector<16x2048xf32> to vector<16x256xf32>
    %176 = arith.mulf %175, %141 : vector<16x256xf32>
    %177 = arith.addf %176, %142 : vector<16x256xf32>
    %cst_101 = arith.constant 0.000000e+00 : f32
    %178 = vector.broadcast %cst_101 : f32 to vector<16x256xf32>
    %179 = arith.maximumf %177, %178 : vector<16x256xf32>
    %c4_102 = arith.constant 4 : index
    %c0_103 = arith.constant 0 : index
    %c0_104 = arith.constant 0 : index
    %180 = vector.load %arg12[%c4_102, %c0_103, %c0_104] : memref<8x16x256xf32, #tpu.memory_space<vmem>>, vector<1x16x256xf32>
    %181 = vector.shape_cast %180 : vector<1x16x256xf32> to vector<16x256xf32>
    %182 = vector.shape_cast %179 : vector<16x256xf32> to vector<1x16x256xf32>
    tpu.vector_store %arg12[%c4_102, %c0_103, %c0_104], %182 {strides = array<i32>} : memref<8x16x256xf32, #tpu.memory_space<vmem>>, vector<1x16x256xf32>,
    %183 = vector.extract_strided_slice %140 {offsets = [0, 1280], sizes = [16, 256], strides = [1, 1]} : vector<16x2048xf32> to vector<16x256xf32>
    %184 = arith.mulf %183, %141 : vector<16x256xf32>
    %185 = arith.addf %184, %142 : vector<16x256xf32>
    %cst_105 = arith.constant 0.000000e+00 : f32
    %186 = vector.broadcast %cst_105 : f32 to vector<16x256xf32>
    %187 = arith.maximumf %185, %186 : vector<16x256xf32>
    %c5_106 = arith.constant 5 : index
    %c0_107 = arith.constant 0 : index
    %c0_108 = arith.constant 0 : index
    %188 = vector.load %arg12[%c5_106, %c0_107, %c0_108] : memref<8x16x256xf32, #tpu.memory_space<vmem>>, vector<1x16x256xf32>
    %189 = vector.shape_cast %188 : vector<1x16x256xf32> to vector<16x256xf32>
    %190 = vector.shape_cast %187 : vector<16x256xf32> to vector<1x16x256xf32>
    tpu.vector_store %arg12[%c5_106, %c0_107, %c0_108], %190 {strides = array<i32>} : memref<8x16x256xf32, #tpu.memory_space<vmem>>, vector<1x16x256xf32>,
    %191 = vector.extract_strided_slice %140 {offsets = [0, 1536], sizes = [16, 256], strides = [1, 1]} : vector<16x2048xf32> to vector<16x256xf32>
    %192 = arith.mulf %191, %141 : vector<16x256xf32>
    %193 = arith.addf %192, %142 : vector<16x256xf32>
    %cst_109 = arith.constant 0.000000e+00 : f32
    %194 = vector.broadcast %cst_109 : f32 to vector<16x256xf32>
    %195 = arith.maximumf %193, %194 : vector<16x256xf32>
    %c6_110 = arith.constant 6 : index
    %c0_111 = arith.constant 0 : index
    %c0_112 = arith.constant 0 : index
    %196 = vector.load %arg12[%c6_110, %c0_111, %c0_112] : memref<8x16x256xf32, #tpu.memory_space<vmem>>, vector<1x16x256xf32>
    %197 = vector.shape_cast %196 : vector<1x16x256xf32> to vector<16x256xf32>
    %198 = vector.shape_cast %195 : vector<16x256xf32> to vector<1x16x256xf32>
    tpu.vector_store %arg12[%c6_110, %c0_111, %c0_112], %198 {strides = array<i32>} : memref<8x16x256xf32, #tpu.memory_space<vmem>>, vector<1x16x256xf32>,
    %199 = vector.extract_strided_slice %140 {offsets = [0, 1792], sizes = [16, 256], strides = [1, 1]} : vector<16x2048xf32> to vector<16x256xf32>
    %200 = arith.mulf %199, %141 : vector<16x256xf32>
    %201 = arith.addf %200, %142 : vector<16x256xf32>
    %cst_113 = arith.constant 0.000000e+00 : f32
    %202 = vector.broadcast %cst_113 : f32 to vector<16x256xf32>
    %203 = arith.maximumf %201, %202 : vector<16x256xf32>
    %c7_114 = arith.constant 7 : index
    %c0_115 = arith.constant 0 : index
    %c0_116 = arith.constant 0 : index
    %204 = vector.load %arg12[%c7_114, %c0_115, %c0_116] : memref<8x16x256xf32, #tpu.memory_space<vmem>>, vector<1x16x256xf32>
    %205 = vector.shape_cast %204 : vector<1x16x256xf32> to vector<16x256xf32>
    %206 = vector.shape_cast %203 : vector<16x256xf32> to vector<1x16x256xf32>
    tpu.vector_store %arg12[%c7_114, %c0_115, %c0_116], %206 {strides = array<i32>} : memref<8x16x256xf32, #tpu.memory_space<vmem>>, vector<1x16x256xf32>,
    return
  }
  func.func @transform_0(%arg0: i32) -> (i32, i32, i32) {
    %c0_i32 = arith.constant 0 : i32
    %c0_i32_0 = arith.constant 0 : i32
    %c0_i32_1 = arith.constant 0 : i32
    return %arg0, %c0_i32, %c0_i32_0 : i32, i32, i32
  }
  func.func @transform_1(%arg0: i32) -> (i32, i32, i32) {
    %c0_i32 = arith.constant 0 : i32
    %c0_i32_0 = arith.constant 0 : i32
    %c0_i32_1 = arith.constant 0 : i32
    %c0_i32_2 = arith.constant 0 : i32
    return %c0_i32, %c0_i32_0, %c0_i32_1 : i32, i32, i32
  }
  func.func @transform_2(%arg0: i32) -> (i32, i32) {
    %c0_i32 = arith.constant 0 : i32
    %c0_i32_0 = arith.constant 0 : i32
    %c0_i32_1 = arith.constant 0 : i32
    return %c0_i32, %c0_i32_0 : i32, i32
  }
  func.func @transform_3(%arg0: i32) -> (i32, i32) {
    %c0_i32 = arith.constant 0 : i32
    %c0_i32_0 = arith.constant 0 : i32
    %c0_i32_1 = arith.constant 0 : i32
    return %c0_i32, %c0_i32_0 : i32, i32
  }
  func.func @transform_4(%arg0: i32) -> (i32, i32) {
    %c0_i32 = arith.constant 0 : i32
    %c0_i32_0 = arith.constant 0 : i32
    %c0_i32_1 = arith.constant 0 : i32
    return %c0_i32, %c0_i32_0 : i32, i32
  }
  func.func @transform_5(%arg0: i32) -> (i32, i32) {
    %c0_i32 = arith.constant 0 : i32
    %c0_i32_0 = arith.constant 0 : i32
    %c0_i32_1 = arith.constant 0 : i32
    return %c0_i32, %c0_i32_0 : i32, i32
  }
  func.func @transform_6(%arg0: i32) -> (i32, i32) {
    %c0_i32 = arith.constant 0 : i32
    %c0_i32_0 = arith.constant 0 : i32
    %c0_i32_1 = arith.constant 0 : i32
    return %c0_i32, %c0_i32_0 : i32, i32
  }
  func.func @transform_7(%arg0: i32) -> (i32, i32) {
    %c0_i32 = arith.constant 0 : i32
    %c0_i32_0 = arith.constant 0 : i32
    %c0_i32_1 = arith.constant 0 : i32
    return %c0_i32, %c0_i32_0 : i32, i32
  }
  func.func @transform_8(%arg0: i32) -> (i32, i32) {
    %c0_i32 = arith.constant 0 : i32
    %c0_i32_0 = arith.constant 0 : i32
    %c0_i32_1 = arith.constant 0 : i32
    return %c0_i32, %c0_i32_0 : i32, i32
  }
  func.func @transform_9(%arg0: i32) -> (i32, i32) {
    %c0_i32 = arith.constant 0 : i32
    %c0_i32_0 = arith.constant 0 : i32
    %c0_i32_1 = arith.constant 0 : i32
    return %c0_i32, %c0_i32_0 : i32, i32
  }
  func.func @transform_10(%arg0: i32) -> (i32, i32) {
    %c0_i32 = arith.constant 0 : i32
    %c0_i32_0 = arith.constant 0 : i32
    %c0_i32_1 = arith.constant 0 : i32
    return %c0_i32, %c0_i32_0 : i32, i32
  }
  func.func @transform_11(%arg0: i32) -> (i32, i32, i32) {
    %c0_i32 = arith.constant 0 : i32
    %c0_i32_0 = arith.constant 0 : i32
    %c0_i32_1 = arith.constant 0 : i32
    return %arg0, %c0_i32, %c0_i32_0 : i32, i32, i32
  }
}

</mosaic_0001>

<llo_original>
// kernel: tpu_custom_call.1
$region0: #{tpu_custom_call.1}
  #allocation0 [shape = 'u32[]', space=smem, size = 0x4, offset = 0x4, fixed_abs, tag = 'smem constant byte address 0x4 - core index']
  #allocation1 [shape = 'u32[144,128]{1,0:T(1,128)}', space=vmem, size = 0x12000, scoped, tag = 'internal scratch']
  #allocation2 [shape = 'f32[8,8,512]{2,1,0:T(8,128)}', space=vmem, size = 0x20000, scoped, tag = 'scratch operand']
  #allocation3 [shape = 'f32[8,2048]{1,0:T(8,128)}', space=vmem, size = 0x10000, scoped, tag = 'scratch operand']
  %s0 = inlined_call_operand.hbm [shape: f32[16,8,256], index: 0, kind: input, shape index: {}]
  %s1 = inlined_call_operand.hbm [shape: f32[9,8,256], index: 1, kind: input, shape index: {}]
  %s2 = inlined_call_operand.hbm [shape: f32[8,256], index: 2, kind: input, shape index: {}]
  %s3 = inlined_call_operand.hbm [shape: f32[8,256], index: 3, kind: input, shape index: {}]
  %s4 = inlined_call_operand.vmem [shape: f32[8,2], index: 4, kind: input, shape index: {}]
  %s5 = inlined_call_operand.vmem [shape: f32[1,2], index: 5, kind: input, shape index: {}]
  %s6 = inlined_call_operand.vmem [shape: f32[8,2], index: 6, kind: input, shape index: {}]
  %s7 = inlined_call_operand.vmem [shape: f32[8,1], index: 7, kind: input, shape index: {}]
  %s8 = inlined_call_operand.vmem [shape: f32[16,8], index: 8, kind: input, shape index: {}]
  %s9 = inlined_call_operand.vmem [shape: f32[16,256], index: 9, kind: input, shape index: {}]
  %s10 = inlined_call_operand.vmem [shape: f32[16,256], index: 10, kind: input, shape index: {}]
  %s11 = inlined_call_operand.hbm [shape: f32[16,16,256], index: 11, kind: output, shape index: {}]
  %s12 = sld [smem:[#allocation0]]
  $region93: #{tpu_custom_call.1} parent=0
    _
  %s14 = ssub.s32 1, %s12
  %s15 = scalar_select 0, %s14, %s12
  $region1: #{tpu_custom_call.1} parent=0
    #allocation4 [shape = 'u8[131072]{0}', space=vmem, size = 0x20000, scoped, tag = 'input window, operand 0']
    #allocation5 [shape = 's32[2]{0}', space=sflag, size = 0x8, scoped, tag = 'scoped memory for tpu_custom_call.1']
    #allocation6 [shape = 's32[2]{0}', space=sflag, size = 0x8, scoped, tag = 'scoped memory for tpu_custom_call.1']
    #allocation7 [shape = 'u8[73728]{0}', space=vmem, size = 0x12000, scoped, tag = 'input window, operand 1, single buffered']
    #allocation8 [shape = 's32[1]{0}', space=sflag, size = 0x4, scoped, tag = 'scoped memory for tpu_custom_call.1']
    #allocation9 [shape = 'u8[8192]{0}', space=vmem, size = 0x2000, scoped, tag = 'input window, operand 2, single buffered']
    #allocation10 [shape = 'u8[8192]{0}', space=vmem, size = 0x2000, scoped, tag = 'input window, operand 3, single buffered']
    #allocation11 [shape = 's32[1]{0}', space=sflag, size = 0x4, scoped, tag = 'scoped memory for tpu_custom_call.1']
    #allocation12 [shape = 'u8[262144]{0}', space=vmem, size = 0x40000, scoped, tag = 'output window, operand 0']
    %16 = vsyncpa [#allocation5], 0
    %s17 = scalar_lea.sflag [#allocation5], 1
    %18 = vsyncpa %s17, 0
    %19 = vsyncpa [#allocation8], 0
    %20 = vsyncpa [#allocation11], 0
    %21 = vsyncpa [#allocation6], 0
    %s22 = scalar_lea.sflag [#allocation6], 1
    %23 = vsyncpa %s22, 0
    loop: start=0, step=1, limit=4
    $region2: #{tpu_custom_call.1} parent=1 // loop_pre_header
      _
    $region3: #{tpu_custom_call.1} parent=1 // loop_header
      %s25 = sphi 0, %s29
      %p26 = scmp.ge.s32.totalorder %s25, 4
      %s35 = sphi 0, %s37
      %s38 = sphi 0, %s35
      %s39 = sphi 0, %s38
      %s55 = sphi 0, %s39
      %s59 = sphi 0, %s59
      %s61 = sphi 0, %s59
      %s62 = sphi 0, %s61
      %s76 = sphi 0, %s62
      %s80 = sphi 0, %s80
      %s82 = sphi 0, %s80
      %s83 = sphi 0, %s82
      %s97 = sphi 0, %s83
      %s101 = sphi 0, %s101
      %s103 = sphi 0, %s101
      %s104 = sphi 0, %s103
      %s118 = sphi 0, %s104
      %s122 = sphi 0, %s122
      %s124 = sphi 0, %s122
      %s125 = sphi 0, %s124
      %s139 = sphi 0, %s125
      %s143 = sphi 0, %s143
      %s145 = sphi 0, %s143
      %s146 = sphi 0, %s145
      %s160 = sphi 0, %s146
      %s164 = sphi 0, %s164
      %s166 = sphi 0, %s164
      %s167 = sphi 0, %s166
      %s181 = sphi 0, %s167
      %s185 = sphi 0, %s185
      %s187 = sphi 0, %s185
      %s188 = sphi 0, %s187
      %s202 = sphi 0, %s188
      %s206 = sphi 0, %s206
      %s208 = sphi 0, %s206
      %s209 = sphi 0, %s208
      %s223 = sphi 0, %s209
      %s227 = sphi 0, %s227
      %s229 = sphi 0, %s227
      %s230 = sphi 0, %s229
      %s244 = sphi 0, %s230
      %s248 = sphi 0, %s248
      %s250 = sphi 0, %s248
      %s251 = sphi 0, %s250
      %s265 = sphi 0, %s251
      %s271 = sphi 0, %s273
      %s274 = sphi 0, %s271
      %s275 = sphi 0, %s274
      %s291 = sphi 0, %s275
    $region4: #{tpu_custom_call.1} parent=1 // loop_header_branch
      %28 = sbr.rel (%p26) target = $region8
    $region5: #{tpu_custom_call.1} parent=1 // loop_body
      %s30 = ssub.s32 %s25, 1
      %s31 = ssub.s32 %s25, 2
      %s32 = sadd.s32 %s25, 1
      %s33 = ssub.s32 %s25, %s32
      %p34 = scmp.eq.s32.totalorder %s33, 0
      %s36 = sadd.s32 %s35, 1
      %s37 = scalar_select %p34, %s35, %s36
      %p40 = pneg %p34
      %p41 = scmp.eq.s32.totalorder %s25, 1
      %p42 = por %p40, %p41
      %p43 = scmp.ne.s32.totalorder %s35, %s38
      %p44 = scmp.eq.s32.totalorder %s25, 0
      %p45 = por %p43, %p44
      %p46 = scmp.ne.s32.totalorder %s35, %s38
      %p47 = scmp.eq.s32.totalorder %s30, 1
      %p48 = por %p46, %p47
      %p49 = scmp.ne.s32.totalorder %s38, %s39
      %p50 = scmp.eq.s32.totalorder %s30, 0
      %p51 = por %p49, %p50
      %p52 = scmp.ne.s32.totalorder %s38, %s39
      %p53 = scmp.eq.s32.totalorder %s31, 1
      %p54 = por %p52, %p53
      %p56 = scmp.ne.s32.totalorder %s39, %s55
      %p57 = scmp.eq.s32.totalorder %s31, 0
      %p58 = por %p56, %p57
      %s60 = sadd.s32 %s59, 1
      %p63 = scmp.eq.s32.totalorder %s25, 1
      %p64 = scmp.ne.s32.totalorder %s59, %s61
      %p65 = scmp.eq.s32.totalorder %s25, 0
      %p66 = por %p64, %p65
      %p67 = scmp.ne.s32.totalorder %s59, %s61
      %p68 = scmp.eq.s32.totalorder %s30, 1
      %p69 = por %p67, %p68
      %p70 = scmp.ne.s32.totalorder %s61, %s62
      %p71 = scmp.eq.s32.totalorder %s30, 0
      %p72 = por %p70, %p71
      %p73 = scmp.ne.s32.totalorder %s61, %s62
      %p74 = scmp.eq.s32.totalorder %s31, 1
      %p75 = por %p73, %p74
      %p77 = scmp.ne.s32.totalorder %s62, %s76
      %p78 = scmp.eq.s32.totalorder %s31, 0
      %p79 = por %p77, %p78
      %s81 = sadd.s32 %s80, 1
      %p84 = scmp.eq.s32.totalorder %s25, 1
      %p85 = scmp.ne.s32.totalorder %s80, %s82
      %p86 = scmp.eq.s32.totalorder %s25, 0
      %p87 = por %p85, %p86
      %p88 = scmp.ne.s32.totalorder %s80, %s82
      %p89 = scmp.eq.s32.totalorder %s30, 1
      %p90 = por %p88, %p89
      %p91 = scmp.ne.s32.totalorder %s82, %s83
      %p92 = scmp.eq.s32.totalorder %s30, 0
      %p93 = por %p91, %p92
      %p94 = scmp.ne.s32.totalorder %s82, %s83
      %p95 = scmp.eq.s32.totalorder %s31, 1
      %p96 = por %p94, %p95
      %p98 = scmp.ne.s32.totalorder %s83, %s97
      %p99 = scmp.eq.s32.totalorder %s31, 0
      %p100 = por %p98, %p99
      %s102 = sadd.s32 %s101, 1
      %p105 = scmp.eq.s32.totalorder %s25, 1
      %p106 = scmp.ne.s32.totalorder %s101, %s103
      %p107 = scmp.eq.s32.totalorder %s25, 0
      %p108 = por %p106, %p107
      %p109 = scmp.ne.s32.totalorder %s101, %s103
      %p110 = scmp.eq.s32.totalorder %s30, 1
      %p111 = por %p109, %p110
      %p112 = scmp.ne.s32.totalorder %s103, %s104
      %p113 = scmp.eq.s32.totalorder %s30, 0
      %p114 = por %p112, %p113
      %p115 = scmp.ne.s32.totalorder %s103, %s104
      %p116 = scmp.eq.s32.totalorder %s31, 1
      %p117 = por %p115, %p116
      %p119 = scmp.ne.s32.totalorder %s104, %s118
      %p120 = scmp.eq.s32.totalorder %s31, 0
      %p121 = por %p119, %p120
      %s123 = sadd.s32 %s122, 1
      %p126 = scmp.eq.s32.totalorder %s25, 1
      %p127 = scmp.ne.s32.totalorder %s122, %s124
      %p128 = scmp.eq.s32.totalorder %s25, 0
      %p129 = por %p127, %p128
      %p130 = scmp.ne.s32.totalorder %s122, %s124
      %p131 = scmp.eq.s32.totalorder %s30, 1
      %p132 = por %p130, %p131
      %p133 = scmp.ne.s32.totalorder %s124, %s125
      %p134 = scmp.eq.s32.totalorder %s30, 0
      %p135 = por %p133, %p134
      %p136 = scmp.ne.s32.totalorder %s124, %s125
      %p137 = scmp.eq.s32.totalorder %s31, 1
      %p138 = por %p136, %p137
      %p140 = scmp.ne.s32.totalorder %s125, %s139
      %p141 = scmp.eq.s32.totalorder %s31, 0
      %p142 = por %p140, %p141
      %s144 = sadd.s32 %s143, 1
      %p147 = scmp.eq.s32.totalorder %s25, 1
      %p148 = scmp.ne.s32.totalorder %s143, %s145
      %p149 = scmp.eq.s32.totalorder %s25, 0
      %p150 = por %p148, %p149
      %p151 = scmp.ne.s32.totalorder %s143, %s145
      %p152 = scmp.eq.s32.totalorder %s30, 1
      %p153 = por %p151, %p152
      %p154 = scmp.ne.s32.totalorder %s145, %s146
      %p155 = scmp.eq.s32.totalorder %s30, 0
      %p156 = por %p154, %p155
      %p157 = scmp.ne.s32.totalorder %s145, %s146
      %p158 = scmp.eq.s32.totalorder %s31, 1
      %p159 = por %p157, %p158
      %p161 = scmp.ne.s32.totalorder %s146, %s160
      %p162 = scmp.eq.s32.totalorder %s31, 0
      %p163 = por %p161, %p162
      %s165 = sadd.s32 %s164, 1
      %p168 = scmp.eq.s32.totalorder %s25, 1
      %p169 = scmp.ne.s32.totalorder %s164, %s166
      %p170 = scmp.eq.s32.totalorder %s25, 0
      %p171 = por %p169, %p170
      %p172 = scmp.ne.s32.totalorder %s164, %s166
      %p173 = scmp.eq.s32.totalorder %s30, 1
      %p174 = por %p172, %p173
      %p175 = scmp.ne.s32.totalorder %s166, %s167
      %p176 = scmp.eq.s32.totalorder %s30, 0
      %p177 = por %p175, %p176
      %p178 = scmp.ne.s32.totalorder %s166, %s167
      %p179 = scmp.eq.s32.totalorder %s31, 1
      %p180 = por %p178, %p179
      %p182 = scmp.ne.s32.totalorder %s167, %s181
      %p183 = scmp.eq.s32.totalorder %s31, 0
      %p184 = por %p182, %p183
      %s186 = sadd.s32 %s185, 1
      %p189 = scmp.eq.s32.totalorder %s25, 1
      %p190 = scmp.ne.s32.totalorder %s185, %s187
      %p191 = scmp.eq.s32.totalorder %s25, 0
      %p192 = por %p190, %p191
      %p193 = scmp.ne.s32.totalorder %s185, %s187
      %p194 = scmp.eq.s32.totalorder %s30, 1
      %p195 = por %p193, %p194
      %p196 = scmp.ne.s32.totalorder %s187, %s188
      %p197 = scmp.eq.s32.totalorder %s30, 0
      %p198 = por %p196, %p197
      %p199 = scmp.ne.s32.totalorder %s187, %s188
      %p200 = scmp.eq.s32.totalorder %s31, 1
      %p201 = por %p199, %p200
      %p203 = scmp.ne.s32.totalorder %s188, %s202
      %p204 = scmp.eq.s32.totalorder %s31, 0
      %p205 = por %p203, %p204
      %s207 = sadd.s32 %s206, 1
      %p210 = scmp.eq.s32.totalorder %s25, 1
      %p211 = scmp.ne.s32.totalorder %s206, %s208
      %p212 = scmp.eq.s32.totalorder %s25, 0
      %p213 = por %p211, %p212
      %p214 = scmp.ne.s32.totalorder %s206, %s208
      %p215 = scmp.eq.s32.totalorder %s30, 1
      %p216 = por %p214, %p215
      %p217 = scmp.ne.s32.totalorder %s208, %s209
      %p218 = scmp.eq.s32.totalorder %s30, 0
      %p219 = por %p217, %p218
      %p220 = scmp.ne.s32.totalorder %s208, %s209
      %p221 = scmp.eq.s32.totalorder %s31, 1
      %p222 = por %p220, %p221
      %p224 = scmp.ne.s32.totalorder %s209, %s223
      %p225 = scmp.eq.s32.totalorder %s31, 0
      %p226 = por %p224, %p225
      %s228 = sadd.s32 %s227, 1
      %p231 = scmp.eq.s32.totalorder %s25, 1
      %p232 = scmp.ne.s32.totalorder %s227, %s229
      %p233 = scmp.eq.s32.totalorder %s25, 0
      %p234 = por %p232, %p233
      %p235 = scmp.ne.s32.totalorder %s227, %s229
      %p236 = scmp.eq.s32.totalorder %s30, 1
      %p237 = por %p235, %p236
      %p238 = scmp.ne.s32.totalorder %s229, %s230
      %p239 = scmp.eq.s32.totalorder %s30, 0
      %p240 = por %p238, %p239
      %p241 = scmp.ne.s32.totalorder %s229, %s230
      %p242 = scmp.eq.s32.totalorder %s31, 1
      %p243 = por %p241, %p242
      %p245 = scmp.ne.s32.totalorder %s230, %s244
      %p246 = scmp.eq.s32.totalorder %s31, 0
      %p247 = por %p245, %p246
      %s249 = sadd.s32 %s248, 1
      %p252 = scmp.eq.s32.totalorder %s25, 1
      %p253 = scmp.ne.s32.totalorder %s248, %s250
      %p254 = scmp.eq.s32.totalorder %s25, 0
      %p255 = por %p253, %p254
      %p256 = scmp.ne.s32.totalorder %s248, %s250
      %p257 = scmp.eq.s32.totalorder %s30, 1
      %p258 = por %p256, %p257
      %p259 = scmp.ne.s32.totalorder %s250, %s251
      %p260 = scmp.eq.s32.totalorder %s30, 0
      %p261 = por %p259, %p260
      %p262 = scmp.ne.s32.totalorder %s250, %s251
      %p263 = scmp.eq.s32.totalorder %s31, 1
      %p264 = por %p262, %p263
      %p266 = scmp.ne.s32.totalorder %s251, %s265
      %p267 = scmp.eq.s32.totalorder %s31, 0
      %p268 = por %p266, %p267
      %s269 = ssub.s32 %s25, %s32
      %p270 = scmp.eq.s32.totalorder %s269, 0
      %s272 = sadd.s32 %s271, 1
      %s273 = scalar_select %p270, %s271, %s272
      %p276 = pneg %p270
      %p277 = scmp.eq.s32.totalorder %s25, 1
      %p278 = por %p276, %p277
      %p279 = scmp.ne.s32.totalorder %s271, %s274
      %p280 = scmp.eq.s32.totalorder %s25, 0
      %p281 = por %p279, %p280
      %p282 = scmp.ne.s32.totalorder %s271, %s274
      %p283 = scmp.eq.s32.totalorder %s30, 1
      %p284 = por %p282, %p283
      %p285 = scmp.ne.s32.totalorder %s274, %s275
      %p286 = scmp.eq.s32.totalorder %s30, 0
      %p287 = por %p285, %p286
      %p288 = scmp.ne.s32.totalorder %s274, %s275
      %p289 = scmp.eq.s32.totalorder %s31, 1
      %p290 = por %p288, %p289
      %p292 = scmp.ne.s32.totalorder %s275, %s291
      %p293 = scmp.eq.s32.totalorder %s31, 0
      %p294 = por %p292, %p293
      %p295 = scmp.le.s32.totalorder 1, %s25
      %p296 = scmp.lt.s32.totalorder %s25, 3
      %p297 = pnand %p295, %p296
      %p298 = pneg %p297
      // Predicated region
      $region9: #{tpu_custom_call.1} parent=5 // pred_check
        _
      $region10: #{tpu_custom_call.1} parent=5 // pred_check_branch
        %300 = sbr.rel (%p297) target = $region12
      $region11: #{tpu_custom_call.1} parent=5 // pred_region
        %s301 = ssub.s32 %s25, 1
        // Predicated region
        $region13: #{tpu_custom_call.1} parent=11 // pred_check
          %p302 = pneg %p72
        $region14: #{tpu_custom_call.1} parent=11 // pred_check_branch
          %304 = sbr.rel (%p302) target = $region16
        $region15: #{tpu_custom_call.1} parent=11 // pred_region
          %s306 = ssub.s32 2304, 2304
          %307 = vsyncadd [#allocation8], %s306
          %s308 = sshll.u32 [#allocation7], 4
          %s309 = int_to_ptr.vmem [resolvable:$true] %s308
          %314 = dma.hbm_to_vmem [thread:$0]  %s1, 2304, %s309, [#allocation8], 256, 256, 16
        $region16: #{tpu_custom_call.1} parent=11 // pred_fallthru
          _
        // Predicated region
        $region17: #{tpu_custom_call.1} parent=11 // pred_check
          %p315 = pneg %p93
        $region18: #{tpu_custom_call.1} parent=11 // pred_check_branch
          %317 = sbr.rel (%p315) target = $region20
        $region19: #{tpu_custom_call.1} parent=11 // pred_region
          %s319 = ssub.s32 256, 256
          %320 = vsyncadd [#allocation8], %s319
          %s322 = sshll.u32 [#allocation9], 4
          %s323 = int_to_ptr.vmem [resolvable:$true] %s322
          %325 = dma.hbm_to_vmem [thread:$0]  %s2, 256, %s323, [#allocation8]
        $region20: #{tpu_custom_call.1} parent=11 // pred_fallthru
          _
        // Predicated region
        $region21: #{tpu_custom_call.1} parent=11 // pred_check
          %p326 = pneg %p114
        $region22: #{tpu_custom_call.1} parent=11 // pred_check_branch
          %328 = sbr.rel (%p326) target = $region24
        $region23: #{tpu_custom_call.1} parent=11 // pred_region
          %s330 = ssub.s32 256, 256
          %331 = vsyncadd [#allocation11], %s330
          %s333 = sshll.u32 [#allocation10], 4
          %s334 = int_to_ptr.vmem [resolvable:$true] %s333
          %336 = dma.hbm_to_vmem [thread:$0]  %s3, 256, %s334, [#allocation11]
        $region24: #{tpu_custom_call.1} parent=11 // pred_fallthru
          _
        // Predicated region
        $region25: #{tpu_custom_call.1} parent=11 // pred_check
          %p337 = pneg %p135
        $region26: #{tpu_custom_call.1} parent=11 // pred_check_branch
          %339 = sbr.rel (%p337) target = $region28
        $region27: #{tpu_custom_call.1} parent=11 // pred_region
          _
        $region28: #{tpu_custom_call.1} parent=11 // pred_fallthru
          _
        // Predicated region
        $region29: #{tpu_custom_call.1} parent=11 // pred_check
          %p340 = pneg %p156
        $region30: #{tpu_custom_call.1} parent=11 // pred_check_branch
          %342 = sbr.rel (%p340) target = $region32
        $region31: #{tpu_custom_call.1} parent=11 // pred_region
          _
        $region32: #{tpu_custom_call.1} parent=11 // pred_fallthru
          _
        // Predicated region
        $region33: #{tpu_custom_call.1} parent=11 // pred_check
          %p343 = pneg %p177
        $region34: #{tpu_custom_call.1} parent=11 // pred_check_branch
          %345 = sbr.rel (%p343) target = $region36
        $region35: #{tpu_custom_call.1} parent=11 // pred_region
          _
        $region36: #{tpu_custom_call.1} parent=11 // pred_fallthru
          _
        // Predicated region
        $region37: #{tpu_custom_call.1} parent=11 // pred_check
          %p346 = pneg %p198
        $region38: #{tpu_custom_call.1} parent=11 // pred_check_branch
          %348 = sbr.rel (%p346) target = $region40
        $region39: #{tpu_custom_call.1} parent=11 // pred_region
          _
        $region40: #{tpu_custom_call.1} parent=11 // pred_fallthru
          _
        // Predicated region
        $region41: #{tpu_custom_call.1} parent=11 // pred_check
          %p349 = pneg %p219
        $region42: #{tpu_custom_call.1} parent=11 // pred_check_branch
          %351 = sbr.rel (%p349) target = $region44
        $region43: #{tpu_custom_call.1} parent=11 // pred_region
          _
        $region44: #{tpu_custom_call.1} parent=11 // pred_fallthru
          _
        // Predicated region
        $region45: #{tpu_custom_call.1} parent=11 // pred_check
          %p352 = pneg %p240
        $region46: #{tpu_custom_call.1} parent=11 // pred_check_branch
          %354 = sbr.rel (%p352) target = $region48
        $region47: #{tpu_custom_call.1} parent=11 // pred_region
          _
        $region48: #{tpu_custom_call.1} parent=11 // pred_fallthru
          _
        // Predicated region
        $region49: #{tpu_custom_call.1} parent=11 // pred_check
          %p355 = pneg %p261
        $region50: #{tpu_custom_call.1} parent=11 // pred_check_branch
          %357 = sbr.rel (%p355) target = $region52
        $region51: #{tpu_custom_call.1} parent=11 // pred_region
          _
        $region52: #{tpu_custom_call.1} parent=11 // pred_fallthru
          _
      $region12: #{tpu_custom_call.1} parent=5 // pred_fallthru
        _
      %p358 = scmp.lt.s32.totalorder %s25, 2
      // Predicated region
      $region53: #{tpu_custom_call.1} parent=5 // pred_check
        %p359 = pneg %p358
      $region54: #{tpu_custom_call.1} parent=5 // pred_check_branch
        %361 = sbr.rel (%p359) target = $region56
      $region55: #{tpu_custom_call.1} parent=5 // pred_region
        // Predicated region
        $region57: #{tpu_custom_call.1} parent=55 // pred_check
          %p362 = pneg %p45
        $region58: #{tpu_custom_call.1} parent=55 // pred_check_branch
          %364 = sbr.rel (%p362) target = $region60
        $region59: #{tpu_custom_call.1} parent=55 // pred_region
          %s365 = sand.u32 %s35, 1
          %s366 = scalar_lea.sflag [#allocation5], %s365
          %s367 = sand.u32 %s35, 1
          %s368 = smul.addr %s367, 128
          %s369 = scalar_lea.vmem [#allocation4], %s368
          %s370 = smul.u32 8, %s25
          %s372 = ssub.s32 2048, 2048
          %373 = vsyncadd %s366, %s372
          %s374 = smul.addr %s370, 2
          %s375 = smul.addr %s374, 128
          %s376 = scalar_lea.hbm %s0, %s375
          %s377 = sshll.u32 %s369, 4
          %s378 = int_to_ptr.vmem [resolvable:$true] %s377
          %383 = dma.hbm_to_vmem [thread:$0]  %s376, 2048, %s378, %s366, 256, 256, 16
        $region60: #{tpu_custom_call.1} parent=55 // pred_fallthru
          _
      $region56: #{tpu_custom_call.1} parent=5 // pred_fallthru
        _
      %p384 = scmp.le.s32.totalorder 1, %s25
      %p385 = scmp.lt.s32.totalorder %s25, 3
      %p386 = pnand %p384, %p385
      %p387 = pneg %p386
      // Predicated region
      $region61: #{tpu_custom_call.1} parent=5 // pred_check
        _
      $region62: #{tpu_custom_call.1} parent=5 // pred_check_branch
        %389 = sbr.rel (%p386) target = $region64
      $region63: #{tpu_custom_call.1} parent=5 // pred_region
        %s390 = ssub.s32 %s25, 1
        %s391 = sand.u32 %s38, 1
        %s392 = scalar_lea.sflag [#allocation5], %s391
        %s393 = sand.u32 %s38, 1
        %s394 = smul.addr %s393, 128
        %s395 = scalar_lea.vmem [#allocation4], %s394
        // Predicated region
        $region65: #{tpu_custom_call.1} parent=63 // pred_check
          %p396 = pneg %p51
        $region66: #{tpu_custom_call.1} parent=63 // pred_check_branch
          %398 = sbr.rel (%p396) target = $region68
        $region67: #{tpu_custom_call.1} parent=63 // pred_region
          %399 = dma.done %s392, 2048
        $region68: #{tpu_custom_call.1} parent=63 // pred_fallthru
          _
        // Predicated region
        $region69: #{tpu_custom_call.1} parent=63 // pred_check
          %p400 = pneg %p72
        $region70: #{tpu_custom_call.1} parent=63 // pred_check_branch
          %402 = sbr.rel (%p400) target = $region72
        $region71: #{tpu_custom_call.1} parent=63 // pred_region
          %403 = dma.done [#allocation8], 2304
        $region72: #{tpu_custom_call.1} parent=63 // pred_fallthru
          _
        // Predicated region
        $region73: #{tpu_custom_call.1} parent=63 // pred_check
          %p404 = pneg %p93
        $region74: #{tpu_custom_call.1} parent=63 // pred_check_branch
          %406 = sbr.rel (%p404) target = $region76
        $region75: #{tpu_custom_call.1} parent=63 // pred_region
          %407 = dma.done [#allocation8], 256
        $region76: #{tpu_custom_call.1} parent=63 // pred_fallthru
          _
        // Predicated region
        $region77: #{tpu_custom_call.1} parent=63 // pred_check
          %p408 = pneg %p114
        $region78: #{tpu_custom_call.1} parent=63 // pred_check_branch
          %410 = sbr.rel (%p408) target = $region80
        $region79: #{tpu_custom_call.1} parent=63 // pred_region
          %411 = dma.done [#allocation11], 256
        $region80: #{tpu_custom_call.1} parent=63 // pred_fallthru
          _
        %s412 = sand.u32 %s38, 1
        %s413 = scalar_lea.sflag [#allocation5], %s412
        %s414 = sand.u32 %s38, 1
        %s415 = smul.addr %s414, 128
        %s416 = scalar_lea.vmem [#allocation4], %s415
        %p417 = pneg %p51
        %p418 = pneg %p48
        %p419 = pneg %p72
        %p420 = pneg %p69
        %p421 = pneg %p93
        %p422 = pneg %p90
        %p423 = pneg %p114
        %p424 = pneg %p111
        %p425 = pneg %p135
        %p426 = pneg %p132
        %p427 = pneg %p156
        %p428 = pneg %p153
        %p429 = pneg %p177
        %p430 = pneg %p174
        %p431 = pneg %p198
        %p432 = pneg %p195
        %p433 = pneg %p219
        %p434 = pneg %p216
        %p435 = pneg %p240
        %p436 = pneg %p237
        %p437 = pneg %p261
        %p438 = pneg %p258
        %p439 = pneg %p287
        %p440 = pneg %p284
        %s441 = sand.u32 %s274, 1
        %s442 = scalar_lea.sflag [#allocation6], %s441
        %s443 = sand.u32 %s274, 1
        %s444 = smul.addr %s443, 256
        %s445 = scalar_lea.vmem [#allocation12], %s444
        %s446 = smul.u32 8, %s30
        %s447 = smul.u32 8, %s30
        %448 = vst [vmem:[#allocation2] sm:$0xff] 0.0
        %449 = vst [vmem:[#allocation2 + $0x20] sm:$0xff] 0.0
        %450 = vst [vmem:[#allocation2 + $0x40] sm:$0xff] 0.0
        %451 = vst [vmem:[#allocation2 + $0x60] sm:$0xff] 0.0
        %452 = vst [vmem:[#allocation2 + $0x80] sm:$0xff] 0.0
        %453 = vst [vmem:[#allocation2 + $0xa0] sm:$0xff] 0.0
        %454 = vst [vmem:[#allocation2 + $0xc0] sm:$0xff] 0.0
        %455 = vst [vmem:[#allocation2 + $0xe0] sm:$0xff] 0.0
        %456 = vst [vmem:[#allocation2 + $0x18] sm:$0xff] 0.0
        %457 = vst [vmem:[#allocation2 + $0x38] sm:$0xff] 0.0
        %458 = vst [vmem:[#allocation2 + $0x58] sm:$0xff] 0.0
        %459 = vst [vmem:[#allocation2 + $0x78] sm:$0xff] 0.0
        %460 = vst [vmem:[#allocation2 + $0x98] sm:$0xff] 0.0
        %461 = vst [vmem:[#allocation2 + $0xb8] sm:$0xff] 0.0
        %462 = vst [vmem:[#allocation2 + $0xd8] sm:$0xff] 0.0
        %463 = vst [vmem:[#allocation2 + $0xf8] sm:$0xff] 0.0
        %v464 = vld [vmem:[%s395] sm:$0xff]
        %v465 = vld [vmem:[%s395 + $0x8] sm:$0xff]
        %v466 = vld [vmem:[%s395 + $0x10] sm:$0xff]
        %v467 = vld [vmem:[%s395 + $0x18] sm:$0xff]
        %v468 = vld [vmem:[%s395 + $0x20] sm:$0xff]
        %v469 = vld [vmem:[%s395 + $0x28] sm:$0xff]
        %v470 = vld [vmem:[%s395 + $0x30] sm:$0xff]
        %v471 = vld [vmem:[%s395 + $0x38] sm:$0xff]
        %v472 = vld [vmem:[%s395 + $0x40] sm:$0xff]
        %v473 = vld [vmem:[%s395 + $0x48] sm:$0xff]
        %v474 = vld [vmem:[%s395 + $0x50] sm:$0xff]
        %v475 = vld [vmem:[%s395 + $0x58] sm:$0xff]
        %v476 = vld [vmem:[%s395 + $0x60] sm:$0xff]
        %v477 = vld [vmem:[%s395 + $0x68] sm:$0xff]
        %v478 = vld [vmem:[%s395 + $0x70] sm:$0xff]
        %v479 = vld [vmem:[%s395 + $0x78] sm:$0xff]
        %480 = vst [vmem:[#allocation2 + $0x8] sm:$0xff] %v464
        %481 = vst [vmem:[#allocation2 + $0x10] sm:$0xff] %v465
        %482 = vst [vmem:[#allocation2 + $0x28] sm:$0xff] %v466
        %483 = vst [vmem:[#allocation2 + $0x30] sm:$0xff] %v467
        %484 = vst [vmem:[#allocation2 + $0x48] sm:$0xff] %v468
        %485 = vst [vmem:[#allocation2 + $0x50] sm:$0xff] %v469
        %486 = vst [vmem:[#allocation2 + $0x68] sm:$0xff] %v470
        %487 = vst [vmem:[#allocation2 + $0x70] sm:$0xff] %v471
        %488 = vst [vmem:[#allocation2 + $0x88] sm:$0xff] %v472
        %489 = vst [vmem:[#allocation2 + $0x90] sm:$0xff] %v473
        %490 = vst [vmem:[#allocation2 + $0xa8] sm:$0xff] %v474
        %491 = vst [vmem:[#allocation2 + $0xb0] sm:$0xff] %v475
        %492 = vst [vmem:[#allocation2 + $0xc8] sm:$0xff] %v476
        %493 = vst [vmem:[#allocation2 + $0xd0] sm:$0xff] %v477
        %494 = vst [vmem:[#allocation2 + $0xe8] sm:$0xff] %v478
        %495 = vst [vmem:[#allocation2 + $0xf0] sm:$0xff] %v479
        %v496 = vld [vmem:[#allocation2] sm:$0xff]
        %v497 = vld [vmem:[#allocation2 + $0x8] sm:$0xff]
        %v498 = vld [vmem:[#allocation2 + $0x10] sm:$0xff]
        %v499 = vld [vmem:[#allocation2 + $0x20] sm:$0xff]
        %v500 = vld [vmem:[#allocation2 + $0x28] sm:$0xff]
        %v501 = vld [vmem:[#allocation2 + $0x30] sm:$0xff]
        %v502 = vld [vmem:[#allocation2 + $0x40] sm:$0xff]
        %v503 = vld [vmem:[#allocation2 + $0x48] sm:$0xff]
        %v504 = vld [vmem:[#allocation2 + $0x50] sm:$0xff]
        %v505 = vld [vmem:[#allocation2 + $0x60] sm:$0xff]
        %v506 = vld [vmem:[#allocation2 + $0x68] sm:$0xff]
        %v507 = vld [vmem:[#allocation2 + $0x70] sm:$0xff]
        %v508 = vld [vmem:[#allocation2 + $0x80] sm:$0xff]
        %v509 = vld [vmem:[#allocation2 + $0x88] sm:$0xff]
        %v510 = vld [vmem:[#allocation2 + $0x90] sm:$0xff]
        %v511 = vld [vmem:[#allocation2 + $0xa0] sm:$0xff]
        %v512 = vld [vmem:[#allocation2 + $0xa8] sm:$0xff]
        %v513 = vld [vmem:[#allocation2 + $0xb0] sm:$0xff]
        %v514 = vld [vmem:[#allocation2 + $0xc0] sm:$0xff]
        %v515 = vld [vmem:[#allocation2 + $0xc8] sm:$0xff]
        %v516 = vld [vmem:[#allocation2 + $0xd0] sm:$0xff]
        %v517 = vld [vmem:[#allocation2 + $0xe0] sm:$0xff]
        %v518 = vld [vmem:[#allocation2 + $0xe8] sm:$0xff]
        %v519 = vld [vmem:[#allocation2 + $0xf0] sm:$0xff]
        %v520 = vld [vmem:[#allocation7] sm:$0xff]
        %v521 = vld [vmem:[#allocation7 + $0x8] sm:$0xff]
        %524 = vrot.lane.b32.xlu0 %v520, 111
        %v525 = vpop.permute.xlu0 %524
        %526 = vrot.lane.b32.xlu0 %v521, 111
        %v527 = vpop.permute.xlu0 %526
        %vm528 = vcmask 908288
        %v529 = vsel %vm528, %v525, %v527
        %v533 = vmul.f32 %v496, %v525
        %v534 = vmul.f32 %v497, %v529
        %v535 = vmul.f32 %v498, %v527
        %v536 = vmul.f32 %v499, %v525
        %v537 = vmul.f32 %v500, %v529
        %v538 = vmul.f32 %v501, %v527
        %v539 = vmul.f32 %v502, %v525
        %v540 = vmul.f32 %v503, %v529
        %v541 = vmul.f32 %v504, %v527
        %v542 = vmul.f32 %v505, %v525
        %v543 = vmul.f32 %v506, %v529
        %v544 = vmul.f32 %v507, %v527
        %v545 = vmul.f32 %v508, %v525
        %v546 = vmul.f32 %v509, %v529
        %v547 = vmul.f32 %v510, %v527
        %v548 = vmul.f32 %v511, %v525
        %v549 = vmul.f32 %v512, %v529
        %v550 = vmul.f32 %v513, %v527
        %v551 = vmul.f32 %v514, %v525
        %v552 = vmul.f32 %v515, %v529
        %v553 = vmul.f32 %v516, %v527
        %v554 = vmul.f32 %v517, %v525
        %v555 = vmul.f32 %v518, %v529
        %v556 = vmul.f32 %v519, %v527
        %v557 = vadd.f32 %v533, 0.0
        %v558 = vadd.f32 %v534, 0.0
        %v559 = vadd.f32 %v535, 0.0
        %v560 = vadd.f32 %v536, 0.0
        %v561 = vadd.f32 %v537, 0.0
        %v562 = vadd.f32 %v538, 0.0
        %v563 = vadd.f32 %v539, 0.0
        %v564 = vadd.f32 %v540, 0.0
        %v565 = vadd.f32 %v541, 0.0
        %v566 = vadd.f32 %v542, 0.0
        %v567 = vadd.f32 %v543, 0.0
        %v568 = vadd.f32 %v544, 0.0
        %v569 = vadd.f32 %v545, 0.0
        %v570 = vadd.f32 %v546, 0.0
        %v571 = vadd.f32 %v547, 0.0
        %v572 = vadd.f32 %v548, 0.0
        %v573 = vadd.f32 %v549, 0.0
        %v574 = vadd.f32 %v550, 0.0
        %v575 = vadd.f32 %v551, 0.0
        %v576 = vadd.f32 %v552, 0.0
        %v577 = vadd.f32 %v553, 0.0
        %v578 = vadd.f32 %v554, 0.0
        %v579 = vadd.f32 %v555, 0.0
        %v580 = vadd.f32 %v556, 0.0
        %s581 = scalar_lea.vmem [#allocation7], 16
        %v582 = vld [vmem:[%s581] sm:$0xff]
        %v583 = vld [vmem:[%s581 + $0x8] sm:$0xff]
        %586 = vrot.lane.b32.xlu0 %v582, 112
        %v587 = vpop.permute.xlu0 %586
        %588 = vrot.lane.b32.xlu0 %v583, 112
        %v589 = vpop.permute.xlu0 %588
        %vm590 = vcmask 916480
        %v591 = vsel %vm590, %v587, %v589
        %v595 = vmul.f32 %v496, %v587
        %v596 = vmul.f32 %v497, %v591
        %v597 = vmul.f32 %v498, %v589
        %v598 = vmul.f32 %v499, %v587
        %v599 = vmul.f32 %v500, %v591
        %v600 = vmul.f32 %v501, %v589
        %v601 = vmul.f32 %v502, %v587
        %v602 = vmul.f32 %v503, %v591
        %v603 = vmul.f32 %v504, %v589
        %v604 = vmul.f32 %v505, %v587
        %v605 = vmul.f32 %v506, %v591
        %v606 = vmul.f32 %v507, %v589
        %v607 = vmul.f32 %v508, %v587
        %v608 = vmul.f32 %v509, %v591
        %v609 = vmul.f32 %v510, %v589
        %v610 = vmul.f32 %v511, %v587
        %v611 = vmul.f32 %v512, %v591
        %v612 = vmul.f32 %v513, %v589
        %v613 = vmul.f32 %v514, %v587
        %v614 = vmul.f32 %v515, %v591
        %v615 = vmul.f32 %v516, %v589
        %v616 = vmul.f32 %v517, %v587
        %v617 = vmul.f32 %v518, %v591
        %v618 = vmul.f32 %v519, %v589
        %643 = vrot.lane.b32.xlu0 %v595, 127
        %v644 = vpop.permute.xlu0 %643
        %645 = vrot.lane.b32.xlu0 %v596, 127
        %v646 = vpop.permute.xlu0 %645
        %647 = vrot.lane.b32.xlu0 %v597, 127
        %v648 = vpop.permute.xlu0 %647
        %649 = vrot.lane.b32.xlu0 %v598, 127
        %v650 = vpop.permute.xlu0 %649
        %651 = vrot.lane.b32.xlu0 %v599, 127
        %v652 = vpop.permute.xlu0 %651
        %653 = vrot.lane.b32.xlu0 %v600, 127
        %v654 = vpop.permute.xlu0 %653
        %655 = vrot.lane.b32.xlu0 %v601, 127
        %v656 = vpop.permute.xlu0 %655
        %657 = vrot.lane.b32.xlu0 %v602, 127
        %v658 = vpop.permute.xlu0 %657
        %659 = vrot.lane.b32.xlu0 %v603, 127
        %v660 = vpop.permute.xlu0 %659
        %661 = vrot.lane.b32.xlu0 %v604, 127
        %v662 = vpop.permute.xlu0 %661
        %663 = vrot.lane.b32.xlu0 %v605, 127
        %v664 = vpop.permute.xlu0 %663
        %665 = vrot.lane.b32.xlu0 %v606, 127
        %v666 = vpop.permute.xlu0 %665
        %667 = vrot.lane.b32.xlu0 %v607, 127
        %v668 = vpop.permute.xlu0 %667
        %669 = vrot.lane.b32.xlu0 %v608, 127
        %v670 = vpop.permute.xlu0 %669
        %671 = vrot.lane.b32.xlu0 %v609, 127
        %v672 = vpop.permute.xlu0 %671
        %673 = vrot.lane.b32.xlu0 %v610, 127
        %v674 = vpop.permute.xlu0 %673
        %675 = vrot.lane.b32.xlu0 %v611, 127
        %v676 = vpop.permute.xlu0 %675
        %677 = vrot.lane.b32.xlu0 %v612, 127
        %v678 = vpop.permute.xlu0 %677
        %679 = vrot.lane.b32.xlu0 %v613, 127
        %v680 = vpop.permute.xlu0 %679
        %681 = vrot.lane.b32.xlu0 %v614, 127
        %v682 = vpop.permute.xlu0 %681
        %683 = vrot.lane.b32.xlu0 %v615, 127
        %v684 = vpop.permute.xlu0 %683
        %685 = vrot.lane.b32.xlu0 %v616, 127
        %v686 = vpop.permute.xlu0 %685
        %687 = vrot.lane.b32.xlu0 %v617, 127
        %v688 = vpop.permute.xlu0 %687
        %689 = vrot.lane.b32.xlu0 %v618, 127
        %v690 = vpop.permute.xlu0 %689
        %vm691 = vcmask 1039360
        %v692 = vsel %vm691, %v644, %v646
        %v693 = vsel %vm691, %v646, %v648
        %v694 = vsel %vm691, %v650, %v652
        %v695 = vsel %vm691, %v652, %v654
        %v696 = vsel %vm691, %v656, %v658
        %v697 = vsel %vm691, %v658, %v660
        %v698 = vsel %vm691, %v662, %v664
        %v699 = vsel %vm691, %v664, %v666
        %v700 = vsel %vm691, %v668, %v670
        %v701 = vsel %vm691, %v670, %v672
        %v702 = vsel %vm691, %v674, %v676
        %v703 = vsel %vm691, %v676, %v678
        %v704 = vsel %vm691, %v680, %v682
        %v705 = vsel %vm691, %v682, %v684
        %v706 = vsel %vm691, %v686, %v688
        %v707 = vsel %vm691, %v688, %v690
        %v732 = vadd.f32 %v557, %v692
        %v733 = vadd.f32 %v558, %v693
        %v734 = vadd.f32 %v559, %v648
        %v735 = vadd.f32 %v560, %v694
        %v736 = vadd.f32 %v561, %v695
        %v737 = vadd.f32 %v562, %v654
        %v738 = vadd.f32 %v563, %v696
        %v739 = vadd.f32 %v564, %v697
        %v740 = vadd.f32 %v565, %v660
        %v741 = vadd.f32 %v566, %v698
        %v742 = vadd.f32 %v567, %v699
        %v743 = vadd.f32 %v568, %v666
        %v744 = vadd.f32 %v569, %v700
        %v745 = vadd.f32 %v570, %v701
        %v746 = vadd.f32 %v571, %v672
        %v747 = vadd.f32 %v572, %v702
        %v748 = vadd.f32 %v573, %v703
        %v749 = vadd.f32 %v574, %v678
        %v750 = vadd.f32 %v575, %v704
        %v751 = vadd.f32 %v576, %v705
        %v752 = vadd.f32 %v577, %v684
        %v753 = vadd.f32 %v578, %v706
        %v754 = vadd.f32 %v579, %v707
        %v755 = vadd.f32 %v580, %v690
        %s756 = scalar_lea.vmem [#allocation7], 32
        %v757 = vld [vmem:[%s756] sm:$0xff]
        %v758 = vld [vmem:[%s756 + $0x8] sm:$0xff]
        %761 = vrot.lane.b32.xlu0 %v757, 113
        %v762 = vpop.permute.xlu0 %761
        %763 = vrot.lane.b32.xlu0 %v758, 113
        %v764 = vpop.permute.xlu0 %763
        %vm765 = vcmask 924672
        %v766 = vsel %vm765, %v762, %v764
        %v770 = vmul.f32 %v496, %v762
        %v771 = vmul.f32 %v497, %v766
        %v772 = vmul.f32 %v498, %v764
        %v773 = vmul.f32 %v499, %v762
        %v774 = vmul.f32 %v500, %v766
        %v775 = vmul.f32 %v501, %v764
        %v776 = vmul.f32 %v502, %v762
        %v777 = vmul.f32 %v503, %v766
        %v778 = vmul.f32 %v504, %v764
        %v779 = vmul.f32 %v505, %v762
        %v780 = vmul.f32 %v506, %v766
        %v781 = vmul.f32 %v507, %v764
        %v782 = vmul.f32 %v508, %v762
        %v783 = vmul.f32 %v509, %v766
        %v784 = vmul.f32 %v510, %v764
        %v785 = vmul.f32 %v511, %v762
        %v786 = vmul.f32 %v512, %v766
        %v787 = vmul.f32 %v513, %v764
        %v788 = vmul.f32 %v514, %v762
        %v789 = vmul.f32 %v515, %v766
        %v790 = vmul.f32 %v516, %v764
        %v791 = vmul.f32 %v517, %v762
        %v792 = vmul.f32 %v518, %v766
        %v793 = vmul.f32 %v519, %v764
        %818 = vrot.lane.b32.xlu0 %v770, 126
        %v819 = vpop.permute.xlu0 %818
        %820 = vrot.lane.b32.xlu0 %v771, 126
        %v821 = vpop.permute.xlu0 %820
        %822 = vrot.lane.b32.xlu0 %v772, 126
        %v823 = vpop.permute.xlu0 %822
        %824 = vrot.lane.b32.xlu0 %v773, 126
        %v825 = vpop.permute.xlu0 %824
        %826 = vrot.lane.b32.xlu0 %v774, 126
        %v827 = vpop.permute.xlu0 %826
        %828 = vrot.lane.b32.xlu0 %v775, 126
        %v829 = vpop.permute.xlu0 %828
        %830 = vrot.lane.b32.xlu0 %v776, 126
        %v831 = vpop.permute.xlu0 %830
        %832 = vrot.lane.b32.xlu0 %v777, 126
        %v833 = vpop.permute.xlu0 %832
        %834 = vrot.lane.b32.xlu0 %v778, 126
        %v835 = vpop.permute.xlu0 %834
        %836 = vrot.lane.b32.xlu0 %v779, 126
        %v837 = vpop.permute.xlu0 %836
        %838 = vrot.lane.b32.xlu0 %v780, 126
        %v839 = vpop.permute.xlu0 %838
        %840 = vrot.lane.b32.xlu0 %v781, 126
        %v841 = vpop.permute.xlu0 %840
        %842 = vrot.lane.b32.xlu0 %v782, 126
        %v843 = vpop.permute.xlu0 %842
        %844 = vrot.lane.b32.xlu0 %v783, 126
        %v845 = vpop.permute.xlu0 %844
        %846 = vrot.lane.b32.xlu0 %v784, 126
        %v847 = vpop.permute.xlu0 %846
        %848 = vrot.lane.b32.xlu0 %v785, 126
        %v849 = vpop.permute.xlu0 %848
        %850 = vrot.lane.b32.xlu0 %v786, 126
        %v851 = vpop.permute.xlu0 %850
        %852 = vrot.lane.b32.xlu0 %v787, 126
        %v853 = vpop.permute.xlu0 %852
        %854 = vrot.lane.b32.xlu0 %v788, 126
        %v855 = vpop.permute.xlu0 %854
        %856 = vrot.lane.b32.xlu0 %v789, 126
        %v857 = vpop.permute.xlu0 %856
        %858 = vrot.lane.b32.xlu0 %v790, 126
        %v859 = vpop.permute.xlu0 %858
        %860 = vrot.lane.b32.xlu0 %v791, 126
        %v861 = vpop.permute.xlu0 %860
        %862 = vrot.lane.b32.xlu0 %v792, 126
        %v863 = vpop.permute.xlu0 %862
        %864 = vrot.lane.b32.xlu0 %v793, 126
        %v865 = vpop.permute.xlu0 %864
        %vm866 = vcmask 1031168
        %v867 = vsel %vm866, %v819, %v821
        %v868 = vsel %vm866, %v821, %v823
        %v869 = vsel %vm866, %v825, %v827
        %v870 = vsel %vm866, %v827, %v829
        %v871 = vsel %vm866, %v831, %v833
        %v872 = vsel %vm866, %v833, %v835
        %v873 = vsel %vm866, %v837, %v839
        %v874 = vsel %vm866, %v839, %v841
        %v875 = vsel %vm866, %v843, %v845
        %v876 = vsel %vm866, %v845, %v847
        %v877 = vsel %vm866, %v849, %v851
        %v878 = vsel %vm866, %v851, %v853
        %v879 = vsel %vm866, %v855, %v857
        %v880 = vsel %vm866, %v857, %v859
        %v881 = vsel %vm866, %v861, %v863
        %v882 = vsel %vm866, %v863, %v865
        %v907 = vadd.f32 %v732, %v867
        %v908 = vadd.f32 %v733, %v868
        %v909 = vadd.f32 %v734, %v823
        %v910 = vadd.f32 %v735, %v869
        %v911 = vadd.f32 %v736, %v870
        %v912 = vadd.f32 %v737, %v829
        %v913 = vadd.f32 %v738, %v871
        %v914 = vadd.f32 %v739, %v872
        %v915 = vadd.f32 %v740, %v835
        %v916 = vadd.f32 %v741, %v873
        %v917 = vadd.f32 %v742, %v874
        %v918 = vadd.f32 %v743, %v841
        %v919 = vadd.f32 %v744, %v875
        %v920 = vadd.f32 %v745, %v876
        %v921 = vadd.f32 %v746, %v847
        %v922 = vadd.f32 %v747, %v877
        %v923 = vadd.f32 %v748, %v878
        %v924 = vadd.f32 %v749, %v853
        %v925 = vadd.f32 %v750, %v879
        %v926 = vadd.f32 %v751, %v880
        %v927 = vadd.f32 %v752, %v859
        %v928 = vadd.f32 %v753, %v881
        %v929 = vadd.f32 %v754, %v882
        %v930 = vadd.f32 %v755, %v865
        %s931 = scalar_lea.vmem [#allocation7], 48
        %v932 = vld [vmem:[%s931] sm:$0xff]
        %v933 = vld [vmem:[%s931 + $0x8] sm:$0xff]
        %936 = vrot.lane.b32.xlu0 %v932, 127
        %v937 = vpop.permute.xlu0 %936
        %938 = vrot.lane.b32.xlu0 %v933, 127
        %v939 = vpop.permute.xlu0 %938
        %v940 = vsel %vm691, %v937, %v939
        %v944 = vmul.f32 %v496, %v937
        %v945 = vmul.f32 %v497, %v940
        %v946 = vmul.f32 %v498, %v939
        %v947 = vmul.f32 %v499, %v937
        %v948 = vmul.f32 %v500, %v940
        %v949 = vmul.f32 %v501, %v939
        %v950 = vmul.f32 %v502, %v937
        %v951 = vmul.f32 %v503, %v940
        %v952 = vmul.f32 %v504, %v939
        %v953 = vmul.f32 %v505, %v937
        %v954 = vmul.f32 %v506, %v940
        %v955 = vmul.f32 %v507, %v939
        %v956 = vmul.f32 %v508, %v937
        %v957 = vmul.f32 %v509, %v940
        %v958 = vmul.f32 %v510, %v939
        %v959 = vmul.f32 %v511, %v937
        %v960 = vmul.f32 %v512, %v940
        %v961 = vmul.f32 %v513, %v939
        %v962 = vmul.f32 %v514, %v937
        %v963 = vmul.f32 %v515, %v940
        %v964 = vmul.f32 %v516, %v939
        %v965 = vmul.f32 %v517, %v937
        %v966 = vmul.f32 %v518, %v940
        %v967 = vmul.f32 %v519, %v939
        %992 = vrot.lane.b32.xlu0 %v944, 112
        %v993 = vpop.permute.xlu0 %992
        %994 = vrot.lane.b32.xlu0 %v945, 112
        %v995 = vpop.permute.xlu0 %994
        %996 = vrot.lane.b32.xlu0 %v946, 112
        %v997 = vpop.permute.xlu0 %996
        %998 = vrot.lane.b32.xlu0 %v947, 112
        %v999 = vpop.permute.xlu0 %998
        %1000 = vrot.lane.b32.xlu0 %v948, 112
        %v1001 = vpop.permute.xlu0 %1000
        %1002 = vrot.lane.b32.xlu0 %v949, 112
        %v1003 = vpop.permute.xlu0 %1002
        %1004 = vrot.lane.b32.xlu0 %v950, 112
        %v1005 = vpop.permute.xlu0 %1004
        %1006 = vrot.lane.b32.xlu0 %v951, 112
        %v1007 = vpop.permute.xlu0 %1006
        %1008 = vrot.lane.b32.xlu0 %v952, 112
        %v1009 = vpop.permute.xlu0 %1008
        %1010 = vrot.lane.b32.xlu0 %v953, 112
        %v1011 = vpop.permute.xlu0 %1010
        %1012 = vrot.lane.b32.xlu0 %v954, 112
        %v1013 = vpop.permute.xlu0 %1012
        %1014 = vrot.lane.b32.xlu0 %v955, 112
        %v1015 = vpop.permute.xlu0 %1014
        %1016 = vrot.lane.b32.xlu0 %v956, 112
        %v1017 = vpop.permute.xlu0 %1016
        %1018 = vrot.lane.b32.xlu0 %v957, 112
        %v1019 = vpop.permute.xlu0 %1018
        %1020 = vrot.lane.b32.xlu0 %v958, 112
        %v1021 = vpop.permute.xlu0 %1020
        %1022 = vrot.lane.b32.xlu0 %v959, 112
        %v1023 = vpop.permute.xlu0 %1022
        %1024 = vrot.lane.b32.xlu0 %v960, 112
        %v1025 = vpop.permute.xlu0 %1024
        %1026 = vrot.lane.b32.xlu0 %v961, 112
        %v1027 = vpop.permute.xlu0 %1026
        %1028 = vrot.lane.b32.xlu0 %v962, 112
        %v1029 = vpop.permute.xlu0 %1028
        %1030 = vrot.lane.b32.xlu0 %v963, 112
        %v1031 = vpop.permute.xlu0 %1030
        %1032 = vrot.lane.b32.xlu0 %v964, 112
        %v1033 = vpop.permute.xlu0 %1032
        %1034 = vrot.lane.b32.xlu0 %v965, 112
        %v1035 = vpop.permute.xlu0 %1034
        %1036 = vrot.lane.b32.xlu0 %v966, 112
        %v1037 = vpop.permute.xlu0 %1036
        %1038 = vrot.lane.b32.xlu0 %v967, 112
        %v1039 = vpop.permute.xlu0 %1038
        %v1040 = vsel %vm590, %v993, %v995
        %v1041 = vsel %vm590, %v995, %v997
        %v1042 = vsel %vm590, %v999, %v1001
        %v1043 = vsel %vm590, %v1001, %v1003
        %v1044 = vsel %vm590, %v1005, %v1007
        %v1045 = vsel %vm590, %v1007, %v1009
        %v1046 = vsel %vm590, %v1011, %v1013
        %v1047 = vsel %vm590, %v1013, %v1015
        %v1048 = vsel %vm590, %v1017, %v1019
        %v1049 = vsel %vm590, %v1019, %v1021
        %v1050 = vsel %vm590, %v1023, %v1025
        %v1051 = vsel %vm590, %v1025, %v1027
        %v1052 = vsel %vm590, %v1029, %v1031
        %v1053 = vsel %vm590, %v1031, %v1033
        %v1054 = vsel %vm590, %v1035, %v1037
        %v1055 = vsel %vm590, %v1037, %v1039
        %v1080 = vadd.f32 %v907, %v1040
        %v1081 = vadd.f32 %v908, %v1041
        %v1082 = vadd.f32 %v909, %v997
        %v1083 = vadd.f32 %v910, %v1042
        %v1084 = vadd.f32 %v911, %v1043
        %v1085 = vadd.f32 %v912, %v1003
        %v1086 = vadd.f32 %v913, %v1044
        %v1087 = vadd.f32 %v914, %v1045
        %v1088 = vadd.f32 %v915, %v1009
        %v1089 = vadd.f32 %v916, %v1046
        %v1090 = vadd.f32 %v917, %v1047
        %v1091 = vadd.f32 %v918, %v1015
        %v1092 = vadd.f32 %v919, %v1048
        %v1093 = vadd.f32 %v920, %v1049
        %v1094 = vadd.f32 %v921, %v1021
        %v1095 = vadd.f32 %v922, %v1050
        %v1096 = vadd.f32 %v923, %v1051
        %v1097 = vadd.f32 %v924, %v1027
        %v1098 = vadd.f32 %v925, %v1052
        %v1099 = vadd.f32 %v926, %v1053
        %v1100 = vadd.f32 %v927, %v1033
        %v1101 = vadd.f32 %v928, %v1054
        %v1102 = vadd.f32 %v929, %v1055
        %v1103 = vadd.f32 %v930, %v1039
        %s1104 = scalar_lea.vmem [#allocation7], 64
        %v1105 = vld [vmem:[%s1104] sm:$0xff]
        %v1106 = vld [vmem:[%s1104 + $0x8] sm:$0xff]
        %v1107 = vmul.f32 %v497, %v1105
        %v1108 = vmul.f32 %v498, %v1106
        %v1109 = vmul.f32 %v500, %v1105
        %v1110 = vmul.f32 %v501, %v1106
        %v1111 = vmul.f32 %v503, %v1105
        %v1112 = vmul.f32 %v504, %v1106
        %v1113 = vmul.f32 %v506, %v1105
        %v1114 = vmul.f32 %v507, %v1106
        %v1115 = vmul.f32 %v509, %v1105
        %v1116 = vmul.f32 %v510, %v1106
        %v1117 = vmul.f32 %v512, %v1105
        %v1118 = vmul.f32 %v513, %v1106
        %v1119 = vmul.f32 %v515, %v1105
        %v1120 = vmul.f32 %v516, %v1106
        %v1121 = vmul.f32 %v518, %v1105
        %v1122 = vmul.f32 %v519, %v1106
        %1139 = vrot.lane.b32.xlu0 %v1107, 111
        %v1140 = vpop.permute.xlu0 %1139
        %1141 = vrot.lane.b32.xlu0 %v1108, 111
        %v1142 = vpop.permute.xlu0 %1141
        %1143 = vrot.lane.b32.xlu0 %v1109, 111
        %v1144 = vpop.permute.xlu0 %1143
        %1145 = vrot.lane.b32.xlu0 %v1110, 111
        %v1146 = vpop.permute.xlu0 %1145
        %1147 = vrot.lane.b32.xlu0 %v1111, 111
        %v1148 = vpop.permute.xlu0 %1147
        %1149 = vrot.lane.b32.xlu0 %v1112, 111
        %v1150 = vpop.permute.xlu0 %1149
        %1151 = vrot.lane.b32.xlu0 %v1113, 111
        %v1152 = vpop.permute.xlu0 %1151
        %1153 = vrot.lane.b32.xlu0 %v1114, 111
        %v1154 = vpop.permute.xlu0 %1153
        %1155 = vrot.lane.b32.xlu0 %v1115, 111
        %v1156 = vpop.permute.xlu0 %1155
        %1157 = vrot.lane.b32.xlu0 %v1116, 111
        %v1158 = vpop.permute.xlu0 %1157
        %1159 = vrot.lane.b32.xlu0 %v1117, 111
        %v1160 = vpop.permute.xlu0 %1159
        %1161 = vrot.lane.b32.xlu0 %v1118, 111
        %v1162 = vpop.permute.xlu0 %1161
        %1163 = vrot.lane.b32.xlu0 %v1119, 111
        %v1164 = vpop.permute.xlu0 %1163
        %1165 = vrot.lane.b32.xlu0 %v1120, 111
        %v1166 = vpop.permute.xlu0 %1165
        %1167 = vrot.lane.b32.xlu0 %v1121, 111
        %v1168 = vpop.permute.xlu0 %1167
        %1169 = vrot.lane.b32.xlu0 %v1122, 111
        %v1170 = vpop.permute.xlu0 %1169
        %v1171 = vsel %vm528, %v1140, %v1142
        %v1172 = vsel %vm528, %v1144, %v1146
        %v1173 = vsel %vm528, %v1148, %v1150
        %v1174 = vsel %vm528, %v1152, %v1154
        %v1175 = vsel %vm528, %v1156, %v1158
        %v1176 = vsel %vm528, %v1160, %v1162
        %v1177 = vsel %vm528, %v1164, %v1166
        %v1178 = vsel %vm528, %v1168, %v1170
        %v1203 = vadd.f32 %v1080, %v1140
        %v1204 = vadd.f32 %v1081, %v1171
        %v1205 = vadd.f32 %v1082, %v1142
        %v1206 = vadd.f32 %v1083, %v1144
        %v1207 = vadd.f32 %v1084, %v1172
        %v1208 = vadd.f32 %v1085, %v1146
        %v1209 = vadd.f32 %v1086, %v1148
        %v1210 = vadd.f32 %v1087, %v1173
        %v1211 = vadd.f32 %v1088, %v1150
        %v1212 = vadd.f32 %v1089, %v1152
        %v1213 = vadd.f32 %v1090, %v1174
        %v1214 = vadd.f32 %v1091, %v1154
        %v1215 = vadd.f32 %v1092, %v1156
        %v1216 = vadd.f32 %v1093, %v1175
        %v1217 = vadd.f32 %v1094, %v1158
        %v1218 = vadd.f32 %v1095, %v1160
        %v1219 = vadd.f32 %v1096, %v1176
        %v1220 = vadd.f32 %v1097, %v1162
        %v1221 = vadd.f32 %v1098, %v1164
        %v1222 = vadd.f32 %v1099, %v1177
        %v1223 = vadd.f32 %v1100, %v1166
        %v1224 = vadd.f32 %v1101, %v1168
        %v1225 = vadd.f32 %v1102, %v1178
        %v1226 = vadd.f32 %v1103, %v1170
        %v1227 = vld [vmem:[#allocation2 + $0x8] sm:$0xff]
        %v1228 = vld [vmem:[#allocation2 + $0x10] sm:$0xff]
        %v1229 = vld [vmem:[#allocation2 + $0x18] sm:$0xff]
        %v1230 = vld [vmem:[#allocation2 + $0x28] sm:$0xff]
        %v1231 = vld [vmem:[#allocation2 + $0x30] sm:$0xff]
        %v1232 = vld [vmem:[#allocation2 + $0x38] sm:$0xff]
        %v1233 = vld [vmem:[#allocation2 + $0x48] sm:$0xff]
        %v1234 = vld [vmem:[#allocation2 + $0x50] sm:$0xff]
        %v1235 = vld [vmem:[#allocation2 + $0x58] sm:$0xff]
        %v1236 = vld [vmem:[#allocation2 + $0x68] sm:$0xff]
        %v1237 = vld [vmem:[#allocation2 + $0x70] sm:$0xff]
        %v1238 = vld [vmem:[#allocation2 + $0x78] sm:$0xff]
        %v1239 = vld [vmem:[#allocation2 + $0x88] sm:$0xff]
        %v1240 = vld [vmem:[#allocation2 + $0x90] sm:$0xff]
        %v1241 = vld [vmem:[#allocation2 + $0x98] sm:$0xff]
        %v1242 = vld [vmem:[#allocation2 + $0xa8] sm:$0xff]
        %v1243 = vld [vmem:[#allocation2 + $0xb0] sm:$0xff]
        %v1244 = vld [vmem:[#allocation2 + $0xb8] sm:$0xff]
        %v1245 = vld [vmem:[#allocation2 + $0xc8] sm:$0xff]
        %v1246 = vld [vmem:[#allocation2 + $0xd0] sm:$0xff]
        %v1247 = vld [vmem:[#allocation2 + $0xd8] sm:$0xff]
        %v1248 = vld [vmem:[#allocation2 + $0xe8] sm:$0xff]
        %v1249 = vld [vmem:[#allocation2 + $0xf0] sm:$0xff]
        %v1250 = vld [vmem:[#allocation2 + $0xf8] sm:$0xff]
        %s1251 = scalar_lea.vmem [#allocation7], 80
        %v1252 = vld [vmem:[%s1251] sm:$0xff]
        %v1253 = vld [vmem:[%s1251 + $0x8] sm:$0xff]
        %1256 = vrot.lane.b32.xlu0 %v1252, 1
        %v1257 = vpop.permute.xlu0 %1256
        %1258 = vrot.lane.b32.xlu0 %v1253, 1
        %v1259 = vpop.permute.xlu0 %1258
        %vm1260 = vcmask 7168
        %v1261 = vsel %vm1260, %v1257, %v1259
        %v1265 = vmul.f32 %v1227, %v1257
        %v1266 = vmul.f32 %v1228, %v1261
        %v1267 = vmul.f32 %v1229, %v1259
        %v1268 = vmul.f32 %v1230, %v1257
        %v1269 = vmul.f32 %v1231, %v1261
        %v1270 = vmul.f32 %v1232, %v1259
        %v1271 = vmul.f32 %v1233, %v1257
        %v1272 = vmul.f32 %v1234, %v1261
        %v1273 = vmul.f32 %v1235, %v1259
        %v1274 = vmul.f32 %v1236, %v1257
        %v1275 = vmul.f32 %v1237, %v1261
        %v1276 = vmul.f32 %v1238, %v1259
        %v1277 = vmul.f32 %v1239, %v1257
        %v1278 = vmul.f32 %v1240, %v1261
        %v1279 = vmul.f32 %v1241, %v1259
        %v1280 = vmul.f32 %v1242, %v1257
        %v1281 = vmul.f32 %v1243, %v1261
        %v1282 = vmul.f32 %v1244, %v1259
        %v1283 = vmul.f32 %v1245, %v1257
        %v1284 = vmul.f32 %v1246, %v1261
        %v1285 = vmul.f32 %v1247, %v1259
        %v1286 = vmul.f32 %v1248, %v1257
        %v1287 = vmul.f32 %v1249, %v1261
        %v1288 = vmul.f32 %v1250, %v1259
        %1313 = vrot.lane.b32.xlu0 %v1265, 110
        %v1314 = vpop.permute.xlu0 %1313
        %1315 = vrot.lane.b32.xlu0 %v1266, 110
        %v1316 = vpop.permute.xlu0 %1315
        %1317 = vrot.lane.b32.xlu0 %v1267, 110
        %v1318 = vpop.permute.xlu0 %1317
        %1319 = vrot.lane.b32.xlu0 %v1268, 110
        %v1320 = vpop.permute.xlu0 %1319
        %1321 = vrot.lane.b32.xlu0 %v1269, 110
        %v1322 = vpop.permute.xlu0 %1321
        %1323 = vrot.lane.b32.xlu0 %v1270, 110
        %v1324 = vpop.permute.xlu0 %1323
        %1325 = vrot.lane.b32.xlu0 %v1271, 110
        %v1326 = vpop.permute.xlu0 %1325
        %1327 = vrot.lane.b32.xlu0 %v1272, 110
        %v1328 = vpop.permute.xlu0 %1327
        %1329 = vrot.lane.b32.xlu0 %v1273, 110
        %v1330 = vpop.permute.xlu0 %1329
        %1331 = vrot.lane.b32.xlu0 %v1274, 110
        %v1332 = vpop.permute.xlu0 %1331
        %1333 = vrot.lane.b32.xlu0 %v1275, 110
        %v1334 = vpop.permute.xlu0 %1333
        %1335 = vrot.lane.b32.xlu0 %v1276, 110
        %v1336 = vpop.permute.xlu0 %1335
        %1337 = vrot.lane.b32.xlu0 %v1277, 110
        %v1338 = vpop.permute.xlu0 %1337
        %1339 = vrot.lane.b32.xlu0 %v1278, 110
        %v1340 = vpop.permute.xlu0 %1339
        %1341 = vrot.lane.b32.xlu0 %v1279, 110
        %v1342 = vpop.permute.xlu0 %1341
        %1343 = vrot.lane.b32.xlu0 %v1280, 110
        %v1344 = vpop.permute.xlu0 %1343
        %1345 = vrot.lane.b32.xlu0 %v1281, 110
        %v1346 = vpop.permute.xlu0 %1345
        %1347 = vrot.lane.b32.xlu0 %v1282, 110
        %v1348 = vpop.permute.xlu0 %1347
        %1349 = vrot.lane.b32.xlu0 %v1283, 110
        %v1350 = vpop.permute.xlu0 %1349
        %1351 = vrot.lane.b32.xlu0 %v1284, 110
        %v1352 = vpop.permute.xlu0 %1351
        %1353 = vrot.lane.b32.xlu0 %v1285, 110
        %v1354 = vpop.permute.xlu0 %1353
        %1355 = vrot.lane.b32.xlu0 %v1286, 110
        %v1356 = vpop.permute.xlu0 %1355
        %1357 = vrot.lane.b32.xlu0 %v1287, 110
        %v1358 = vpop.permute.xlu0 %1357
        %1359 = vrot.lane.b32.xlu0 %v1288, 110
        %v1360 = vpop.permute.xlu0 %1359
        %vm1361 = vcmask 900096
        %v1362 = vsel %vm1361, %v1314, %v1316
        %v1363 = vsel %vm1361, %v1316, %v1318
        %v1364 = vsel %vm1361, %v1320, %v1322
        %v1365 = vsel %vm1361, %v1322, %v1324
        %v1366 = vsel %vm1361, %v1326, %v1328
        %v1367 = vsel %vm1361, %v1328, %v1330
        %v1368 = vsel %vm1361, %v1332, %v1334
        %v1369 = vsel %vm1361, %v1334, %v1336
        %v1370 = vsel %vm1361, %v1338, %v1340
        %v1371 = vsel %vm1361, %v1340, %v1342
        %v1372 = vsel %vm1361, %v1344, %v1346
        %v1373 = vsel %vm1361, %v1346, %v1348
        %v1374 = vsel %vm1361, %v1350, %v1352
        %v1375 = vsel %vm1361, %v1352, %v1354
        %v1376 = vsel %vm1361, %v1356, %v1358
        %v1377 = vsel %vm1361, %v1358, %v1360
        %v1402 = vadd.f32 %v1203, %v1314
        %v1403 = vadd.f32 %v1204, %v1362
        %v1404 = vadd.f32 %v1205, %v1363
        %v1405 = vadd.f32 %v1206, %v1320
        %v1406 = vadd.f32 %v1207, %v1364
        %v1407 = vadd.f32 %v1208, %v1365
        %v1408 = vadd.f32 %v1209, %v1326
        %v1409 = vadd.f32 %v1210, %v1366
        %v1410 = vadd.f32 %v1211, %v1367
        %v1411 = vadd.f32 %v1212, %v1332
        %v1412 = vadd.f32 %v1213, %v1368
        %v1413 = vadd.f32 %v1214, %v1369
        %v1414 = vadd.f32 %v1215, %v1338
        %v1415 = vadd.f32 %v1216, %v1370
        %v1416 = vadd.f32 %v1217, %v1371
        %v1417 = vadd.f32 %v1218, %v1344
        %v1418 = vadd.f32 %v1219, %v1372
        %v1419 = vadd.f32 %v1220, %v1373
        %v1420 = vadd.f32 %v1221, %v1350
        %v1421 = vadd.f32 %v1222, %v1374
        %v1422 = vadd.f32 %v1223, %v1375
        %v1423 = vadd.f32 %v1224, %v1356
        %v1424 = vadd.f32 %v1225, %v1376
        %v1425 = vadd.f32 %v1226, %v1377
        %s1426 = scalar_lea.vmem [#allocation7], 96
        %v1427 = vld [vmem:[%s1426] sm:$0xff]
        %v1428 = vld [vmem:[%s1426 + $0x8] sm:$0xff]
        %1431 = vrot.lane.b32.xlu0 %v1427, 15
        %v1432 = vpop.permute.xlu0 %1431
        %1433 = vrot.lane.b32.xlu0 %v1428, 15
        %v1434 = vpop.permute.xlu0 %1433
        %vm1435 = vcmask 121856
        %v1436 = vsel %vm1435, %v1432, %v1434
        %v1440 = vmul.f32 %v1227, %v1432
        %v1441 = vmul.f32 %v1228, %v1436
        %v1442 = vmul.f32 %v1229, %v1434
        %v1443 = vmul.f32 %v1230, %v1432
        %v1444 = vmul.f32 %v1231, %v1436
        %v1445 = vmul.f32 %v1232, %v1434
        %v1446 = vmul.f32 %v1233, %v1432
        %v1447 = vmul.f32 %v1234, %v1436
        %v1448 = vmul.f32 %v1235, %v1434
        %v1449 = vmul.f32 %v1236, %v1432
        %v1450 = vmul.f32 %v1237, %v1436
        %v1451 = vmul.f32 %v1238, %v1434
        %v1452 = vmul.f32 %v1239, %v1432
        %v1453 = vmul.f32 %v1240, %v1436
        %v1454 = vmul.f32 %v1241, %v1434
        %v1455 = vmul.f32 %v1242, %v1432
        %v1456 = vmul.f32 %v1243, %v1436
        %v1457 = vmul.f32 %v1244, %v1434
        %v1458 = vmul.f32 %v1245, %v1432
        %v1459 = vmul.f32 %v1246, %v1436
        %v1460 = vmul.f32 %v1247, %v1434
        %v1461 = vmul.f32 %v1248, %v1432
        %v1462 = vmul.f32 %v1249, %v1436
        %v1463 = vmul.f32 %v1250, %v1434
        %1488 = vrot.lane.b32.xlu0 %v1440, 96
        %v1489 = vpop.permute.xlu0 %1488
        %1490 = vrot.lane.b32.xlu0 %v1441, 96
        %v1491 = vpop.permute.xlu0 %1490
        %1492 = vrot.lane.b32.xlu0 %v1442, 96
        %v1493 = vpop.permute.xlu0 %1492
        %1494 = vrot.lane.b32.xlu0 %v1443, 96
        %v1495 = vpop.permute.xlu0 %1494
        %1496 = vrot.lane.b32.xlu0 %v1444, 96
        %v1497 = vpop.permute.xlu0 %1496
        %1498 = vrot.lane.b32.xlu0 %v1445, 96
        %v1499 = vpop.permute.xlu0 %1498
        %1500 = vrot.lane.b32.xlu0 %v1446, 96
        %v1501 = vpop.permute.xlu0 %1500
        %1502 = vrot.lane.b32.xlu0 %v1447, 96
        %v1503 = vpop.permute.xlu0 %1502
        %1504 = vrot.lane.b32.xlu0 %v1448, 96
        %v1505 = vpop.permute.xlu0 %1504
        %1506 = vrot.lane.b32.xlu0 %v1449, 96
        %v1507 = vpop.permute.xlu0 %1506
        %1508 = vrot.lane.b32.xlu0 %v1450, 96
        %v1509 = vpop.permute.xlu0 %1508
        %1510 = vrot.lane.b32.xlu0 %v1451, 96
        %v1511 = vpop.permute.xlu0 %1510
        %1512 = vrot.lane.b32.xlu0 %v1452, 96
        %v1513 = vpop.permute.xlu0 %1512
        %1514 = vrot.lane.b32.xlu0 %v1453, 96
        %v1515 = vpop.permute.xlu0 %1514
        %1516 = vrot.lane.b32.xlu0 %v1454, 96
        %v1517 = vpop.permute.xlu0 %1516
        %1518 = vrot.lane.b32.xlu0 %v1455, 96
        %v1519 = vpop.permute.xlu0 %1518
        %1520 = vrot.lane.b32.xlu0 %v1456, 96
        %v1521 = vpop.permute.xlu0 %1520
        %1522 = vrot.lane.b32.xlu0 %v1457, 96
        %v1523 = vpop.permute.xlu0 %1522
        %1524 = vrot.lane.b32.xlu0 %v1458, 96
        %v1525 = vpop.permute.xlu0 %1524
        %1526 = vrot.lane.b32.xlu0 %v1459, 96
        %v1527 = vpop.permute.xlu0 %1526
        %1528 = vrot.lane.b32.xlu0 %v1460, 96
        %v1529 = vpop.permute.xlu0 %1528
        %1530 = vrot.lane.b32.xlu0 %v1461, 96
        %v1531 = vpop.permute.xlu0 %1530
        %1532 = vrot.lane.b32.xlu0 %v1462, 96
        %v1533 = vpop.permute.xlu0 %1532
        %1534 = vrot.lane.b32.xlu0 %v1463, 96
        %v1535 = vpop.permute.xlu0 %1534
        %vm1536 = vcmask 785408
        %v1537 = vsel %vm1536, %v1489, %v1491
        %v1538 = vsel %vm1536, %v1491, %v1493
        %v1539 = vsel %vm1536, %v1495, %v1497
        %v1540 = vsel %vm1536, %v1497, %v1499
        %v1541 = vsel %vm1536, %v1501, %v1503
        %v1542 = vsel %vm1536, %v1503, %v1505
        %v1543 = vsel %vm1536, %v1507, %v1509
        %v1544 = vsel %vm1536, %v1509, %v1511
        %v1545 = vsel %vm1536, %v1513, %v1515
        %v1546 = vsel %vm1536, %v1515, %v1517
        %v1547 = vsel %vm1536, %v1519, %v1521
        %v1548 = vsel %vm1536, %v1521, %v1523
        %v1549 = vsel %vm1536, %v1525, %v1527
        %v1550 = vsel %vm1536, %v1527, %v1529
        %v1551 = vsel %vm1536, %v1531, %v1533
        %v1552 = vsel %vm1536, %v1533, %v1535
        %v1577 = vadd.f32 %v1402, %v1489
        %v1578 = vadd.f32 %v1403, %v1537
        %v1579 = vadd.f32 %v1404, %v1538
        %v1580 = vadd.f32 %v1405, %v1495
        %v1581 = vadd.f32 %v1406, %v1539
        %v1582 = vadd.f32 %v1407, %v1540
        %v1583 = vadd.f32 %v1408, %v1501
        %v1584 = vadd.f32 %v1409, %v1541
        %v1585 = vadd.f32 %v1410, %v1542
        %v1586 = vadd.f32 %v1411, %v1507
        %v1587 = vadd.f32 %v1412, %v1543
        %v1588 = vadd.f32 %v1413, %v1544
        %v1589 = vadd.f32 %v1414, %v1513
        %v1590 = vadd.f32 %v1415, %v1545
        %v1591 = vadd.f32 %v1416, %v1546
        %v1592 = vadd.f32 %v1417, %v1519
        %v1593 = vadd.f32 %v1418, %v1547
        %v1594 = vadd.f32 %v1419, %v1548
        %v1595 = vadd.f32 %v1420, %v1525
        %v1596 = vadd.f32 %v1421, %v1549
        %v1597 = vadd.f32 %v1422, %v1550
        %v1598 = vadd.f32 %v1423, %v1531
        %v1599 = vadd.f32 %v1424, %v1551
        %v1600 = vadd.f32 %v1425, %v1552
        %s1601 = scalar_lea.vmem [#allocation7], 112
        %v1602 = vld [vmem:[%s1601] sm:$0xff]
        %v1603 = vld [vmem:[%s1601 + $0x8] sm:$0xff]
        %1606 = vrot.lane.b32.xlu0 %v1602, 16
        %v1607 = vpop.permute.xlu0 %1606
        %1608 = vrot.lane.b32.xlu0 %v1603, 16
        %v1609 = vpop.permute.xlu0 %1608
        %vm1610 = vcmask 130048
        %v1611 = vsel %vm1610, %v1607, %v1609
        %v1615 = vmul.f32 %v1227, %v1607
        %v1616 = vmul.f32 %v1228, %v1611
        %v1617 = vmul.f32 %v1229, %v1609
        %v1618 = vmul.f32 %v1230, %v1607
        %v1619 = vmul.f32 %v1231, %v1611
        %v1620 = vmul.f32 %v1232, %v1609
        %v1621 = vmul.f32 %v1233, %v1607
        %v1622 = vmul.f32 %v1234, %v1611
        %v1623 = vmul.f32 %v1235, %v1609
        %v1624 = vmul.f32 %v1236, %v1607
        %v1625 = vmul.f32 %v1237, %v1611
        %v1626 = vmul.f32 %v1238, %v1609
        %v1627 = vmul.f32 %v1239, %v1607
        %v1628 = vmul.f32 %v1240, %v1611
        %v1629 = vmul.f32 %v1241, %v1609
        %v1630 = vmul.f32 %v1242, %v1607
        %v1631 = vmul.f32 %v1243, %v1611
        %v1632 = vmul.f32 %v1244, %v1609
        %v1633 = vmul.f32 %v1245, %v1607
        %v1634 = vmul.f32 %v1246, %v1611
        %v1635 = vmul.f32 %v1247, %v1609
        %v1636 = vmul.f32 %v1248, %v1607
        %v1637 = vmul.f32 %v1249, %v1611
        %v1638 = vmul.f32 %v1250, %v1609
        %1663 = vrot.lane.b32.xlu0 %v1615, 95
        %v1664 = vpop.permute.xlu0 %1663
        %1665 = vrot.lane.b32.xlu0 %v1616, 95
        %v1666 = vpop.permute.xlu0 %1665
        %1667 = vrot.lane.b32.xlu0 %v1617, 95
        %v1668 = vpop.permute.xlu0 %1667
        %1669 = vrot.lane.b32.xlu0 %v1618, 95
        %v1670 = vpop.permute.xlu0 %1669
        %1671 = vrot.lane.b32.xlu0 %v1619, 95
        %v1672 = vpop.permute.xlu0 %1671
        %1673 = vrot.lane.b32.xlu0 %v1620, 95
        %v1674 = vpop.permute.xlu0 %1673
        %1675 = vrot.lane.b32.xlu0 %v1621, 95
        %v1676 = vpop.permute.xlu0 %1675
        %1677 = vrot.lane.b32.xlu0 %v1622, 95
        %v1678 = vpop.permute.xlu0 %1677
        %1679 = vrot.lane.b32.xlu0 %v1623, 95
        %v1680 = vpop.permute.xlu0 %1679
        %1681 = vrot.lane.b32.xlu0 %v1624, 95
        %v1682 = vpop.permute.xlu0 %1681
        %1683 = vrot.lane.b32.xlu0 %v1625, 95
        %v1684 = vpop.permute.xlu0 %1683
        %1685 = vrot.lane.b32.xlu0 %v1626, 95
        %v1686 = vpop.permute.xlu0 %1685
        %1687 = vrot.lane.b32.xlu0 %v1627, 95
        %v1688 = vpop.permute.xlu0 %1687
        %1689 = vrot.lane.b32.xlu0 %v1628, 95
        %v1690 = vpop.permute.xlu0 %1689
        %1691 = vrot.lane.b32.xlu0 %v1629, 95
        %v1692 = vpop.permute.xlu0 %1691
        %1693 = vrot.lane.b32.xlu0 %v1630, 95
        %v1694 = vpop.permute.xlu0 %1693
        %1695 = vrot.lane.b32.xlu0 %v1631, 95
        %v1696 = vpop.permute.xlu0 %1695
        %1697 = vrot.lane.b32.xlu0 %v1632, 95
        %v1698 = vpop.permute.xlu0 %1697
        %1699 = vrot.lane.b32.xlu0 %v1633, 95
        %v1700 = vpop.permute.xlu0 %1699
        %1701 = vrot.lane.b32.xlu0 %v1634, 95
        %v1702 = vpop.permute.xlu0 %1701
        %1703 = vrot.lane.b32.xlu0 %v1635, 95
        %v1704 = vpop.permute.xlu0 %1703
        %1705 = vrot.lane.b32.xlu0 %v1636, 95
        %v1706 = vpop.permute.xlu0 %1705
        %1707 = vrot.lane.b32.xlu0 %v1637, 95
        %v1708 = vpop.permute.xlu0 %1707
        %1709 = vrot.lane.b32.xlu0 %v1638, 95
        %v1710 = vpop.permute.xlu0 %1709
        %vm1711 = vcmask 777216
        %v1712 = vsel %vm1711, %v1664, %v1666
        %v1713 = vsel %vm1711, %v1666, %v1668
        %v1714 = vsel %vm1711, %v1670, %v1672
        %v1715 = vsel %vm1711, %v1672, %v1674
        %v1716 = vsel %vm1711, %v1676, %v1678
        %v1717 = vsel %vm1711, %v1678, %v1680
        %v1718 = vsel %vm1711, %v1682, %v1684
        %v1719 = vsel %vm1711, %v1684, %v1686
        %v1720 = vsel %vm1711, %v1688, %v1690
        %v1721 = vsel %vm1711, %v1690, %v1692
        %v1722 = vsel %vm1711, %v1694, %v1696
        %v1723 = vsel %vm1711, %v1696, %v1698
        %v1724 = vsel %vm1711, %v1700, %v1702
        %v1725 = vsel %vm1711, %v1702, %v1704
        %v1726 = vsel %vm1711, %v1706, %v1708
        %v1727 = vsel %vm1711, %v1708, %v1710
        %v1752 = vadd.f32 %v1577, %v1664
        %v1753 = vadd.f32 %v1578, %v1712
        %v1754 = vadd.f32 %v1579, %v1713
        %v1755 = vadd.f32 %v1580, %v1670
        %v1756 = vadd.f32 %v1581, %v1714
        %v1757 = vadd.f32 %v1582, %v1715
        %v1758 = vadd.f32 %v1583, %v1676
        %v1759 = vadd.f32 %v1584, %v1716
        %v1760 = vadd.f32 %v1585, %v1717
        %v1761 = vadd.f32 %v1586, %v1682
        %v1762 = vadd.f32 %v1587, %v1718
        %v1763 = vadd.f32 %v1588, %v1719
        %v1764 = vadd.f32 %v1589, %v1688
        %v1765 = vadd.f32 %v1590, %v1720
        %v1766 = vadd.f32 %v1591, %v1721
        %v1767 = vadd.f32 %v1592, %v1694
        %v1768 = vadd.f32 %v1593, %v1722
        %v1769 = vadd.f32 %v1594, %v1723
        %v1770 = vadd.f32 %v1595, %v1700
        %v1771 = vadd.f32 %v1596, %v1724
        %v1772 = vadd.f32 %v1597, %v1725
        %v1773 = vadd.f32 %v1598, %v1706
        %v1774 = vadd.f32 %v1599, %v1726
        %v1775 = vadd.f32 %v1600, %v1727
        %s1776 = scalar_lea.vmem [#allocation7], 128
        %v1777 = vld [vmem:[%s1776] sm:$0xff]
        %v1778 = vld [vmem:[%s1776 + $0x8] sm:$0xff]
        %1781 = vrot.lane.b32.xlu0 %v1777, 17
        %v1782 = vpop.permute.xlu0 %1781
        %1783 = vrot.lane.b32.xlu0 %v1778, 17
        %v1784 = vpop.permute.xlu0 %1783
        %vm1785 = vcmask 138240
        %v1786 = vsel %vm1785, %v1782, %v1784
        %v1790 = vmul.f32 %v1227, %v1782
        %v1791 = vmul.f32 %v1228, %v1786
        %v1792 = vmul.f32 %v1229, %v1784
        %v1793 = vmul.f32 %v1230, %v1782
        %v1794 = vmul.f32 %v1231, %v1786
        %v1795 = vmul.f32 %v1232, %v1784
        %v1796 = vmul.f32 %v1233, %v1782
        %v1797 = vmul.f32 %v1234, %v1786
        %v1798 = vmul.f32 %v1235, %v1784
        %v1799 = vmul.f32 %v1236, %v1782
        %v1800 = vmul.f32 %v1237, %v1786
        %v1801 = vmul.f32 %v1238, %v1784
        %v1802 = vmul.f32 %v1239, %v1782
        %v1803 = vmul.f32 %v1240, %v1786
        %v1804 = vmul.f32 %v1241, %v1784
        %v1805 = vmul.f32 %v1242, %v1782
        %v1806 = vmul.f32 %v1243, %v1786
        %v1807 = vmul.f32 %v1244, %v1784
        %v1808 = vmul.f32 %v1245, %v1782
        %v1809 = vmul.f32 %v1246, %v1786
        %v1810 = vmul.f32 %v1247, %v1784
        %v1811 = vmul.f32 %v1248, %v1782
        %v1812 = vmul.f32 %v1249, %v1786
        %v1813 = vmul.f32 %v1250, %v1784
        %1838 = vrot.lane.b32.xlu0 %v1790, 94
        %v1839 = vpop.permute.xlu0 %1838
        %1840 = vrot.lane.b32.xlu0 %v1791, 94
        %v1841 = vpop.permute.xlu0 %1840
        %1842 = vrot.lane.b32.xlu0 %v1792, 94
        %v1843 = vpop.permute.xlu0 %1842
        %1844 = vrot.lane.b32.xlu0 %v1793, 94
        %v1845 = vpop.permute.xlu0 %1844
        %1846 = vrot.lane.b32.xlu0 %v1794, 94
        %v1847 = vpop.permute.xlu0 %1846
        %1848 = vrot.lane.b32.xlu0 %v1795, 94
        %v1849 = vpop.permute.xlu0 %1848
        %1850 = vrot.lane.b32.xlu0 %v1796, 94
        %v1851 = vpop.permute.xlu0 %1850
        %1852 = vrot.lane.b32.xlu0 %v1797, 94
        %v1853 = vpop.permute.xlu0 %1852
        %1854 = vrot.lane.b32.xlu0 %v1798, 94
        %v1855 = vpop.permute.xlu0 %1854
        %1856 = vrot.lane.b32.xlu0 %v1799, 94
        %v1857 = vpop.permute.xlu0 %1856
        %1858 = vrot.lane.b32.xlu0 %v1800, 94
        %v1859 = vpop.permute.xlu0 %1858
        %1860 = vrot.lane.b32.xlu0 %v1801, 94
        %v1861 = vpop.permute.xlu0 %1860
        %1862 = vrot.lane.b32.xlu0 %v1802, 94
        %v1863 = vpop.permute.xlu0 %1862
        %1864 = vrot.lane.b32.xlu0 %v1803, 94
        %v1865 = vpop.permute.xlu0 %1864
        %1866 = vrot.lane.b32.xlu0 %v1804, 94
        %v1867 = vpop.permute.xlu0 %1866
        %1868 = vrot.lane.b32.xlu0 %v1805, 94
        %v1869 = vpop.permute.xlu0 %1868
        %1870 = vrot.lane.b32.xlu0 %v1806, 94
        %v1871 = vpop.permute.xlu0 %1870
        %1872 = vrot.lane.b32.xlu0 %v1807, 94
        %v1873 = vpop.permute.xlu0 %1872
        %1874 = vrot.lane.b32.xlu0 %v1808, 94
        %v1875 = vpop.permute.xlu0 %1874
        %1876 = vrot.lane.b32.xlu0 %v1809, 94
        %v1877 = vpop.permute.xlu0 %1876
        %1878 = vrot.lane.b32.xlu0 %v1810, 94
        %v1879 = vpop.permute.xlu0 %1878
        %1880 = vrot.lane.b32.xlu0 %v1811, 94
        %v1881 = vpop.permute.xlu0 %1880
        %1882 = vrot.lane.b32.xlu0 %v1812, 94
        %v1883 = vpop.permute.xlu0 %1882
        %1884 = vrot.lane.b32.xlu0 %v1813, 94
        %v1885 = vpop.permute.xlu0 %1884
        %vm1886 = vcmask 769024
        %v1887 = vsel %vm1886, %v1839, %v1841
        %v1888 = vsel %vm1886, %v1841, %v1843
        %v1889 = vsel %vm1886, %v1845, %v1847
        %v1890 = vsel %vm1886, %v1847, %v1849
        %v1891 = vsel %vm1886, %v1851, %v1853
        %v1892 = vsel %vm1886, %v1853, %v1855
        %v1893 = vsel %vm1886, %v1857, %v1859
        %v1894 = vsel %vm1886, %v1859, %v1861
        %v1895 = vsel %vm1886, %v1863, %v1865
        %v1896 = vsel %vm1886, %v1865, %v1867
        %v1897 = vsel %vm1886, %v1869, %v1871
        %v1898 = vsel %vm1886, %v1871, %v1873
        %v1899 = vsel %vm1886, %v1875, %v1877
        %v1900 = vsel %vm1886, %v1877, %v1879
        %v1901 = vsel %vm1886, %v1881, %v1883
        %v1902 = vsel %vm1886, %v1883, %v1885
        %v1927 = vadd.f32 %v1752, %v1839
        %v1928 = vadd.f32 %v1753, %v1887
        %v1929 = vadd.f32 %v1754, %v1888
        %v1930 = vadd.f32 %v1755, %v1845
        %v1931 = vadd.f32 %v1756, %v1889
        %v1932 = vadd.f32 %v1757, %v1890
        %v1933 = vadd.f32 %v1758, %v1851
        %v1934 = vadd.f32 %v1759, %v1891
        %v1935 = vadd.f32 %v1760, %v1892
        %v1936 = vadd.f32 %v1761, %v1857
        %v1937 = vadd.f32 %v1762, %v1893
        %v1938 = vadd.f32 %v1763, %v1894
        %v1939 = vadd.f32 %v1764, %v1863
        %v1940 = vadd.f32 %v1765, %v1895
        %v1941 = vadd.f32 %v1766, %v1896
        %v1942 = vadd.f32 %v1767, %v1869
        %v1943 = vadd.f32 %v1768, %v1897
        %v1944 = vadd.f32 %v1769, %v1898
        %v1945 = vadd.f32 %v1770, %v1875
        %v1946 = vadd.f32 %v1771, %v1899
        %v1947 = vadd.f32 %v1772, %v1900
        %v1948 = vadd.f32 %v1773, %v1881
        %v1949 = vadd.f32 %v1774, %v1901
        %v1950 = vadd.f32 %v1775, %v1902
        %v1951 = vld [vmem:[#allocation9] sm:$0xff]
        %v1952 = vld [vmem:[#allocation9 + $0x8] sm:$0xff]
        %1955 = vrot.lane.b32.xlu0 %v1951, 111
        %v1956 = vpop.permute.xlu0 %1955
        %1957 = vrot.lane.b32.xlu0 %v1952, 111
        %v1958 = vpop.permute.xlu0 %1957
        %v1959 = vsel %vm528, %v1956, %v1958
        %v1963 = vmul.f32 %v1927, %v1956
        %v1964 = vmul.f32 %v1928, %v1959
        %v1965 = vmul.f32 %v1929, %v1958
        %v1966 = vmul.f32 %v1930, %v1956
        %v1967 = vmul.f32 %v1931, %v1959
        %v1968 = vmul.f32 %v1932, %v1958
        %v1969 = vmul.f32 %v1933, %v1956
        %v1970 = vmul.f32 %v1934, %v1959
        %v1971 = vmul.f32 %v1935, %v1958
        %v1972 = vmul.f32 %v1936, %v1956
        %v1973 = vmul.f32 %v1937, %v1959
        %v1974 = vmul.f32 %v1938, %v1958
        %v1975 = vmul.f32 %v1939, %v1956
        %v1976 = vmul.f32 %v1940, %v1959
        %v1977 = vmul.f32 %v1941, %v1958
        %v1978 = vmul.f32 %v1942, %v1956
        %v1979 = vmul.f32 %v1943, %v1959
        %v1980 = vmul.f32 %v1944, %v1958
        %v1981 = vmul.f32 %v1945, %v1956
        %v1982 = vmul.f32 %v1946, %v1959
        %v1983 = vmul.f32 %v1947, %v1958
        %v1984 = vmul.f32 %v1948, %v1956
        %v1985 = vmul.f32 %v1949, %v1959
        %v1986 = vmul.f32 %v1950, %v1958
        %v1987 = vld [vmem:[#allocation10] sm:$0xff]
        %v1988 = vld [vmem:[#allocation10 + $0x8] sm:$0xff]
        %1991 = vrot.lane.b32.xlu0 %v1987, 111
        %v1992 = vpop.permute.xlu0 %1991
        %1993 = vrot.lane.b32.xlu0 %v1988, 111
        %v1994 = vpop.permute.xlu0 %1993
        %v1995 = vsel %vm528, %v1992, %v1994
        %v1999 = vadd.f32 %v1963, %v1992
        %v2000 = vadd.f32 %v1964, %v1995
        %v2001 = vadd.f32 %v1965, %v1994
        %v2002 = vadd.f32 %v1966, %v1992
        %v2003 = vadd.f32 %v1967, %v1995
        %v2004 = vadd.f32 %v1968, %v1994
        %v2005 = vadd.f32 %v1969, %v1992
        %v2006 = vadd.f32 %v1970, %v1995
        %v2007 = vadd.f32 %v1971, %v1994
        %v2008 = vadd.f32 %v1972, %v1992
        %v2009 = vadd.f32 %v1973, %v1995
        %v2010 = vadd.f32 %v1974, %v1994
        %v2011 = vadd.f32 %v1975, %v1992
        %v2012 = vadd.f32 %v1976, %v1995
        %v2013 = vadd.f32 %v1977, %v1994
        %v2014 = vadd.f32 %v1978, %v1992
        %v2015 = vadd.f32 %v1979, %v1995
        %v2016 = vadd.f32 %v1980, %v1994
        %v2017 = vadd.f32 %v1981, %v1992
        %v2018 = vadd.f32 %v1982, %v1995
        %v2019 = vadd.f32 %v1983, %v1994
        %v2020 = vadd.f32 %v1984, %v1992
        %v2021 = vadd.f32 %v1985, %v1995
        %v2022 = vadd.f32 %v1986, %v1994
        %v2023 = vmax.f32 %v1999, 0.0
        %v2024 = vmax.f32 %v2000, 0.0
        %v2025 = vmax.f32 %v2001, 0.0
        %v2026 = vmax.f32 %v2002, 0.0
        %v2027 = vmax.f32 %v2003, 0.0
        %v2028 = vmax.f32 %v2004, 0.0
        %v2029 = vmax.f32 %v2005, 0.0
        %v2030 = vmax.f32 %v2006, 0.0
        %v2031 = vmax.f32 %v2007, 0.0
        %v2032 = vmax.f32 %v2008, 0.0
        %v2033 = vmax.f32 %v2009, 0.0
        %v2034 = vmax.f32 %v2010, 0.0
        %v2035 = vmax.f32 %v2011, 0.0
        %v2036 = vmax.f32 %v2012, 0.0
        %v2037 = vmax.f32 %v2013, 0.0
        %v2038 = vmax.f32 %v2014, 0.0
        %v2039 = vmax.f32 %v2015, 0.0
        %v2040 = vmax.f32 %v2016, 0.0
        %v2041 = vmax.f32 %v2017, 0.0
        %v2042 = vmax.f32 %v2018, 0.0
        %v2043 = vmax.f32 %v2019, 0.0
        %v2044 = vmax.f32 %v2020, 0.0
        %v2045 = vmax.f32 %v2021, 0.0
        %v2046 = vmax.f32 %v2022, 0.0
        %2071 = vrot.lane.b32.xlu0 %v2023, 17
        %v2072 = vpop.permute.xlu0 %2071
        %2073 = vrot.lane.b32.xlu0 %v2024, 17
        %v2074 = vpop.permute.xlu0 %2073
        %2075 = vrot.lane.b32.xlu0 %v2025, 17
        %v2076 = vpop.permute.xlu0 %2075
        %2077 = vrot.lane.b32.xlu0 %v2026, 17
        %v2078 = vpop.permute.xlu0 %2077
        %2079 = vrot.lane.b32.xlu0 %v2027, 17
        %v2080 = vpop.permute.xlu0 %2079
        %2081 = vrot.lane.b32.xlu0 %v2028, 17
        %v2082 = vpop.permute.xlu0 %2081
        %2083 = vrot.lane.b32.xlu0 %v2029, 17
        %v2084 = vpop.permute.xlu0 %2083
        %2085 = vrot.lane.b32.xlu0 %v2030, 17
        %v2086 = vpop.permute.xlu0 %2085
        %2087 = vrot.lane.b32.xlu0 %v2031, 17
        %v2088 = vpop.permute.xlu0 %2087
        %2089 = vrot.lane.b32.xlu0 %v2032, 17
        %v2090 = vpop.permute.xlu0 %2089
        %2091 = vrot.lane.b32.xlu0 %v2033, 17
        %v2092 = vpop.permute.xlu0 %2091
        %2093 = vrot.lane.b32.xlu0 %v2034, 17
        %v2094 = vpop.permute.xlu0 %2093
        %2095 = vrot.lane.b32.xlu0 %v2035, 17
        %v2096 = vpop.permute.xlu0 %2095
        %2097 = vrot.lane.b32.xlu0 %v2036, 17
        %v2098 = vpop.permute.xlu0 %2097
        %2099 = vrot.lane.b32.xlu0 %v2037, 17
        %v2100 = vpop.permute.xlu0 %2099
        %2101 = vrot.lane.b32.xlu0 %v2038, 17
        %v2102 = vpop.permute.xlu0 %2101
        %2103 = vrot.lane.b32.xlu0 %v2039, 17
        %v2104 = vpop.permute.xlu0 %2103
        %2105 = vrot.lane.b32.xlu0 %v2040, 17
        %v2106 = vpop.permute.xlu0 %2105
        %2107 = vrot.lane.b32.xlu0 %v2041, 17
        %v2108 = vpop.permute.xlu0 %2107
        %2109 = vrot.lane.b32.xlu0 %v2042, 17
        %v2110 = vpop.permute.xlu0 %2109
        %2111 = vrot.lane.b32.xlu0 %v2043, 17
        %v2112 = vpop.permute.xlu0 %2111
        %2113 = vrot.lane.b32.xlu0 %v2044, 17
        %v2114 = vpop.permute.xlu0 %2113
        %2115 = vrot.lane.b32.xlu0 %v2045, 17
        %v2116 = vpop.permute.xlu0 %2115
        %2117 = vrot.lane.b32.xlu0 %v2046, 17
        %v2118 = vpop.permute.xlu0 %2117
        %v2119 = vsel %vm1785, %v2072, %v2074
        %v2120 = vsel %vm1785, %v2074, %v2076
        %v2121 = vsel %vm1785, %v2078, %v2080
        %v2122 = vsel %vm1785, %v2080, %v2082
        %v2123 = vsel %vm1785, %v2084, %v2086
        %v2124 = vsel %vm1785, %v2086, %v2088
        %v2125 = vsel %vm1785, %v2090, %v2092
        %v2126 = vsel %vm1785, %v2092, %v2094
        %v2127 = vsel %vm1785, %v2096, %v2098
        %v2128 = vsel %vm1785, %v2098, %v2100
        %v2129 = vsel %vm1785, %v2102, %v2104
        %v2130 = vsel %vm1785, %v2104, %v2106
        %v2131 = vsel %vm1785, %v2108, %v2110
        %v2132 = vsel %vm1785, %v2110, %v2112
        %v2133 = vsel %vm1785, %v2114, %v2116
        %v2134 = vsel %vm1785, %v2116, %v2118
        %v2151 = vadd.f32 %v2119, %v2120
        %2152 = vadd.xlane.f32.xlu0 %v2151
        %v2153 = vpop.xlane.xlu0 %2152
        %v2154 = vadd.f32 %v2121, %v2122
        %2155 = vadd.xlane.f32.xlu0 %v2154
        %v2156 = vpop.xlane.xlu0 %2155
        %v2157 = vadd.f32 %v2123, %v2124
        %2158 = vadd.xlane.f32.xlu0 %v2157
        %v2159 = vpop.xlane.xlu0 %2158
        %v2160 = vadd.f32 %v2125, %v2126
        %2161 = vadd.xlane.f32.xlu0 %v2160
        %v2162 = vpop.xlane.xlu0 %2161
        %v2163 = vadd.f32 %v2127, %v2128
        %2164 = vadd.xlane.f32.xlu0 %v2163
        %v2165 = vpop.xlane.xlu0 %2164
        %v2166 = vadd.f32 %v2129, %v2130
        %2167 = vadd.xlane.f32.xlu0 %v2166
        %v2168 = vpop.xlane.xlu0 %2167
        %v2169 = vadd.f32 %v2131, %v2132
        %2170 = vadd.xlane.f32.xlu0 %v2169
        %v2171 = vpop.xlane.xlu0 %2170
        %v2172 = vadd.f32 %v2133, %v2134
        %2173 = vadd.xlane.f32.xlu0 %v2172
        %v2174 = vpop.xlane.xlu0 %2173
        %v2175 = vmul.f32 %v2153, 0.00390625
        %v2176 = vmul.f32 %v2156, 0.00390625
        %v2177 = vmul.f32 %v2159, 0.00390625
        %v2178 = vmul.f32 %v2162, 0.00390625
        %v2179 = vmul.f32 %v2165, 0.00390625
        %v2180 = vmul.f32 %v2168, 0.00390625
        %v2181 = vmul.f32 %v2171, 0.00390625
        %v2182 = vmul.f32 %v2174, 0.00390625
        %v2183 = vld [vmem:[%s4] sm:$0xff]
        %v2184 = vmul.f32 %v2175, %v2183
        %v2185 = vmul.f32 %v2176, %v2183
        %v2186 = vmul.f32 %v2177, %v2183
        %v2187 = vmul.f32 %v2178, %v2183
        %v2188 = vmul.f32 %v2179, %v2183
        %v2189 = vmul.f32 %v2180, %v2183
        %v2190 = vmul.f32 %v2181, %v2183
        %v2191 = vmul.f32 %v2182, %v2183
        %vm2192 = vcmask 15360
        %v2193 = vsel %vm2192, %v2184, 0.0
        %v2194 = vrot.slane %v2193, 4
        %v2195 = vadd.f32 %v2193, %v2194
        %v2196 = vrot.slane %v2195, 2
        %v2197 = vadd.f32 %v2195, %v2196
        %v2198 = vrot.slane %v2197, 1
        %v2199 = vadd.f32 %v2197, %v2198
        %v2200 = vsel %vm2192, %v2185, 0.0
        %v2201 = vrot.slane %v2200, 4
        %v2202 = vadd.f32 %v2200, %v2201
        %v2203 = vrot.slane %v2202, 2
        %v2204 = vadd.f32 %v2202, %v2203
        %v2205 = vrot.slane %v2204, 1
        %v2206 = vadd.f32 %v2204, %v2205
        %v2207 = vsel %vm2192, %v2186, 0.0
        %v2208 = vrot.slane %v2207, 4
        %v2209 = vadd.f32 %v2207, %v2208
        %v2210 = vrot.slane %v2209, 2
        %v2211 = vadd.f32 %v2209, %v2210
        %v2212 = vrot.slane %v2211, 1
        %v2213 = vadd.f32 %v2211, %v2212
        %v2214 = vsel %vm2192, %v2187, 0.0
        %v2215 = vrot.slane %v2214, 4
        %v2216 = vadd.f32 %v2214, %v2215
        %v2217 = vrot.slane %v2216, 2
        %v2218 = vadd.f32 %v2216, %v2217
        %v2219 = vrot.slane %v2218, 1
        %v2220 = vadd.f32 %v2218, %v2219
        %v2221 = vsel %vm2192, %v2188, 0.0
        %v2222 = vrot.slane %v2221, 4
        %v2223 = vadd.f32 %v2221, %v2222
        %v2224 = vrot.slane %v2223, 2
        %v2225 = vadd.f32 %v2223, %v2224
        %v2226 = vrot.slane %v2225, 1
        %v2227 = vadd.f32 %v2225, %v2226
        %v2228 = vsel %vm2192, %v2189, 0.0
        %v2229 = vrot.slane %v2228, 4
        %v2230 = vadd.f32 %v2228, %v2229
        %v2231 = vrot.slane %v2230, 2
        %v2232 = vadd.f32 %v2230, %v2231
        %v2233 = vrot.slane %v2232, 1
        %v2234 = vadd.f32 %v2232, %v2233
        %v2235 = vsel %vm2192, %v2190, 0.0
        %v2236 = vrot.slane %v2235, 4
        %v2237 = vadd.f32 %v2235, %v2236
        %v2238 = vrot.slane %v2237, 2
        %v2239 = vadd.f32 %v2237, %v2238
        %v2240 = vrot.slane %v2239, 1
        %v2241 = vadd.f32 %v2239, %v2240
        %v2242 = vsel %vm2192, %v2191, 0.0
        %v2243 = vrot.slane %v2242, 4
        %v2244 = vadd.f32 %v2242, %v2243
        %v2245 = vrot.slane %v2244, 2
        %v2246 = vadd.f32 %v2244, %v2245
        %v2247 = vrot.slane %v2246, 1
        %v2248 = vadd.f32 %v2246, %v2247
        %v2249 = vld [vmem:[%s5] sm:$0x1]
        %v2250 = vadd.f32 %v2199, %v2249
        %v2251 = vadd.f32 %v2206, %v2249
        %v2252 = vadd.f32 %v2213, %v2249
        %v2253 = vadd.f32 %v2220, %v2249
        %v2254 = vadd.f32 %v2227, %v2249
        %v2255 = vadd.f32 %v2234, %v2249
        %v2256 = vadd.f32 %v2241, %v2249
        %v2257 = vadd.f32 %v2248, %v2249
        %v2258 = vmax.f32 %v2250, 0.0
        %v2259 = vmax.f32 %v2251, 0.0
        %v2260 = vmax.f32 %v2252, 0.0
        %v2261 = vmax.f32 %v2253, 0.0
        %v2262 = vmax.f32 %v2254, 0.0
        %v2263 = vmax.f32 %v2255, 0.0
        %v2264 = vmax.f32 %v2256, 0.0
        %v2265 = vmax.f32 %v2257, 0.0
        %v2266 = vld [vmem:[%s6] sm:$0xff]
        %v2267 = vlaneseq
        %v2268 = vshrl.u32 %v2267, 7
        %v2269 = vsub.s32 0, %v2268
        %v2270 = vrot.slane %v2258, %v2269
        %v2271 = vlaneseq
        %v2272 = vshrl.u32 %v2271, 7
        %v2273 = vsub.s32 0, %v2272
        %v2274 = vrot.slane %v2259, %v2273
        %v2275 = vlaneseq
        %v2276 = vshrl.u32 %v2275, 7
        %v2277 = vsub.s32 0, %v2276
        %v2278 = vrot.slane %v2260, %v2277
        %v2279 = vlaneseq
        %v2280 = vshrl.u32 %v2279, 7
        %v2281 = vsub.s32 0, %v2280
        %v2282 = vrot.slane %v2261, %v2281
        %v2283 = vlaneseq
        %v2284 = vshrl.u32 %v2283, 7
        %v2285 = vsub.s32 0, %v2284
        %v2286 = vrot.slane %v2262, %v2285
        %v2287 = vlaneseq
        %v2288 = vshrl.u32 %v2287, 7
        %v2289 = vsub.s32 0, %v2288
        %v2290 = vrot.slane %v2263, %v2289
        %v2291 = vlaneseq
        %v2292 = vshrl.u32 %v2291, 7
        %v2293 = vsub.s32 0, %v2292
        %v2294 = vrot.slane %v2264, %v2293
        %v2295 = vlaneseq
        %v2296 = vshrl.u32 %v2295, 7
        %v2297 = vsub.s32 0, %v2296
        %v2298 = vrot.slane %v2265, %v2297
        %v2299 = vmul.f32 %v2266, %v2270
        %v2300 = vmul.f32 %v2266, %v2274
        %v2301 = vmul.f32 %v2266, %v2278
        %v2302 = vmul.f32 %v2266, %v2282
        %v2303 = vmul.f32 %v2266, %v2286
        %v2304 = vmul.f32 %v2266, %v2290
        %v2305 = vmul.f32 %v2266, %v2294
        %v2306 = vmul.f32 %v2266, %v2298
        %v2307 = vsel %vm2192, %v2299, 0.0
        %2308 = vadd.xlane.f32.xlu0 %v2307
        %v2309 = vpop.xlane.xlu0 %2308
        %v2310 = vsel %vm2192, %v2300, 0.0
        %2311 = vadd.xlane.f32.xlu0 %v2310
        %v2312 = vpop.xlane.xlu0 %2311
        %v2313 = vsel %vm2192, %v2301, 0.0
        %2314 = vadd.xlane.f32.xlu0 %v2313
        %v2315 = vpop.xlane.xlu0 %2314
        %v2316 = vsel %vm2192, %v2302, 0.0
        %2317 = vadd.xlane.f32.xlu0 %v2316
        %v2318 = vpop.xlane.xlu0 %2317
        %v2319 = vsel %vm2192, %v2303, 0.0
        %2320 = vadd.xlane.f32.xlu0 %v2319
        %v2321 = vpop.xlane.xlu0 %2320
        %v2322 = vsel %vm2192, %v2304, 0.0
        %2323 = vadd.xlane.f32.xlu0 %v2322
        %v2324 = vpop.xlane.xlu0 %2323
        %v2325 = vsel %vm2192, %v2305, 0.0
        %2326 = vadd.xlane.f32.xlu0 %v2325
        %v2327 = vpop.xlane.xlu0 %2326
        %v2328 = vsel %vm2192, %v2306, 0.0
        %2329 = vadd.xlane.f32.xlu0 %v2328
        %v2330 = vpop.xlane.xlu0 %2329
        %v2331 = vld [vmem:[%s7] sm:$0xff]
        %v2332 = vadd.f32 %v2309, %v2331
        %v2333 = vadd.f32 %v2312, %v2331
        %v2334 = vadd.f32 %v2315, %v2331
        %v2335 = vadd.f32 %v2318, %v2331
        %v2336 = vadd.f32 %v2321, %v2331
        %v2337 = vadd.f32 %v2324, %v2331
        %v2338 = vadd.f32 %v2327, %v2331
        %v2339 = vadd.f32 %v2330, %v2331
        %v2340 = vxor.u32 %v2332, 2147483648
        %v2341 = vxor.u32 %v2333, 2147483648
        %v2342 = vxor.u32 %v2334, 2147483648
        %v2343 = vxor.u32 %v2335, 2147483648
        %v2344 = vxor.u32 %v2336, 2147483648
        %v2345 = vxor.u32 %v2337, 2147483648
        %v2346 = vxor.u32 %v2338, 2147483648
        %v2347 = vxor.u32 %v2339, 2147483648
        %v2348 = vmul.f32 %v2340, 1.442695
        %v2349 = vpow.pop %v2348
        %v2350 = vmul.f32 %v2341, 1.442695
        %v2351 = vpow.pop %v2350
        %v2352 = vmul.f32 %v2342, 1.442695
        %v2353 = vpow.pop %v2352
        %v2354 = vmul.f32 %v2343, 1.442695
        %v2355 = vpow.pop %v2354
        %v2356 = vmul.f32 %v2344, 1.442695
        %v2357 = vpow.pop %v2356
        %v2358 = vmul.f32 %v2345, 1.442695
        %v2359 = vpow.pop %v2358
        %v2360 = vmul.f32 %v2346, 1.442695
        %v2361 = vpow.pop %v2360
        %v2362 = vmul.f32 %v2347, 1.442695
        %v2363 = vpow.pop %v2362
        %v2364 = vadd.f32 %v2349, 1.0
        %v2365 = vadd.f32 %v2351, 1.0
        %v2366 = vadd.f32 %v2353, 1.0
        %v2367 = vadd.f32 %v2355, 1.0
        %v2368 = vadd.f32 %v2357, 1.0
        %v2369 = vadd.f32 %v2359, 1.0
        %v2370 = vadd.f32 %v2361, 1.0
        %v2371 = vadd.f32 %v2363, 1.0
        %v2372 = vrcp.pop %v2364
        %v2373 = vmul.f32 1.0, %v2372
        %v2374 = vrcp.pop %v2365
        %v2375 = vmul.f32 1.0, %v2374
        %v2376 = vrcp.pop %v2366
        %v2377 = vmul.f32 1.0, %v2376
        %v2378 = vrcp.pop %v2367
        %v2379 = vmul.f32 1.0, %v2378
        %v2380 = vrcp.pop %v2368
        %v2381 = vmul.f32 1.0, %v2380
        %v2382 = vrcp.pop %v2369
        %v2383 = vmul.f32 1.0, %v2382
        %v2384 = vrcp.pop %v2370
        %v2385 = vmul.f32 1.0, %v2384
        %v2386 = vrcp.pop %v2371
        %v2387 = vmul.f32 1.0, %v2386
        %2389 = vset.pattern.permute.xlu0 0
        %2390 = vperm.xlu0 %2389, %v2373
        %v2391 = vpop.permute.xlu0 %2390
        %2394 = vset.pattern.permute.xlu0 0
        %2395 = vperm.xlu0 %2394, %v2375
        %v2396 = vpop.permute.xlu0 %2395
        %2399 = vset.pattern.permute.xlu0 0
        %2400 = vperm.xlu0 %2399, %v2377
        %v2401 = vpop.permute.xlu0 %2400
        %2404 = vset.pattern.permute.xlu0 0
        %2405 = vperm.xlu0 %2404, %v2379
        %v2406 = vpop.permute.xlu0 %2405
        %2409 = vset.pattern.permute.xlu0 0
        %2410 = vperm.xlu0 %2409, %v2381
        %v2411 = vpop.permute.xlu0 %2410
        %2414 = vset.pattern.permute.xlu0 0
        %2415 = vperm.xlu0 %2414, %v2383
        %v2416 = vpop.permute.xlu0 %2415
        %2419 = vset.pattern.permute.xlu0 0
        %2420 = vperm.xlu0 %2419, %v2385
        %v2421 = vpop.permute.xlu0 %2420
        %2424 = vset.pattern.permute.xlu0 0
        %2425 = vperm.xlu0 %2424, %v2387
        %v2426 = vpop.permute.xlu0 %2425
        %v2428 = vmul.f32 %v2023, %v2391
        %v2429 = vmul.f32 %v2024, %v2391
        %v2430 = vmul.f32 %v2025, %v2391
        %v2431 = vmul.f32 %v2026, %v2396
        %v2432 = vmul.f32 %v2027, %v2396
        %v2433 = vmul.f32 %v2028, %v2396
        %v2434 = vmul.f32 %v2029, %v2401
        %v2435 = vmul.f32 %v2030, %v2401
        %v2436 = vmul.f32 %v2031, %v2401
        %v2437 = vmul.f32 %v2032, %v2406
        %v2438 = vmul.f32 %v2033, %v2406
        %v2439 = vmul.f32 %v2034, %v2406
        %v2440 = vmul.f32 %v2035, %v2411
        %v2441 = vmul.f32 %v2036, %v2411
        %v2442 = vmul.f32 %v2037, %v2411
        %v2443 = vmul.f32 %v2038, %v2416
        %v2444 = vmul.f32 %v2039, %v2416
        %v2445 = vmul.f32 %v2040, %v2416
        %v2446 = vmul.f32 %v2041, %v2421
        %v2447 = vmul.f32 %v2042, %v2421
        %v2448 = vmul.f32 %v2043, %v2421
        %v2449 = vmul.f32 %v2044, %v2426
        %v2450 = vmul.f32 %v2045, %v2426
        %v2451 = vmul.f32 %v2046, %v2426
        %2455 = vrot.lane.b32.xlu0 %v2428, 17
        %v2456 = vpop.permute.xlu0 %2455
        %2457 = vrot.lane.b32.xlu0 %v2429, 17
        %v2458 = vpop.permute.xlu0 %2457
        %2459 = vrot.lane.b32.xlu0 %v2430, 17
        %v2460 = vpop.permute.xlu0 %2459
        %v2461 = vsel %vm1785, %v2456, %v2458
        %v2462 = vsel %vm1785, %v2458, %v2460
        %2465 = vst [vmem:[#allocation3] sm:$0xff] %v2461
        %2466 = vst [vmem:[#allocation3 + $0x8] sm:$0xff] %v2462
        %2470 = vrot.lane.b32.xlu0 %v2431, 17
        %v2471 = vpop.permute.xlu0 %2470
        %2472 = vrot.lane.b32.xlu0 %v2432, 17
        %v2473 = vpop.permute.xlu0 %2472
        %2474 = vrot.lane.b32.xlu0 %v2433, 17
        %v2475 = vpop.permute.xlu0 %2474
        %v2476 = vsel %vm1785, %v2471, %v2473
        %v2477 = vsel %vm1785, %v2473, %v2475
        %2480 = vst [vmem:[#allocation3 + $0x10] sm:$0xff] %v2476
        %2481 = vst [vmem:[#allocation3 + $0x18] sm:$0xff] %v2477
        %2485 = vrot.lane.b32.xlu0 %v2434, 17
        %v2486 = vpop.permute.xlu0 %2485
        %2487 = vrot.lane.b32.xlu0 %v2435, 17
        %v2488 = vpop.permute.xlu0 %2487
        %2489 = vrot.lane.b32.xlu0 %v2436, 17
        %v2490 = vpop.permute.xlu0 %2489
        %v2491 = vsel %vm1785, %v2486, %v2488
        %v2492 = vsel %vm1785, %v2488, %v2490
        %2495 = vst [vmem:[#allocation3 + $0x20] sm:$0xff] %v2491
        %2496 = vst [vmem:[#allocation3 + $0x28] sm:$0xff] %v2492
        %2500 = vrot.lane.b32.xlu0 %v2437, 17
        %v2501 = vpop.permute.xlu0 %2500
        %2502 = vrot.lane.b32.xlu0 %v2438, 17
        %v2503 = vpop.permute.xlu0 %2502
        %2504 = vrot.lane.b32.xlu0 %v2439, 17
        %v2505 = vpop.permute.xlu0 %2504
        %v2506 = vsel %vm1785, %v2501, %v2503
        %v2507 = vsel %vm1785, %v2503, %v2505
        %2510 = vst [vmem:[#allocation3 + $0x30] sm:$0xff] %v2506
        %2511 = vst [vmem:[#allocation3 + $0x38] sm:$0xff] %v2507
        %2515 = vrot.lane.b32.xlu0 %v2440, 17
        %v2516 = vpop.permute.xlu0 %2515
        %2517 = vrot.lane.b32.xlu0 %v2441, 17
        %v2518 = vpop.permute.xlu0 %2517
        %2519 = vrot.lane.b32.xlu0 %v2442, 17
        %v2520 = vpop.permute.xlu0 %2519
        %v2521 = vsel %vm1785, %v2516, %v2518
        %v2522 = vsel %vm1785, %v2518, %v2520
        %2525 = vst [vmem:[#allocation3 + $0x40] sm:$0xff] %v2521
        %2526 = vst [vmem:[#allocation3 + $0x48] sm:$0xff] %v2522
        %2530 = vrot.lane.b32.xlu0 %v2443, 17
        %v2531 = vpop.permute.xlu0 %2530
        %2532 = vrot.lane.b32.xlu0 %v2444, 17
        %v2533 = vpop.permute.xlu0 %2532
        %2534 = vrot.lane.b32.xlu0 %v2445, 17
        %v2535 = vpop.permute.xlu0 %2534
        %v2536 = vsel %vm1785, %v2531, %v2533
        %v2537 = vsel %vm1785, %v2533, %v2535
        %2540 = vst [vmem:[#allocation3 + $0x50] sm:$0xff] %v2536
        %2541 = vst [vmem:[#allocation3 + $0x58] sm:$0xff] %v2537
        %2545 = vrot.lane.b32.xlu0 %v2446, 17
        %v2546 = vpop.permute.xlu0 %2545
        %2547 = vrot.lane.b32.xlu0 %v2447, 17
        %v2548 = vpop.permute.xlu0 %2547
        %2549 = vrot.lane.b32.xlu0 %v2448, 17
        %v2550 = vpop.permute.xlu0 %2549
        %v2551 = vsel %vm1785, %v2546, %v2548
        %v2552 = vsel %vm1785, %v2548, %v2550
        %2555 = vst [vmem:[#allocation3 + $0x60] sm:$0xff] %v2551
        %2556 = vst [vmem:[#allocation3 + $0x68] sm:$0xff] %v2552
        %2560 = vrot.lane.b32.xlu0 %v2449, 17
        %v2561 = vpop.permute.xlu0 %2560
        %2562 = vrot.lane.b32.xlu0 %v2450, 17
        %v2563 = vpop.permute.xlu0 %2562
        %2564 = vrot.lane.b32.xlu0 %v2451, 17
        %v2565 = vpop.permute.xlu0 %2564
        %v2566 = vsel %vm1785, %v2561, %v2563
        %v2567 = vsel %vm1785, %v2563, %v2565
        %2570 = vst [vmem:[#allocation3 + $0x70] sm:$0xff] %v2566
        %2571 = vst [vmem:[#allocation3 + $0x78] sm:$0xff] %v2567
        %v2572 = vld [vmem:[%s8] sm:$0xff]
        %v2573 = vld [vmem:[%s8 + $0x8] sm:$0xff]
        %v2574 = vld [vmem:[#allocation3] sm:$0xff]
        %v2575 = vld [vmem:[#allocation3 + $0x8] sm:$0xff]
        %v2576 = vld [vmem:[#allocation3 + $0x10] sm:$0xff]
        %v2577 = vld [vmem:[#allocation3 + $0x18] sm:$0xff]
        %v2578 = vld [vmem:[#allocation3 + $0x20] sm:$0xff]
        %v2579 = vld [vmem:[#allocation3 + $0x28] sm:$0xff]
        %v2580 = vld [vmem:[#allocation3 + $0x30] sm:$0xff]
        %v2581 = vld [vmem:[#allocation3 + $0x38] sm:$0xff]
        %v2582 = vld [vmem:[#allocation3 + $0x40] sm:$0xff]
        %v2583 = vld [vmem:[#allocation3 + $0x48] sm:$0xff]
        %v2584 = vld [vmem:[#allocation3 + $0x50] sm:$0xff]
        %v2585 = vld [vmem:[#allocation3 + $0x58] sm:$0xff]
        %v2586 = vld [vmem:[#allocation3 + $0x60] sm:$0xff]
        %v2587 = vld [vmem:[#allocation3 + $0x68] sm:$0xff]
        %v2588 = vld [vmem:[#allocation3 + $0x70] sm:$0xff]
        %v2589 = vld [vmem:[#allocation3 + $0x78] sm:$0xff]
        %vm2590 = vcmask 64512
        %v2592 = vsel %vm2590, %v2572, 0
        %v2595 = vsel %vm2590, %v2573, 0
        %2597 = vmatprep.subr.mxu0 %v2575
        %2598 = vmatpush1.msra.mxu0 %v2574
        %2599 = vmatprep.subr.mxu0 0.0
        %2600 = vmatpush1.msra.mxu0 0.0
        %2601 = vmatprep.subr.mxu0 0.0
        %2602 = vmatpush1.msra.mxu0 0.0
        %2603 = vmatprep.subr.mxu0 0.0
        %2604 = vmatpush1.msra.mxu0 0.0
        %2605 = vmatprep.subr.mxu0 0.0
        %2606 = vmatpush1.msra.mxu0 0.0
        %2607 = vmatprep.subr.mxu0 0.0
        %2608 = vmatpush1.msra.mxu0 0.0
        %2609 = vmatprep.subr.mxu0 0.0
        %2610 = vmatpush1.msra.mxu0 0.0
        %2611 = vmatprep.subr.mxu0 0.0
        %2612 = vmatpush1.msra.mxu0 0.0
        %2613 = vmatprep.subr.mxu0 0.0
        %2614 = vmatpush1.msra.mxu0 0.0
        %2615 = vmatprep.subr.mxu0 0.0
        %2616 = vmatpush1.msra.mxu0 0.0
        %2617 = vmatprep.subr.mxu0 0.0
        %2618 = vmatpush1.msra.mxu0 0.0
        %2619 = vmatprep.subr.mxu0 0.0
        %2620 = vmatpush1.msra.mxu0 0.0
        %2621 = vmatprep.subr.mxu0 0.0
        %2622 = vmatpush1.msra.mxu0 0.0
        %2623 = vmatprep.subr.mxu0 0.0
        %2624 = vmatpush1.msra.mxu0 0.0
        %2625 = vmatprep.subr.mxu0 0.0
        %2626 = vmatpush1.msra.mxu0 0.0
        %2627 = vmatprep.subr.mxu0 0.0
        %2628 = vmatpush1.msra.mxu0 0.0
        %2629 = vmatprep.subr.mxu0 0.0
        %2630 = vmatpush1.msra.mxu0 0.0
        %2631 = vmatprep.subr.mxu0 0.0
        %2632 = vmatpush1.msra.mxu0 0.0
        %2633 = vmatprep.subr.mxu0 0.0
        %2634 = vmatpush1.msra.mxu0 0.0
        %2635 = vmatprep.subr.mxu0 0.0
        %2636 = vmatpush1.msra.mxu0 0.0
        %2637 = vmatprep.subr.mxu0 0.0
        %2638 = vmatpush1.msra.mxu0 0.0
        %2639 = vmatprep.subr.mxu0 0.0
        %2640 = vmatpush1.msra.mxu0 0.0
        %2641 = vmatprep.subr.mxu0 0.0
        %2642 = vmatpush1.msra.mxu0 0.0
        %2643 = vmatprep.subr.mxu0 0.0
        %2644 = vmatpush1.msra.mxu0 0.0
        %2645 = vmatprep.subr.mxu0 0.0
        %2646 = vmatpush1.msra.mxu0 0.0
        %2647 = vmatprep.subr.mxu0 0.0
        %2648 = vmatpush1.msra.mxu0 0.0
        %2649 = vmatprep.subr.mxu0 0.0
        %2650 = vmatpush1.msra.mxu0 0.0
        %2651 = vmatprep.subr.mxu0 0.0
        %2652 = vmatpush1.msra.mxu0 0.0
        %2653 = vmatprep.subr.mxu0 0.0
        %2654 = vmatpush1.msra.mxu0 0.0
        %2655 = vmatprep.subr.mxu0 0.0
        %2656 = vmatpush1.msra.mxu0 0.0
        %2657 = vmatprep.subr.mxu0 0.0
        %2658 = vmatpush1.msra.mxu0 0.0
        %2659 = vmatprep.subr.mxu0 0.0
        %2660 = vmatpush1.msra.mxu0 0.0
        %2661 = vmatprep.mubr.f32.mxu0 0.0
        %2662 = vmatmul.mubr.f32.gmra.mrb[0].mxu0 %v2592
        %v2663 = vpop.f32.mrb[0].mxu0
        %v2664 = vadd.f32 0.0, %v2663
        %v2665 = vpop.f32.mrb[0].mxu0
        %v2666 = vadd.f32 0.0, %v2665
        %2667 = vmatprep.mubr.f32.mxu0 0.0
        %2668 = vmatmul.mubr.f32.gmra.mrb[0].mxu0 %v2595
        %v2669 = vpop.f32.mrb[0].mxu0
        %v2670 = vadd.f32 0.0, %v2669
        %v2671 = vpop.f32.mrb[0].mxu0
        %v2672 = vadd.f32 0.0, %v2671
        %2673 = vdwg.mxu0
        %2674 = vmatprep.subr.mxu0 %v2577
        %2675 = vmatpush1.msra.mxu0 %v2576
        %2676 = vmatprep.subr.mxu0 0.0
        %2677 = vmatpush1.msra.mxu0 0.0
        %2678 = vmatprep.subr.mxu0 0.0
        %2679 = vmatpush1.msra.mxu0 0.0
        %2680 = vmatprep.subr.mxu0 0.0
        %2681 = vmatpush1.msra.mxu0 0.0
        %2682 = vmatprep.subr.mxu0 0.0
        %2683 = vmatpush1.msra.mxu0 0.0
        %2684 = vmatprep.subr.mxu0 0.0
        %2685 = vmatpush1.msra.mxu0 0.0
        %2686 = vmatprep.subr.mxu0 0.0
        %2687 = vmatpush1.msra.mxu0 0.0
        %2688 = vmatprep.subr.mxu0 0.0
        %2689 = vmatpush1.msra.mxu0 0.0
        %2690 = vmatprep.subr.mxu0 0.0
        %2691 = vmatpush1.msra.mxu0 0.0
        %2692 = vmatprep.subr.mxu0 0.0
        %2693 = vmatpush1.msra.mxu0 0.0
        %2694 = vmatprep.subr.mxu0 0.0
        %2695 = vmatpush1.msra.mxu0 0.0
        %2696 = vmatprep.subr.mxu0 0.0
        %2697 = vmatpush1.msra.mxu0 0.0
        %2698 = vmatprep.subr.mxu0 0.0
        %2699 = vmatpush1.msra.mxu0 0.0
        %2700 = vmatprep.subr.mxu0 0.0
        %2701 = vmatpush1.msra.mxu0 0.0
        %2702 = vmatprep.subr.mxu0 0.0
        %2703 = vmatpush1.msra.mxu0 0.0
        %2704 = vmatprep.subr.mxu0 0.0
        %2705 = vmatpush1.msra.mxu0 0.0
        %2706 = vmatprep.subr.mxu0 0.0
        %2707 = vmatpush1.msra.mxu0 0.0
        %2708 = vmatprep.subr.mxu0 0.0
        %2709 = vmatpush1.msra.mxu0 0.0
        %2710 = vmatprep.subr.mxu0 0.0
        %2711 = vmatpush1.msra.mxu0 0.0
        %2712 = vmatprep.subr.mxu0 0.0
        %2713 = vmatpush1.msra.mxu0 0.0
        %2714 = vmatprep.subr.mxu0 0.0
        %2715 = vmatpush1.msra.mxu0 0.0
        %2716 = vmatprep.subr.mxu0 0.0
        %2717 = vmatpush1.msra.mxu0 0.0
        %2718 = vmatprep.subr.mxu0 0.0
        %2719 = vmatpush1.msra.mxu0 0.0
        %2720 = vmatprep.subr.mxu0 0.0
        %2721 = vmatpush1.msra.mxu0 0.0
        %2722 = vmatprep.subr.mxu0 0.0
        %2723 = vmatpush1.msra.mxu0 0.0
        %2724 = vmatprep.subr.mxu0 0.0
        %2725 = vmatpush1.msra.mxu0 0.0
        %2726 = vmatprep.subr.mxu0 0.0
        %2727 = vmatpush1.msra.mxu0 0.0
        %2728 = vmatprep.subr.mxu0 0.0
        %2729 = vmatpush1.msra.mxu0 0.0
        %2730 = vmatprep.subr.mxu0 0.0
        %2731 = vmatpush1.msra.mxu0 0.0
        %2732 = vmatprep.subr.mxu0 0.0
        %2733 = vmatpush1.msra.mxu0 0.0
        %2734 = vmatprep.subr.mxu0 0.0
        %2735 = vmatpush1.msra.mxu0 0.0
        %2736 = vmatprep.subr.mxu0 0.0
        %2737 = vmatpush1.msra.mxu0 0.0
        %2738 = vmatprep.mubr.f32.mxu0 0.0
        %2739 = vmatmul.mubr.f32.gmra.mrb[0].mxu0 %v2592
        %v2740 = vpop.f32.mrb[0].mxu0
        %v2741 = vadd.f32 0.0, %v2740
        %v2742 = vpop.f32.mrb[0].mxu0
        %v2743 = vadd.f32 0.0, %v2742
        %2744 = vmatprep.mubr.f32.mxu0 0.0
        %2745 = vmatmul.mubr.f32.gmra.mrb[0].mxu0 %v2595
        %v2746 = vpop.f32.mrb[0].mxu0
        %v2747 = vadd.f32 0.0, %v2746
        %v2748 = vpop.f32.mrb[0].mxu0
        %v2749 = vadd.f32 0.0, %v2748
        %2750 = vdwg.mxu0
        %2751 = vmatprep.subr.mxu0 %v2579
        %2752 = vmatpush1.msra.mxu0 %v2578
        %2753 = vmatprep.subr.mxu0 0.0
        %2754 = vmatpush1.msra.mxu0 0.0
        %2755 = vmatprep.subr.mxu0 0.0
        %2756 = vmatpush1.msra.mxu0 0.0
        %2757 = vmatprep.subr.mxu0 0.0
        %2758 = vmatpush1.msra.mxu0 0.0
        %2759 = vmatprep.subr.mxu0 0.0
        %2760 = vmatpush1.msra.mxu0 0.0
        %2761 = vmatprep.subr.mxu0 0.0
        %2762 = vmatpush1.msra.mxu0 0.0
        %2763 = vmatprep.subr.mxu0 0.0
        %2764 = vmatpush1.msra.mxu0 0.0
        %2765 = vmatprep.subr.mxu0 0.0
        %2766 = vmatpush1.msra.mxu0 0.0
        %2767 = vmatprep.subr.mxu0 0.0
        %2768 = vmatpush1.msra.mxu0 0.0
        %2769 = vmatprep.subr.mxu0 0.0
        %2770 = vmatpush1.msra.mxu0 0.0
        %2771 = vmatprep.subr.mxu0 0.0
        %2772 = vmatpush1.msra.mxu0 0.0
        %2773 = vmatprep.subr.mxu0 0.0
        %2774 = vmatpush1.msra.mxu0 0.0
        %2775 = vmatprep.subr.mxu0 0.0
        %2776 = vmatpush1.msra.mxu0 0.0
        %2777 = vmatprep.subr.mxu0 0.0
        %2778 = vmatpush1.msra.mxu0 0.0
        %2779 = vmatprep.subr.mxu0 0.0
        %2780 = vmatpush1.msra.mxu0 0.0
        %2781 = vmatprep.subr.mxu0 0.0
        %2782 = vmatpush1.msra.mxu0 0.0
        %2783 = vmatprep.subr.mxu0 0.0
        %2784 = vmatpush1.msra.mxu0 0.0
        %2785 = vmatprep.subr.mxu0 0.0
        %2786 = vmatpush1.msra.mxu0 0.0
        %2787 = vmatprep.subr.mxu0 0.0
        %2788 = vmatpush1.msra.mxu0 0.0
        %2789 = vmatprep.subr.mxu0 0.0
        %2790 = vmatpush1.msra.mxu0 0.0
        %2791 = vmatprep.subr.mxu0 0.0
        %2792 = vmatpush1.msra.mxu0 0.0
        %2793 = vmatprep.subr.mxu0 0.0
        %2794 = vmatpush1.msra.mxu0 0.0
        %2795 = vmatprep.subr.mxu0 0.0
        %2796 = vmatpush1.msra.mxu0 0.0
        %2797 = vmatprep.subr.mxu0 0.0
        %2798 = vmatpush1.msra.mxu0 0.0
        %2799 = vmatprep.subr.mxu0 0.0
        %2800 = vmatpush1.msra.mxu0 0.0
        %2801 = vmatprep.subr.mxu0 0.0
        %2802 = vmatpush1.msra.mxu0 0.0
        %2803 = vmatprep.subr.mxu0 0.0
        %2804 = vmatpush1.msra.mxu0 0.0
        %2805 = vmatprep.subr.mxu0 0.0
        %2806 = vmatpush1.msra.mxu0 0.0
        %2807 = vmatprep.subr.mxu0 0.0
        %2808 = vmatpush1.msra.mxu0 0.0
        %2809 = vmatprep.subr.mxu0 0.0
        %2810 = vmatpush1.msra.mxu0 0.0
        %2811 = vmatprep.subr.mxu0 0.0
        %2812 = vmatpush1.msra.mxu0 0.0
        %2813 = vmatprep.subr.mxu0 0.0
        %2814 = vmatpush1.msra.mxu0 0.0
        %2815 = vmatprep.mubr.f32.mxu0 0.0
        %2816 = vmatmul.mubr.f32.gmra.mrb[0].mxu0 %v2592
        %v2817 = vpop.f32.mrb[0].mxu0
        %v2818 = vadd.f32 0.0, %v2817
        %v2819 = vpop.f32.mrb[0].mxu0
        %v2820 = vadd.f32 0.0, %v2819
        %2821 = vmatprep.mubr.f32.mxu0 0.0
        %2822 = vmatmul.mubr.f32.gmra.mrb[0].mxu0 %v2595
        %v2823 = vpop.f32.mrb[0].mxu0
        %v2824 = vadd.f32 0.0, %v2823
        %v2825 = vpop.f32.mrb[0].mxu0
        %v2826 = vadd.f32 0.0, %v2825
        %2827 = vdwg.mxu0
        %2828 = vmatprep.subr.mxu0 %v2581
        %2829 = vmatpush1.msra.mxu0 %v2580
        %2830 = vmatprep.subr.mxu0 0.0
        %2831 = vmatpush1.msra.mxu0 0.0
        %2832 = vmatprep.subr.mxu0 0.0
        %2833 = vmatpush1.msra.mxu0 0.0
        %2834 = vmatprep.subr.mxu0 0.0
        %2835 = vmatpush1.msra.mxu0 0.0
        %2836 = vmatprep.subr.mxu0 0.0
        %2837 = vmatpush1.msra.mxu0 0.0
        %2838 = vmatprep.subr.mxu0 0.0
        %2839 = vmatpush1.msra.mxu0 0.0
        %2840 = vmatprep.subr.mxu0 0.0
        %2841 = vmatpush1.msra.mxu0 0.0
        %2842 = vmatprep.subr.mxu0 0.0
        %2843 = vmatpush1.msra.mxu0 0.0
        %2844 = vmatprep.subr.mxu0 0.0
        %2845 = vmatpush1.msra.mxu0 0.0
        %2846 = vmatprep.subr.mxu0 0.0
        %2847 = vmatpush1.msra.mxu0 0.0
        %2848 = vmatprep.subr.mxu0 0.0
        %2849 = vmatpush1.msra.mxu0 0.0
        %2850 = vmatprep.subr.mxu0 0.0
        %2851 = vmatpush1.msra.mxu0 0.0
        %2852 = vmatprep.subr.mxu0 0.0
        %2853 = vmatpush1.msra.mxu0 0.0
        %2854 = vmatprep.subr.mxu0 0.0
        %2855 = vmatpush1.msra.mxu0 0.0
        %2856 = vmatprep.subr.mxu0 0.0
        %2857 = vmatpush1.msra.mxu0 0.0
        %2858 = vmatprep.subr.mxu0 0.0
        %2859 = vmatpush1.msra.mxu0 0.0
        %2860 = vmatprep.subr.mxu0 0.0
        %2861 = vmatpush1.msra.mxu0 0.0
        %2862 = vmatprep.subr.mxu0 0.0
        %2863 = vmatpush1.msra.mxu0 0.0
        %2864 = vmatprep.subr.mxu0 0.0
        %2865 = vmatpush1.msra.mxu0 0.0
        %2866 = vmatprep.subr.mxu0 0.0
        %2867 = vmatpush1.msra.mxu0 0.0
        %2868 = vmatprep.subr.mxu0 0.0
        %2869 = vmatpush1.msra.mxu0 0.0
        %2870 = vmatprep.subr.mxu0 0.0
        %2871 = vmatpush1.msra.mxu0 0.0
        %2872 = vmatprep.subr.mxu0 0.0
        %2873 = vmatpush1.msra.mxu0 0.0
        %2874 = vmatprep.subr.mxu0 0.0
        %2875 = vmatpush1.msra.mxu0 0.0
        %2876 = vmatprep.subr.mxu0 0.0
        %2877 = vmatpush1.msra.mxu0 0.0
        %2878 = vmatprep.subr.mxu0 0.0
        %2879 = vmatpush1.msra.mxu0 0.0
        %2880 = vmatprep.subr.mxu0 0.0
        %2881 = vmatpush1.msra.mxu0 0.0
        %2882 = vmatprep.subr.mxu0 0.0
        %2883 = vmatpush1.msra.mxu0 0.0
        %2884 = vmatprep.subr.mxu0 0.0
        %2885 = vmatpush1.msra.mxu0 0.0
        %2886 = vmatprep.subr.mxu0 0.0
        %2887 = vmatpush1.msra.mxu0 0.0
        %2888 = vmatprep.subr.mxu0 0.0
        %2889 = vmatpush1.msra.mxu0 0.0
        %2890 = vmatprep.subr.mxu0 0.0
        %2891 = vmatpush1.msra.mxu0 0.0
        %2892 = vmatprep.mubr.f32.mxu0 0.0
        %2893 = vmatmul.mubr.f32.gmra.mrb[0].mxu0 %v2592
        %v2894 = vpop.f32.mrb[0].mxu0
        %v2895 = vadd.f32 0.0, %v2894
        %v2896 = vpop.f32.mrb[0].mxu0
        %v2897 = vadd.f32 0.0, %v2896
        %2898 = vmatprep.mubr.f32.mxu0 0.0
        %2899 = vmatmul.mubr.f32.gmra.mrb[0].mxu0 %v2595
        %v2900 = vpop.f32.mrb[0].mxu0
        %v2901 = vadd.f32 0.0, %v2900
        %v2902 = vpop.f32.mrb[0].mxu0
        %v2903 = vadd.f32 0.0, %v2902
        %2904 = vdwg.mxu0
        %2905 = vmatprep.subr.mxu0 %v2583
        %2906 = vmatpush1.msra.mxu0 %v2582
        %2907 = vmatprep.subr.mxu0 0.0
        %2908 = vmatpush1.msra.mxu0 0.0
        %2909 = vmatprep.subr.mxu0 0.0
        %2910 = vmatpush1.msra.mxu0 0.0
        %2911 = vmatprep.subr.mxu0 0.0
        %2912 = vmatpush1.msra.mxu0 0.0
        %2913 = vmatprep.subr.mxu0 0.0
        %2914 = vmatpush1.msra.mxu0 0.0
        %2915 = vmatprep.subr.mxu0 0.0
        %2916 = vmatpush1.msra.mxu0 0.0
        %2917 = vmatprep.subr.mxu0 0.0
        %2918 = vmatpush1.msra.mxu0 0.0
        %2919 = vmatprep.subr.mxu0 0.0
        %2920 = vmatpush1.msra.mxu0 0.0
        %2921 = vmatprep.subr.mxu0 0.0
        %2922 = vmatpush1.msra.mxu0 0.0
        %2923 = vmatprep.subr.mxu0 0.0
        %2924 = vmatpush1.msra.mxu0 0.0
        %2925 = vmatprep.subr.mxu0 0.0
        %2926 = vmatpush1.msra.mxu0 0.0
        %2927 = vmatprep.subr.mxu0 0.0
        %2928 = vmatpush1.msra.mxu0 0.0
        %2929 = vmatprep.subr.mxu0 0.0
        %2930 = vmatpush1.msra.mxu0 0.0
        %2931 = vmatprep.subr.mxu0 0.0
        %2932 = vmatpush1.msra.mxu0 0.0
        %2933 = vmatprep.subr.mxu0 0.0
        %2934 = vmatpush1.msra.mxu0 0.0
        %2935 = vmatprep.subr.mxu0 0.0
        %2936 = vmatpush1.msra.mxu0 0.0
        %2937 = vmatprep.subr.mxu0 0.0
        %2938 = vmatpush1.msra.mxu0 0.0
        %2939 = vmatprep.subr.mxu0 0.0
        %2940 = vmatpush1.msra.mxu0 0.0
        %2941 = vmatprep.subr.mxu0 0.0
        %2942 = vmatpush1.msra.mxu0 0.0
        %2943 = vmatprep.subr.mxu0 0.0
        %2944 = vmatpush1.msra.mxu0 0.0
        %2945 = vmatprep.subr.mxu0 0.0
        %2946 = vmatpush1.msra.mxu0 0.0
        %2947 = vmatprep.subr.mxu0 0.0
        %2948 = vmatpush1.msra.mxu0 0.0
        %2949 = vmatprep.subr.mxu0 0.0
        %2950 = vmatpush1.msra.mxu0 0.0
        %2951 = vmatprep.subr.mxu0 0.0
        %2952 = vmatpush1.msra.mxu0 0.0
        %2953 = vmatprep.subr.mxu0 0.0
        %2954 = vmatpush1.msra.mxu0 0.0
        %2955 = vmatprep.subr.mxu0 0.0
        %2956 = vmatpush1.msra.mxu0 0.0
        %2957 = vmatprep.subr.mxu0 0.0
        %2958 = vmatpush1.msra.mxu0 0.0
        %2959 = vmatprep.subr.mxu0 0.0
        %2960 = vmatpush1.msra.mxu0 0.0
        %2961 = vmatprep.subr.mxu0 0.0
        %2962 = vmatpush1.msra.mxu0 0.0
        %2963 = vmatprep.subr.mxu0 0.0
        %2964 = vmatpush1.msra.mxu0 0.0
        %2965 = vmatprep.subr.mxu0 0.0
        %2966 = vmatpush1.msra.mxu0 0.0
        %2967 = vmatprep.subr.mxu0 0.0
        %2968 = vmatpush1.msra.mxu0 0.0
        %2969 = vmatprep.mubr.f32.mxu0 0.0
        %2970 = vmatmul.mubr.f32.gmra.mrb[0].mxu0 %v2592
        %v2971 = vpop.f32.mrb[0].mxu0
        %v2972 = vadd.f32 0.0, %v2971
        %v2973 = vpop.f32.mrb[0].mxu0
        %v2974 = vadd.f32 0.0, %v2973
        %2975 = vmatprep.mubr.f32.mxu0 0.0
        %2976 = vmatmul.mubr.f32.gmra.mrb[0].mxu0 %v2595
        %v2977 = vpop.f32.mrb[0].mxu0
        %v2978 = vadd.f32 0.0, %v2977
        %v2979 = vpop.f32.mrb[0].mxu0
        %v2980 = vadd.f32 0.0, %v2979
        %2981 = vdwg.mxu0
        %2982 = vmatprep.subr.mxu0 %v2585
        %2983 = vmatpush1.msra.mxu0 %v2584
        %2984 = vmatprep.subr.mxu0 0.0
        %2985 = vmatpush1.msra.mxu0 0.0
        %2986 = vmatprep.subr.mxu0 0.0
        %2987 = vmatpush1.msra.mxu0 0.0
        %2988 = vmatprep.subr.mxu0 0.0
        %2989 = vmatpush1.msra.mxu0 0.0
        %2990 = vmatprep.subr.mxu0 0.0
        %2991 = vmatpush1.msra.mxu0 0.0
        %2992 = vmatprep.subr.mxu0 0.0
        %2993 = vmatpush1.msra.mxu0 0.0
        %2994 = vmatprep.subr.mxu0 0.0
        %2995 = vmatpush1.msra.mxu0 0.0
        %2996 = vmatprep.subr.mxu0 0.0
        %2997 = vmatpush1.msra.mxu0 0.0
        %2998 = vmatprep.subr.mxu0 0.0
        %2999 = vmatpush1.msra.mxu0 0.0
        %3000 = vmatprep.subr.mxu0 0.0
        %3001 = vmatpush1.msra.mxu0 0.0
        %3002 = vmatprep.subr.mxu0 0.0
        %3003 = vmatpush1.msra.mxu0 0.0
        %3004 = vmatprep.subr.mxu0 0.0
        %3005 = vmatpush1.msra.mxu0 0.0
        %3006 = vmatprep.subr.mxu0 0.0
        %3007 = vmatpush1.msra.mxu0 0.0
        %3008 = vmatprep.subr.mxu0 0.0
        %3009 = vmatpush1.msra.mxu0 0.0
        %3010 = vmatprep.subr.mxu0 0.0
        %3011 = vmatpush1.msra.mxu0 0.0
        %3012 = vmatprep.subr.mxu0 0.0
        %3013 = vmatpush1.msra.mxu0 0.0
        %3014 = vmatprep.subr.mxu0 0.0
        %3015 = vmatpush1.msra.mxu0 0.0
        %3016 = vmatprep.subr.mxu0 0.0
        %3017 = vmatpush1.msra.mxu0 0.0
        %3018 = vmatprep.subr.mxu0 0.0
        %3019 = vmatpush1.msra.mxu0 0.0
        %3020 = vmatprep.subr.mxu0 0.0
        %3021 = vmatpush1.msra.mxu0 0.0
        %3022 = vmatprep.subr.mxu0 0.0
        %3023 = vmatpush1.msra.mxu0 0.0
        %3024 = vmatprep.subr.mxu0 0.0
        %3025 = vmatpush1.msra.mxu0 0.0
        %3026 = vmatprep.subr.mxu0 0.0
        %3027 = vmatpush1.msra.mxu0 0.0
        %3028 = vmatprep.subr.mxu0 0.0
        %3029 = vmatpush1.msra.mxu0 0.0
        %3030 = vmatprep.subr.mxu0 0.0
        %3031 = vmatpush1.msra.mxu0 0.0
        %3032 = vmatprep.subr.mxu0 0.0
        %3033 = vmatpush1.msra.mxu0 0.0
        %3034 = vmatprep.subr.mxu0 0.0
        %3035 = vmatpush1.msra.mxu0 0.0
        %3036 = vmatprep.subr.mxu0 0.0
        %3037 = vmatpush1.msra.mxu0 0.0
        %3038 = vmatprep.subr.mxu0 0.0
        %3039 = vmatpush1.msra.mxu0 0.0
        %3040 = vmatprep.subr.mxu0 0.0
        %3041 = vmatpush1.msra.mxu0 0.0
        %3042 = vmatprep.subr.mxu0 0.0
        %3043 = vmatpush1.msra.mxu0 0.0
        %3044 = vmatprep.subr.mxu0 0.0
        %3045 = vmatpush1.msra.mxu0 0.0
        %3046 = vmatprep.mubr.f32.mxu0 0.0
        %3047 = vmatmul.mubr.f32.gmra.mrb[0].mxu0 %v2592
        %v3048 = vpop.f32.mrb[0].mxu0
        %v3049 = vadd.f32 0.0, %v3048
        %v3050 = vpop.f32.mrb[0].mxu0
        %v3051 = vadd.f32 0.0, %v3050
        %3052 = vmatprep.mubr.f32.mxu0 0.0
        %3053 = vmatmul.mubr.f32.gmra.mrb[0].mxu0 %v2595
        %v3054 = vpop.f32.mrb[0].mxu0
        %v3055 = vadd.f32 0.0, %v3054
        %v3056 = vpop.f32.mrb[0].mxu0
        %v3057 = vadd.f32 0.0, %v3056
        %3058 = vdwg.mxu0
        %3059 = vmatprep.subr.mxu0 %v2587
        %3060 = vmatpush1.msra.mxu0 %v2586
        %3061 = vmatprep.subr.mxu0 0.0
        %3062 = vmatpush1.msra.mxu0 0.0
        %3063 = vmatprep.subr.mxu0 0.0
        %3064 = vmatpush1.msra.mxu0 0.0
        %3065 = vmatprep.subr.mxu0 0.0
        %3066 = vmatpush1.msra.mxu0 0.0
        %3067 = vmatprep.subr.mxu0 0.0
        %3068 = vmatpush1.msra.mxu0 0.0
        %3069 = vmatprep.subr.mxu0 0.0
        %3070 = vmatpush1.msra.mxu0 0.0
        %3071 = vmatprep.subr.mxu0 0.0
        %3072 = vmatpush1.msra.mxu0 0.0
        %3073 = vmatprep.subr.mxu0 0.0
        %3074 = vmatpush1.msra.mxu0 0.0
        %3075 = vmatprep.subr.mxu0 0.0
        %3076 = vmatpush1.msra.mxu0 0.0
        %3077 = vmatprep.subr.mxu0 0.0
        %3078 = vmatpush1.msra.mxu0 0.0
        %3079 = vmatprep.subr.mxu0 0.0
        %3080 = vmatpush1.msra.mxu0 0.0
        %3081 = vmatprep.subr.mxu0 0.0
        %3082 = vmatpush1.msra.mxu0 0.0
        %3083 = vmatprep.subr.mxu0 0.0
        %3084 = vmatpush1.msra.mxu0 0.0
        %3085 = vmatprep.subr.mxu0 0.0
        %3086 = vmatpush1.msra.mxu0 0.0
        %3087 = vmatprep.subr.mxu0 0.0
        %3088 = vmatpush1.msra.mxu0 0.0
        %3089 = vmatprep.subr.mxu0 0.0
        %3090 = vmatpush1.msra.mxu0 0.0
        %3091 = vmatprep.subr.mxu0 0.0
        %3092 = vmatpush1.msra.mxu0 0.0
        %3093 = vmatprep.subr.mxu0 0.0
        %3094 = vmatpush1.msra.mxu0 0.0
        %3095 = vmatprep.subr.mxu0 0.0
        %3096 = vmatpush1.msra.mxu0 0.0
        %3097 = vmatprep.subr.mxu0 0.0
        %3098 = vmatpush1.msra.mxu0 0.0
        %3099 = vmatprep.subr.mxu0 0.0
        %3100 = vmatpush1.msra.mxu0 0.0
        %3101 = vmatprep.subr.mxu0 0.0
        %3102 = vmatpush1.msra.mxu0 0.0
        %3103 = vmatprep.subr.mxu0 0.0
        %3104 = vmatpush1.msra.mxu0 0.0
        %3105 = vmatprep.subr.mxu0 0.0
        %3106 = vmatpush1.msra.mxu0 0.0
        %3107 = vmatprep.subr.mxu0 0.0
        %3108 = vmatpush1.msra.mxu0 0.0
        %3109 = vmatprep.subr.mxu0 0.0
        %3110 = vmatpush1.msra.mxu0 0.0
        %3111 = vmatprep.subr.mxu0 0.0
        %3112 = vmatpush1.msra.mxu0 0.0
        %3113 = vmatprep.subr.mxu0 0.0
        %3114 = vmatpush1.msra.mxu0 0.0
        %3115 = vmatprep.subr.mxu0 0.0
        %3116 = vmatpush1.msra.mxu0 0.0
        %3117 = vmatprep.subr.mxu0 0.0
        %3118 = vmatpush1.msra.mxu0 0.0
        %3119 = vmatprep.subr.mxu0 0.0
        %3120 = vmatpush1.msra.mxu0 0.0
        %3121 = vmatprep.subr.mxu0 0.0
        %3122 = vmatpush1.msra.mxu0 0.0
        %3123 = vmatprep.mubr.f32.mxu0 0.0
        %3124 = vmatmul.mubr.f32.gmra.mrb[0].mxu0 %v2592
        %v3125 = vpop.f32.mrb[0].mxu0
        %v3126 = vadd.f32 0.0, %v3125
        %v3127 = vpop.f32.mrb[0].mxu0
        %v3128 = vadd.f32 0.0, %v3127
        %3129 = vmatprep.mubr.f32.mxu0 0.0
        %3130 = vmatmul.mubr.f32.gmra.mrb[0].mxu0 %v2595
        %v3131 = vpop.f32.mrb[0].mxu0
        %v3132 = vadd.f32 0.0, %v3131
        %v3133 = vpop.f32.mrb[0].mxu0
        %v3134 = vadd.f32 0.0, %v3133
        %3135 = vdwg.mxu0
        %3136 = vmatprep.subr.mxu0 %v2589
        %3137 = vmatpush1.msra.mxu0 %v2588
        %3138 = vmatprep.subr.mxu0 0.0
        %3139 = vmatpush1.msra.mxu0 0.0
        %3140 = vmatprep.subr.mxu0 0.0
        %3141 = vmatpush1.msra.mxu0 0.0
        %3142 = vmatprep.subr.mxu0 0.0
        %3143 = vmatpush1.msra.mxu0 0.0
        %3144 = vmatprep.subr.mxu0 0.0
        %3145 = vmatpush1.msra.mxu0 0.0
        %3146 = vmatprep.subr.mxu0 0.0
        %3147 = vmatpush1.msra.mxu0 0.0
        %3148 = vmatprep.subr.mxu0 0.0
        %3149 = vmatpush1.msra.mxu0 0.0
        %3150 = vmatprep.subr.mxu0 0.0
        %3151 = vmatpush1.msra.mxu0 0.0
        %3152 = vmatprep.subr.mxu0 0.0
        %3153 = vmatpush1.msra.mxu0 0.0
        %3154 = vmatprep.subr.mxu0 0.0
        %3155 = vmatpush1.msra.mxu0 0.0
        %3156 = vmatprep.subr.mxu0 0.0
        %3157 = vmatpush1.msra.mxu0 0.0
        %3158 = vmatprep.subr.mxu0 0.0
        %3159 = vmatpush1.msra.mxu0 0.0
        %3160 = vmatprep.subr.mxu0 0.0
        %3161 = vmatpush1.msra.mxu0 0.0
        %3162 = vmatprep.subr.mxu0 0.0
        %3163 = vmatpush1.msra.mxu0 0.0
        %3164 = vmatprep.subr.mxu0 0.0
        %3165 = vmatpush1.msra.mxu0 0.0
        %3166 = vmatprep.subr.mxu0 0.0
        %3167 = vmatpush1.msra.mxu0 0.0
        %3168 = vmatprep.subr.mxu0 0.0
        %3169 = vmatpush1.msra.mxu0 0.0
        %3170 = vmatprep.subr.mxu0 0.0
        %3171 = vmatpush1.msra.mxu0 0.0
        %3172 = vmatprep.subr.mxu0 0.0
        %3173 = vmatpush1.msra.mxu0 0.0
        %3174 = vmatprep.subr.mxu0 0.0
        %3175 = vmatpush1.msra.mxu0 0.0
        %3176 = vmatprep.subr.mxu0 0.0
        %3177 = vmatpush1.msra.mxu0 0.0
        %3178 = vmatprep.subr.mxu0 0.0
        %3179 = vmatpush1.msra.mxu0 0.0
        %3180 = vmatprep.subr.mxu0 0.0
        %3181 = vmatpush1.msra.mxu0 0.0
        %3182 = vmatprep.subr.mxu0 0.0
        %3183 = vmatpush1.msra.mxu0 0.0
        %3184 = vmatprep.subr.mxu0 0.0
        %3185 = vmatpush1.msra.mxu0 0.0
        %3186 = vmatprep.subr.mxu0 0.0
        %3187 = vmatpush1.msra.mxu0 0.0
        %3188 = vmatprep.subr.mxu0 0.0
        %3189 = vmatpush1.msra.mxu0 0.0
        %3190 = vmatprep.subr.mxu0 0.0
        %3191 = vmatpush1.msra.mxu0 0.0
        %3192 = vmatprep.subr.mxu0 0.0
        %3193 = vmatpush1.msra.mxu0 0.0
        %3194 = vmatprep.subr.mxu0 0.0
        %3195 = vmatpush1.msra.mxu0 0.0
        %3196 = vmatprep.subr.mxu0 0.0
        %3197 = vmatpush1.msra.mxu0 0.0
        %3198 = vmatprep.subr.mxu0 0.0
        %3199 = vmatpush1.msra.mxu0 0.0
        %3200 = vmatprep.mubr.f32.mxu0 0.0
        %3201 = vmatmul.mubr.f32.gmra.mrb[0].mxu0 %v2592
        %v3202 = vpop.f32.mrb[0].mxu0
        %v3203 = vadd.f32 0.0, %v3202
        %v3204 = vpop.f32.mrb[0].mxu0
        %v3205 = vadd.f32 0.0, %v3204
        %3206 = vmatprep.mubr.f32.mxu0 0.0
        %3207 = vmatmul.mubr.f32.gmra.mrb[0].mxu0 %v2595
        %v3208 = vpop.f32.mrb[0].mxu0
        %v3209 = vadd.f32 0.0, %v3208
        %v3210 = vpop.f32.mrb[0].mxu0
        %v3211 = vadd.f32 0.0, %v3210
        %3212 = vdwg.mxu0
        %v3213 = vld [vmem:[%s9] sm:$0xff]
        %v3214 = vld [vmem:[%s9 + $0x8] sm:$0xff]
        %v3215 = vld [vmem:[%s9 + $0x10] sm:$0xff]
        %v3216 = vld [vmem:[%s9 + $0x18] sm:$0xff]
        %v3217 = vld [vmem:[%s10] sm:$0xff]
        %v3218 = vld [vmem:[%s10 + $0x8] sm:$0xff]
        %v3219 = vld [vmem:[%s10 + $0x10] sm:$0xff]
        %v3220 = vld [vmem:[%s10 + $0x18] sm:$0xff]
        %v3221 = vmul.f32 %v2664, %v3213
        %v3222 = vmul.f32 %v2666, %v3214
        %v3223 = vmul.f32 %v2670, %v3215
        %v3224 = vmul.f32 %v2672, %v3216
        %v3225 = vadd.f32 %v3221, %v3217
        %v3226 = vadd.f32 %v3222, %v3218
        %v3227 = vadd.f32 %v3223, %v3219
        %v3228 = vadd.f32 %v3224, %v3220
        %v3229 = vmax.f32 %v3225, 0.0
        %v3230 = vmax.f32 %v3226, 0.0
        %v3231 = vmax.f32 %v3227, 0.0
        %v3232 = vmax.f32 %v3228, 0.0
        %3233 = vst [vmem:[%s445] sm:$0xff] %v3229
        %3234 = vst [vmem:[%s445 + $0x8] sm:$0xff] %v3230
        %3235 = vst [vmem:[%s445 + $0x10] sm:$0xff] %v3231
        %3236 = vst [vmem:[%s445 + $0x18] sm:$0xff] %v3232
        %v3237 = vmul.f32 %v2741, %v3213
        %v3238 = vmul.f32 %v2743, %v3214
        %v3239 = vmul.f32 %v2747, %v3215
        %v3240 = vmul.f32 %v2749, %v3216
        %v3241 = vadd.f32 %v3237, %v3217
        %v3242 = vadd.f32 %v3238, %v3218
        %v3243 = vadd.f32 %v3239, %v3219
        %v3244 = vadd.f32 %v3240, %v3220
        %v3245 = vmax.f32 %v3241, 0.0
        %v3246 = vmax.f32 %v3242, 0.0
        %v3247 = vmax.f32 %v3243, 0.0
        %v3248 = vmax.f32 %v3244, 0.0
        %s3249 = scalar_lea.vmem %s445, 32 [#allocation12]
        %3250 = vst [vmem:[%s3249] sm:$0xff] %v3245
        %3251 = vst [vmem:[%s3249 + $0x8] sm:$0xff] %v3246
        %3252 = vst [vmem:[%s3249 + $0x10] sm:$0xff] %v3247
        %3253 = vst [vmem:[%s3249 + $0x18] sm:$0xff] %v3248
        %v3254 = vmul.f32 %v2818, %v3213
        %v3255 = vmul.f32 %v2820, %v3214
        %v3256 = vmul.f32 %v2824, %v3215
        %v3257 = vmul.f32 %v2826, %v3216
        %v3258 = vadd.f32 %v3254, %v3217
        %v3259 = vadd.f32 %v3255, %v3218
        %v3260 = vadd.f32 %v3256, %v3219
        %v3261 = vadd.f32 %v3257, %v3220
        %v3262 = vmax.f32 %v3258, 0.0
        %v3263 = vmax.f32 %v3259, 0.0
        %v3264 = vmax.f32 %v3260, 0.0
        %v3265 = vmax.f32 %v3261, 0.0
        %s3266 = scalar_lea.vmem %s445, 64 [#allocation12]
        %3267 = vst [vmem:[%s3266] sm:$0xff] %v3262
        %3268 = vst [vmem:[%s3266 + $0x8] sm:$0xff] %v3263
        %3269 = vst [vmem:[%s3266 + $0x10] sm:$0xff] %v3264
        %3270 = vst [vmem:[%s3266 + $0x18] sm:$0xff] %v3265
        %v3271 = vmul.f32 %v2895, %v3213
        %v3272 = vmul.f32 %v2897, %v3214
        %v3273 = vmul.f32 %v2901, %v3215
        %v3274 = vmul.f32 %v2903, %v3216
        %v3275 = vadd.f32 %v3271, %v3217
        %v3276 = vadd.f32 %v3272, %v3218
        %v3277 = vadd.f32 %v3273, %v3219
        %v3278 = vadd.f32 %v3274, %v3220
        %v3279 = vmax.f32 %v3275, 0.0
        %v3280 = vmax.f32 %v3276, 0.0
        %v3281 = vmax.f32 %v3277, 0.0
        %v3282 = vmax.f32 %v3278, 0.0
        %s3283 = scalar_lea.vmem %s445, 96 [#allocation12]
        %3284 = vst [vmem:[%s3283] sm:$0xff] %v3279
        %3285 = vst [vmem:[%s3283 + $0x8] sm:$0xff] %v3280
        %3286 = vst [vmem:[%s3283 + $0x10] sm:$0xff] %v3281
        %3287 = vst [vmem:[%s3283 + $0x18] sm:$0xff] %v3282
        %v3288 = vmul.f32 %v2972, %v3213
        %v3289 = vmul.f32 %v2974, %v3214
        %v3290 = vmul.f32 %v2978, %v3215
        %v3291 = vmul.f32 %v2980, %v3216
        %v3292 = vadd.f32 %v3288, %v3217
        %v3293 = vadd.f32 %v3289, %v3218
        %v3294 = vadd.f32 %v3290, %v3219
        %v3295 = vadd.f32 %v3291, %v3220
        %v3296 = vmax.f32 %v3292, 0.0
        %v3297 = vmax.f32 %v3293, 0.0
        %v3298 = vmax.f32 %v3294, 0.0
        %v3299 = vmax.f32 %v3295, 0.0
        %s3300 = scalar_lea.vmem %s445, 128 [#allocation12]
        %3301 = vst [vmem:[%s3300] sm:$0xff] %v3296
        %3302 = vst [vmem:[%s3300 + $0x8] sm:$0xff] %v3297
        %3303 = vst [vmem:[%s3300 + $0x10] sm:$0xff] %v3298
        %3304 = vst [vmem:[%s3300 + $0x18] sm:$0xff] %v3299
        %v3305 = vmul.f32 %v3049, %v3213
        %v3306 = vmul.f32 %v3051, %v3214
        %v3307 = vmul.f32 %v3055, %v3215
        %v3308 = vmul.f32 %v3057, %v3216
        %v3309 = vadd.f32 %v3305, %v3217
        %v3310 = vadd.f32 %v3306, %v3218
        %v3311 = vadd.f32 %v3307, %v3219
        %v3312 = vadd.f32 %v3308, %v3220
        %v3313 = vmax.f32 %v3309, 0.0
        %v3314 = vmax.f32 %v3310, 0.0
        %v3315 = vmax.f32 %v3311, 0.0
        %v3316 = vmax.f32 %v3312, 0.0
        %s3317 = scalar_lea.vmem %s445, 160 [#allocation12]
        %3318 = vst [vmem:[%s3317] sm:$0xff] %v3313
        %3319 = vst [vmem:[%s3317 + $0x8] sm:$0xff] %v3314
        %3320 = vst [vmem:[%s3317 + $0x10] sm:$0xff] %v3315
        %3321 = vst [vmem:[%s3317 + $0x18] sm:$0xff] %v3316
        %v3322 = vmul.f32 %v3126, %v3213
        %v3323 = vmul.f32 %v3128, %v3214
        %v3324 = vmul.f32 %v3132, %v3215
        %v3325 = vmul.f32 %v3134, %v3216
        %v3326 = vadd.f32 %v3322, %v3217
        %v3327 = vadd.f32 %v3323, %v3218
        %v3328 = vadd.f32 %v3324, %v3219
        %v3329 = vadd.f32 %v3325, %v3220
        %v3330 = vmax.f32 %v3326, 0.0
        %v3331 = vmax.f32 %v3327, 0.0
        %v3332 = vmax.f32 %v3328, 0.0
        %v3333 = vmax.f32 %v3329, 0.0
        %s3334 = scalar_lea.vmem %s445, 192 [#allocation12]
        %3335 = vst [vmem:[%s3334] sm:$0xff] %v3330
        %3336 = vst [vmem:[%s3334 + $0x8] sm:$0xff] %v3331
        %3337 = vst [vmem:[%s3334 + $0x10] sm:$0xff] %v3332
        %3338 = vst [vmem:[%s3334 + $0x18] sm:$0xff] %v3333
        %v3339 = vmul.f32 %v3203, %v3213
        %v3340 = vmul.f32 %v3205, %v3214
        %v3341 = vmul.f32 %v3209, %v3215
        %v3342 = vmul.f32 %v3211, %v3216
        %v3343 = vadd.f32 %v3339, %v3217
        %v3344 = vadd.f32 %v3340, %v3218
        %v3345 = vadd.f32 %v3341, %v3219
        %v3346 = vadd.f32 %v3342, %v3220
        %v3347 = vmax.f32 %v3343, 0.0
        %v3348 = vmax.f32 %v3344, 0.0
        %v3349 = vmax.f32 %v3345, 0.0
        %v3350 = vmax.f32 %v3346, 0.0
        %s3351 = scalar_lea.vmem %s445, 224 [#allocation12]
        %3352 = vst [vmem:[%s3351] sm:$0xff] %v3347
        %3353 = vst [vmem:[%s3351 + $0x8] sm:$0xff] %v3348
        %3354 = vst [vmem:[%s3351 + $0x10] sm:$0xff] %v3349
        %3355 = vst [vmem:[%s3351 + $0x18] sm:$0xff] %v3350
        %s3356 = sand.u32 %s274, 1
        %s3357 = scalar_lea.sflag [#allocation6], %s3356
        %s3358 = sand.u32 %s274, 1
        %s3359 = smul.addr %s3358, 256
        %s3360 = scalar_lea.vmem [#allocation12], %s3359
        // Predicated region
        $region81: #{tpu_custom_call.1} parent=63 // pred_check
          %p3361 = pneg %p284
        $region82: #{tpu_custom_call.1} parent=63 // pred_check_branch
          %3363 = sbr.rel (%p3361) target = $region84
        $region83: #{tpu_custom_call.1} parent=63 // pred_region
          %s3364 = smul.u32 8, %s30
          %s3366 = ssub.s32 4096, 4096
          %3367 = vsyncadd %s3357, %s3366
          %s3368 = smul.addr %s3364, 4
          %s3369 = smul.addr %s3368, 128
          %s3370 = scalar_lea.hbm %s11, %s3369
          %s3371 = sshll.u32 %s3360, 4
          %s3372 = int_to_ptr.vmem [resolvable:$true] %s3371
          %3377 = dma.vmem_to_hbm [thread:$0]  %s3372, 4096, %s3370, %s3357, 256, 256, 16
        $region84: #{tpu_custom_call.1} parent=63 // pred_fallthru
          _
      $region64: #{tpu_custom_call.1} parent=5 // pred_fallthru
        _
      %p3378 = scmp.le.s32.totalorder 2, %s25
      // Predicated region
      $region85: #{tpu_custom_call.1} parent=5 // pred_check
        %p3379 = pneg %p3378
      $region86: #{tpu_custom_call.1} parent=5 // pred_check_branch
        %3381 = sbr.rel (%p3379) target = $region88
      $region87: #{tpu_custom_call.1} parent=5 // pred_region
        %s3382 = ssub.s32 %s25, 2
        // Predicated region
        $region89: #{tpu_custom_call.1} parent=87 // pred_check
          %p3383 = pneg %p290
        $region90: #{tpu_custom_call.1} parent=87 // pred_check_branch
          %3385 = sbr.rel (%p3383) target = $region92
        $region91: #{tpu_custom_call.1} parent=87 // pred_region
          %s3386 = sand.u32 %s275, 1
          %s3387 = scalar_lea.sflag [#allocation6], %s3386
          %s3388 = sand.u32 %s275, 1
          %s3389 = smul.addr %s3388, 256
          %s3390 = scalar_lea.vmem [#allocation12], %s3389
          %3391 = dma.done %s3387, 4096
        $region92: #{tpu_custom_call.1} parent=87 // pred_fallthru
          _
      $region88: #{tpu_custom_call.1} parent=5 // pred_fallthru
        _
    $region6: #{tpu_custom_call.1} parent=1 // loop_footer
      %s29 = sadd.s32 1, %s25
    $region7: #{tpu_custom_call.1} parent=1 // loop_footer_branch
      %24 = sbr.rel target = $region3
    $region8: #{tpu_custom_call.1} parent=1 // loop_exit
      _
    %3392 = vsyncpa [#allocation5], 1
    %s3393 = scalar_lea.sflag [#allocation5], 1
    %3394 = vsyncpa %s3393, 1
    %3395 = vsyncpa [#allocation8], 1
    %3396 = vsyncpa [#allocation11], 1
    %3397 = vsyncpa [#allocation6], 1
    %s3398 = scalar_lea.sflag [#allocation6], 1
    %3399 = vsyncpa %s3398, 1

</llo_original>
